<compile_context>
chip_gen: v7x
topology: tpu7x:2x2x1
jax: 0.10.0
libtpu: 0.0.40
codegen_flags: <defaults>
</compile_context>

<pallas_src>
import jax
import jax.numpy as jnp
import numpy as np
from jax import lax
from jax.experimental import pallas as pl
from jax.experimental.pallas import tpu as pltpu

VOCAB_SIZE = 18991   # language='en'
EMBED_DIM = 64       # small, consistent with module's embed_dim role
HIDDEN_DIM = 32      # small, consistent with module's hidden_dim role
NUM_TAGS = 3
NUM_TAGS_PAD = 128   # lane-dense padded output width (sliced to NUM_TAGS in wrapper)
B_TILE = 64          # batch tile: fills MXU rows, keeps DMAs large


def lstm_tagger_kernel(len_ref, gx_ref, whh_ref, wout_ref, bout_ref,
                       out_ref, ho_scr):
    """len_ref (Bt,1) i32, gx_ref (T,Bt,4H) = x@W_ih + b, out_ref (T,Bt,N_PAD)."""
    T, Bt, _ = gx_ref.shape
    H = whh_ref.shape[0]

    # Hoist loads out of the recurrence (resident in vregs).
    whh = whh_ref[...]                   # (H, 4H)
    lens = len_ref[...]                  # (Bt, 1) int32

    def step(t, carry):
        h, c = carry
        # Only the recurrent matmul + gate math stays on the serial path.
        gates = gx_ref[t] + jnp.dot(h, whh, preferred_element_type=jnp.float32)  # (Bt,4H)

        # Two full-vreg EUP passes, then slice.
        sig = jax.nn.sigmoid(gates)
        tnh = jnp.tanh(gates)
        i_g = sig[:, 0 * H:1 * H]
        f_g = sig[:, 1 * H:2 * H]
        g_g = tnh[:, 2 * H:3 * H]
        o_g = sig[:, 3 * H:4 * H]

        c_new = f_g * c + i_g * g_g
        h_new = o_g * jnp.tanh(c_new)

        # Dense, unmasked store; output masking is deferred to the epilogue.
        ho_scr[t] = h_new

        # pack_padded_sequence semantics: padded steps never advance the state.
        m = t < lens                                   # (Bt, 1) bool
        return (jnp.where(m, h_new, h), jnp.where(m, c_new, c))

    h0 = jnp.zeros((Bt, H), jnp.float32)
    c0 = jnp.zeros((Bt, H), jnp.float32)
    lax.fori_loop(0, T, step, (h0, c0), unroll=8)

    # Epilogue: one vectorized mask pass fused into the batched output projection.
    t_iota = lax.broadcasted_iota(jnp.int32, (T, Bt, H), 0)
    valid = t_iota < lens[None, :, :]                  # (T, Bt, H) bool
    ho = jnp.where(valid, ho_scr[...], 0.0).reshape(T * Bt, H)
    out_ref[...] = (jnp.dot(ho, wout_ref[...], preferred_element_type=jnp.float32)
                    + bout_ref[...]).reshape(T, Bt, out_ref.shape[2]).astype(out_ref.dtype)


def ner_tagger_forward(input_seq, params):
    """input_seq: (B, T) int32.  Returns (logits (B, T, num_tags), lengths (B,))."""
    B, T = input_seq.shape
    H = HIDDEN_DIM
    lengths = jnp.sum(input_seq != 0, axis=1).astype(jnp.int32)

    # Embedding lookup (glue) + eval-mode dropout (identity).
    x = params["embedding"][input_seq].astype(jnp.float32)           # (B, T, E)

    # Input projection hoisted into the wrapper (XLA fuses with the gather);
    # result is lane-dense (4H = 128).
    gx = jnp.einsum("bte,eg->btg", x, params["w_ih"]) + params["b"]  # (B, T, 4H)
    gx_tm = jnp.transpose(gx, (1, 0, 2))                             # (T, B, 4H)

    # Pad batch to a tile multiple; padded rows get length 0 (state stays 0).
    B_pad = ((B + B_TILE - 1) // B_TILE) * B_TILE
    gx_tm = jnp.pad(gx_tm, ((0, 0), (0, B_pad - B), (0, 0)))
    len_col = jnp.pad(lengths, (0, B_pad - B))[:, None]              # (B_pad, 1) int32

    # Pad the output projection to a lane-dense 128-wide slab.
    w_out_p = jnp.zeros((H, NUM_TAGS_PAD), jnp.float32).at[:, :NUM_TAGS].set(params["w_out"])
    b_out_p = jnp.zeros((1, NUM_TAGS_PAD), jnp.float32).at[:, :NUM_TAGS].set(params["b_out"])

    # Advisory cost estimate (kernel-side work only).
    flops = 2 * T * B_pad * H * (4 * H) + 2 * T * B_pad * H * NUM_TAGS_PAD
    transcendentals = T * B_pad * 9 * H                       # sigmoid(4H)+tanh(4H)+tanh(H)
    bytes_accessed = 4 * (T * B_pad * 4 * H                   # gx in
                          + T * B_pad * NUM_TAGS_PAD          # logits out
                          + H * 4 * H + H * NUM_TAGS_PAD + NUM_TAGS_PAD + B_pad)

    grid = (B_pad // B_TILE,)   # independent sequences: >=2 tiles shard across v7x TCs
    out_tm = pl.pallas_call(
        lstm_tagger_kernel,
        out_shape=jax.ShapeDtypeStruct((T, B_pad, NUM_TAGS_PAD), jnp.float32),
        grid=grid,
        in_specs=[
            pl.BlockSpec((B_TILE, 1), lambda bb: (bb, 0)),                  # lengths
            pl.BlockSpec((T, B_TILE, 4 * H), lambda bb: (0, bb, 0)),        # gx (time-major)
            pl.BlockSpec((H, 4 * H), lambda bb: (0, 0)),                    # w_hh
            pl.BlockSpec((H, NUM_TAGS_PAD), lambda bb: (0, 0)),             # w_out (padded)
            pl.BlockSpec((1, NUM_TAGS_PAD), lambda bb: (0, 0)),             # b_out (padded)
        ],
        out_specs=pl.BlockSpec((T, B_TILE, NUM_TAGS_PAD), lambda bb: (0, bb, 0)),
        scratch_shapes=[
            pltpu.VMEM((T, B_TILE, HIDDEN_DIM), jnp.float32),   # unmasked LSTM outputs
        ],
        compiler_params=pltpu.CompilerParams(
            dimension_semantics=("parallel",)),
        cost_estimate=pl.CostEstimate(flops=flops,
                                      transcendentals=transcendentals,
                                      bytes_accessed=bytes_accessed),
    )(len_col, gx_tm, params["w_hh"], w_out_p, b_out_p)

    logits = jnp.transpose(out_tm[:, :B, :NUM_TAGS], (1, 0, 2))      # (B, T, num_tags)
    return logits, lengths


def ner_tagger_reference(input_seq, params):
    """Pure-JAX reference of the same forward pass (for correctness check)."""
    B, T = input_seq.shape
    H = HIDDEN_DIM
    lengths = jnp.sum(input_seq != 0, axis=1)
    x = params["embedding"][input_seq].astype(jnp.float32)

    def step(carry, t):
        h, c = carry
        x_t = x[:, t, :]
        m = (t < lengths).astype(jnp.float32)[:, None]
        gates = x_t @ params["w_ih"] + h @ params["w_hh"] + params["b"]
        i_g = jax.nn.sigmoid(gates[:, :H])
        f_g = jax.nn.sigmoid(gates[:, H:2 * H])
        g_g = jnp.tanh(gates[:, 2 * H:3 * H])
        o_g = jax.nn.sigmoid(gates[:, 3 * H:])
        c_new = f_g * c + i_g * g_g
        h_new = o_g * jnp.tanh(c_new)
        h = m * h_new + (1.0 - m) * h
        c = m * c_new + (1.0 - m) * c
        logits_t = (m * h_new) @ params["w_out"] + params["b_out"]
        return (h, c), logits_t

    init = (jnp.zeros((B, H), jnp.float32), jnp.zeros((B, H), jnp.float32))
    _, outs = lax.scan(step, init, jnp.arange(T))
    return jnp.transpose(outs, (1, 0, 2))


def init_params(key):
    ks = jax.random.split(key, 6)
    emb = 0.1 * jax.random.normal(ks[0], (VOCAB_SIZE, EMBED_DIM), jnp.float32)
    emb = emb.at[0].set(0.0)  # padding_idx=0
    return dict(
        embedding=emb,
        w_ih=0.1 * jax.random.normal(ks[1], (EMBED_DIM, 4 * HIDDEN_DIM), jnp.float32),
        w_hh=0.1 * jax.random.normal(ks[2], (HIDDEN_DIM, 4 * HIDDEN_DIM), jnp.float32),
        b=0.1 * jax.random.normal(ks[3], (1, 4 * HIDDEN_DIM), jnp.float32),  # b_ih + b_hh
        w_out=0.1 * jax.random.normal(ks[4], (HIDDEN_DIM, NUM_TAGS), jnp.float32),
        b_out=0.1 * jax.random.normal(ks[5], (1, NUM_TAGS), jnp.float32),
    )


if __name__ == "__main__":
    key = jax.random.PRNGKey(0)
    pkey, dkey = jax.random.split(key)
    params = init_params(pkey)

    B, T = 2, 8
    tokens = jax.random.randint(dkey, (B, T), 1, VOCAB_SIZE, dtype=jnp.int32)
    seq_lengths = jnp.array([T, 5], dtype=jnp.int32)      # trailing zero padding
    pos = jnp.arange(T)[None, :]
    input_seq = jnp.where(pos < seq_lengths[:, None], tokens, 0)

    logits, lengths = ner_tagger_forward(input_seq, params)
    logits = jax.block_until_ready(logits)

    # pad_packed_sequence pads only to max(lengths) within the batch.
    max_len = int(jnp.max(lengths))
    logits = logits[:, :max_len, :]

    ref = ner_tagger_reference(input_seq, params)[:, :max_len, :]
    np.testing.assert_allclose(np.asarray(logits), np.asarray(ref),
                               rtol=1e-3, atol=1e-3)
    print("KERNEL_OK")
</pallas_src>

<mosaic_0001>
module attributes {stable_mosaic.version = 11 : i64} {
  func.func @lstm_tagger_kernel(%arg0: i32, %arg1: memref<64x1xi32, #tpu.memory_space<vmem>>, %arg2: memref<8x64x128xf32, #tpu.memory_space<vmem>>, %arg3: memref<32x128xf32, #tpu.memory_space<vmem>>, %arg4: memref<32x128xf32, #tpu.memory_space<vmem>>, %arg5: memref<1x128xf32, #tpu.memory_space<vmem>>, %arg6: memref<8x64x128xf32, #tpu.memory_space<vmem>>, %arg7: memref<8x64x32xf32, #tpu.memory_space<vmem>>) attributes {dimension_semantics = [#tpu.dimension_semantics<parallel>], iteration_bounds = array<i64: 1>, scalar_prefetch = 0 : i64, scratch_operands = 1 : i64, tpu.core_type = #tpu.core_type<tc>, window_params = [{transform_indices = @transform_0, window_bounds = array<i64: 64, 1>}, {transform_indices = @transform_1, window_bounds = array<i64: 8, 64, 128>}, {pipeline_mode = #tpu.pipeline_mode<synchronous>, transform_indices = @transform_2, window_bounds = array<i64: 32, 128>}, {pipeline_mode = #tpu.pipeline_mode<synchronous>, transform_indices = @transform_3, window_bounds = array<i64: 32, 128>}, {pipeline_mode = #tpu.pipeline_mode<synchronous>, transform_indices = @transform_4, window_bounds = array<i64: 1, 128>}, {transform_indices = @transform_5, window_bounds = array<i64: 8, 64, 128>}]} {
    %c0 = arith.constant 0 : index
    %c0_0 = arith.constant 0 : index
    %0 = vector.load %arg3[%c0, %c0_0] : memref<32x128xf32, #tpu.memory_space<vmem>>, vector<32x128xf32>
    %c0_1 = arith.constant 0 : index
    %c0_2 = arith.constant 0 : index
    %1 = vector.load %arg1[%c0_1, %c0_2] : memref<64x1xi32, #tpu.memory_space<vmem>>, vector<64x1xi32>
    %cst = arith.constant 0.000000e+00 : f32
    %2 = vector.broadcast %cst : f32 to vector<64x32xf32>
    %cst_3 = arith.constant 0.000000e+00 : f32
    %3 = vector.broadcast %cst_3 : f32 to vector<64x32xf32>
    %c0_i32 = arith.constant 0 : i32
    %4 = arith.index_cast %c0_i32 : i32 to index
    %c0_4 = arith.constant 0 : index
    %c0_5 = arith.constant 0 : index
    %5 = vector.load %arg2[%4, %c0_4, %c0_5] : memref<8x64x128xf32, #tpu.memory_space<vmem>>, vector<1x64x128xf32>
    %6 = vector.shape_cast %5 : vector<1x64x128xf32> to vector<64x128xf32>
    %cst_6 = arith.constant dense<0.000000e+00> : vector<64x128xf32>
    %7 = tpu.matmul %2, %0, %cst_6 {dimension_numbers = #tpu.dot_dimension_numbers<[1], [0], [0], [1], [0, 0, 1, 1], [], []>} : vector<64x32xf32>, vector<32x128xf32>, vector<64x128xf32> -> vector<64x128xf32>
    %8 = arith.addf %6, %7 : vector<64x128xf32>
    %9 = arith.negf %8 : vector<64x128xf32>
    %10 = math.exp %9 : vector<64x128xf32>
    %cst_7 = arith.constant 1.000000e+00 : f32
    %11 = vector.broadcast %cst_7 : f32 to vector<64x128xf32>
    %12 = arith.addf %11, %10 : vector<64x128xf32>
    %13 = arith.divf %11, %12 : vector<64x128xf32>
    %14 = math.tanh %8 : vector<64x128xf32>
    %15 = vector.extract_strided_slice %13 {offsets = [0, 0], sizes = [64, 32], strides = [1, 1]} : vector<64x128xf32> to vector<64x32xf32>
    %16 = vector.extract_strided_slice %13 {offsets = [0, 32], sizes = [64, 32], strides = [1, 1]} : vector<64x128xf32> to vector<64x32xf32>
    %17 = vector.extract_strided_slice %14 {offsets = [0, 64], sizes = [64, 32], strides = [1, 1]} : vector<64x128xf32> to vector<64x32xf32>
    %18 = vector.extract_strided_slice %13 {offsets = [0, 96], sizes = [64, 32], strides = [1, 1]} : vector<64x128xf32> to vector<64x32xf32>
    %19 = arith.mulf %16, %3 : vector<64x32xf32>
    %20 = arith.mulf %15, %17 : vector<64x32xf32>
    %21 = arith.addf %19, %20 : vector<64x32xf32>
    %22 = math.tanh %21 : vector<64x32xf32>
    %23 = arith.mulf %18, %22 : vector<64x32xf32>
    %24 = arith.index_cast %c0_i32 : i32 to index
    %c0_8 = arith.constant 0 : index
    %c0_9 = arith.constant 0 : index
    %25 = vector.load %arg7[%24, %c0_8, %c0_9] : memref<8x64x32xf32, #tpu.memory_space<vmem>>, vector<1x64x32xf32>
    %26 = vector.shape_cast %25 : vector<1x64x32xf32> to vector<64x32xf32>
    %27 = vector.shape_cast %23 : vector<64x32xf32> to vector<1x64x32xf32>
    tpu.vector_store %arg7[%24, %c0_8, %c0_9], %27 {strides = array<i32>} : memref<8x64x32xf32, #tpu.memory_space<vmem>>, vector<1x64x32xf32>,
    %28 = vector.broadcast %c0_i32 : i32 to vector<64x1xi32>
    %29 = arith.cmpi slt, %28, %1 : vector<64x1xi32>
    %30 = vector.shape_cast %29 : vector<64x1xi1> to vector<64x1xi1>
    %31 = vector.broadcast %30 : vector<64x1xi1> to vector<64x32xi1>
    %32 = arith.select %31, %23, %2 : vector<64x32xi1>, vector<64x32xf32>
    %33 = vector.shape_cast %29 : vector<64x1xi1> to vector<64x1xi1>
    %34 = vector.broadcast %33 : vector<64x1xi1> to vector<64x32xi1>
    %35 = arith.select %34, %21, %3 : vector<64x32xi1>, vector<64x32xf32>
    %c1_i32 = arith.constant 1 : i32
    %36 = arith.index_cast %c1_i32 : i32 to index
    %c0_10 = arith.constant 0 : index
    %c0_11 = arith.constant 0 : index
    %37 = vector.load %arg2[%36, %c0_10, %c0_11] : memref<8x64x128xf32, #tpu.memory_space<vmem>>, vector<1x64x128xf32>
    %38 = vector.shape_cast %37 : vector<1x64x128xf32> to vector<64x128xf32>
    %cst_12 = arith.constant dense<0.000000e+00> : vector<64x128xf32>
    %39 = tpu.matmul %32, %0, %cst_12 {dimension_numbers = #tpu.dot_dimension_numbers<[1], [0], [0], [1], [0, 0, 1, 1], [], []>} : vector<64x32xf32>, vector<32x128xf32>, vector<64x128xf32> -> vector<64x128xf32>
    %40 = arith.addf %38, %39 : vector<64x128xf32>
    %41 = arith.negf %40 : vector<64x128xf32>
    %42 = math.exp %41 : vector<64x128xf32>
    %cst_13 = arith.constant 1.000000e+00 : f32
    %43 = vector.broadcast %cst_13 : f32 to vector<64x128xf32>
    %44 = arith.addf %43, %42 : vector<64x128xf32>
    %45 = arith.divf %43, %44 : vector<64x128xf32>
    %46 = math.tanh %40 : vector<64x128xf32>
    %47 = vector.extract_strided_slice %45 {offsets = [0, 0], sizes = [64, 32], strides = [1, 1]} : vector<64x128xf32> to vector<64x32xf32>
    %48 = vector.extract_strided_slice %45 {offsets = [0, 32], sizes = [64, 32], strides = [1, 1]} : vector<64x128xf32> to vector<64x32xf32>
    %49 = vector.extract_strided_slice %46 {offsets = [0, 64], sizes = [64, 32], strides = [1, 1]} : vector<64x128xf32> to vector<64x32xf32>
    %50 = vector.extract_strided_slice %45 {offsets = [0, 96], sizes = [64, 32], strides = [1, 1]} : vector<64x128xf32> to vector<64x32xf32>
    %51 = arith.mulf %48, %35 : vector<64x32xf32>
    %52 = arith.mulf %47, %49 : vector<64x32xf32>
    %53 = arith.addf %51, %52 : vector<64x32xf32>
    %54 = math.tanh %53 : vector<64x32xf32>
    %55 = arith.mulf %50, %54 : vector<64x32xf32>
    %56 = arith.index_cast %c1_i32 : i32 to index
    %c0_14 = arith.constant 0 : index
    %c0_15 = arith.constant 0 : index
    %57 = vector.load %arg7[%56, %c0_14, %c0_15] : memref<8x64x32xf32, #tpu.memory_space<vmem>>, vector<1x64x32xf32>
    %58 = vector.shape_cast %57 : vector<1x64x32xf32> to vector<64x32xf32>
    %59 = vector.shape_cast %55 : vector<64x32xf32> to vector<1x64x32xf32>
    tpu.vector_store %arg7[%56, %c0_14, %c0_15], %59 {strides = array<i32>} : memref<8x64x32xf32, #tpu.memory_space<vmem>>, vector<1x64x32xf32>,
    %60 = vector.broadcast %c1_i32 : i32 to vector<64x1xi32>
    %61 = arith.cmpi slt, %60, %1 : vector<64x1xi32>
    %62 = vector.shape_cast %61 : vector<64x1xi1> to vector<64x1xi1>
    %63 = vector.broadcast %62 : vector<64x1xi1> to vector<64x32xi1>
    %64 = arith.select %63, %55, %32 : vector<64x32xi1>, vector<64x32xf32>
    %65 = vector.shape_cast %61 : vector<64x1xi1> to vector<64x1xi1>
    %66 = vector.broadcast %65 : vector<64x1xi1> to vector<64x32xi1>
    %67 = arith.select %66, %53, %35 : vector<64x32xi1>, vector<64x32xf32>
    %c2_i32 = arith.constant 2 : i32
    %68 = arith.index_cast %c2_i32 : i32 to index
    %c0_16 = arith.constant 0 : index
    %c0_17 = arith.constant 0 : index
    %69 = vector.load %arg2[%68, %c0_16, %c0_17] : memref<8x64x128xf32, #tpu.memory_space<vmem>>, vector<1x64x128xf32>
    %70 = vector.shape_cast %69 : vector<1x64x128xf32> to vector<64x128xf32>
    %cst_18 = arith.constant dense<0.000000e+00> : vector<64x128xf32>
    %71 = tpu.matmul %64, %0, %cst_18 {dimension_numbers = #tpu.dot_dimension_numbers<[1], [0], [0], [1], [0, 0, 1, 1], [], []>} : vector<64x32xf32>, vector<32x128xf32>, vector<64x128xf32> -> vector<64x128xf32>
    %72 = arith.addf %70, %71 : vector<64x128xf32>
    %73 = arith.negf %72 : vector<64x128xf32>
    %74 = math.exp %73 : vector<64x128xf32>
    %cst_19 = arith.constant 1.000000e+00 : f32
    %75 = vector.broadcast %cst_19 : f32 to vector<64x128xf32>
    %76 = arith.addf %75, %74 : vector<64x128xf32>
    %77 = arith.divf %75, %76 : vector<64x128xf32>
    %78 = math.tanh %72 : vector<64x128xf32>
    %79 = vector.extract_strided_slice %77 {offsets = [0, 0], sizes = [64, 32], strides = [1, 1]} : vector<64x128xf32> to vector<64x32xf32>
    %80 = vector.extract_strided_slice %77 {offsets = [0, 32], sizes = [64, 32], strides = [1, 1]} : vector<64x128xf32> to vector<64x32xf32>
    %81 = vector.extract_strided_slice %78 {offsets = [0, 64], sizes = [64, 32], strides = [1, 1]} : vector<64x128xf32> to vector<64x32xf32>
    %82 = vector.extract_strided_slice %77 {offsets = [0, 96], sizes = [64, 32], strides = [1, 1]} : vector<64x128xf32> to vector<64x32xf32>
    %83 = arith.mulf %80, %67 : vector<64x32xf32>
    %84 = arith.mulf %79, %81 : vector<64x32xf32>
    %85 = arith.addf %83, %84 : vector<64x32xf32>
    %86 = math.tanh %85 : vector<64x32xf32>
    %87 = arith.mulf %82, %86 : vector<64x32xf32>
    %88 = arith.index_cast %c2_i32 : i32 to index
    %c0_20 = arith.constant 0 : index
    %c0_21 = arith.constant 0 : index
    %89 = vector.load %arg7[%88, %c0_20, %c0_21] : memref<8x64x32xf32, #tpu.memory_space<vmem>>, vector<1x64x32xf32>
    %90 = vector.shape_cast %89 : vector<1x64x32xf32> to vector<64x32xf32>
    %91 = vector.shape_cast %87 : vector<64x32xf32> to vector<1x64x32xf32>
    tpu.vector_store %arg7[%88, %c0_20, %c0_21], %91 {strides = array<i32>} : memref<8x64x32xf32, #tpu.memory_space<vmem>>, vector<1x64x32xf32>,
    %92 = vector.broadcast %c2_i32 : i32 to vector<64x1xi32>
    %93 = arith.cmpi slt, %92, %1 : vector<64x1xi32>
    %94 = vector.shape_cast %93 : vector<64x1xi1> to vector<64x1xi1>
    %95 = vector.broadcast %94 : vector<64x1xi1> to vector<64x32xi1>
    %96 = arith.select %95, %87, %64 : vector<64x32xi1>, vector<64x32xf32>
    %97 = vector.shape_cast %93 : vector<64x1xi1> to vector<64x1xi1>
    %98 = vector.broadcast %97 : vector<64x1xi1> to vector<64x32xi1>
    %99 = arith.select %98, %85, %67 : vector<64x32xi1>, vector<64x32xf32>
    %c3_i32 = arith.constant 3 : i32
    %100 = arith.index_cast %c3_i32 : i32 to index
    %c0_22 = arith.constant 0 : index
    %c0_23 = arith.constant 0 : index
    %101 = vector.load %arg2[%100, %c0_22, %c0_23] : memref<8x64x128xf32, #tpu.memory_space<vmem>>, vector<1x64x128xf32>
    %102 = vector.shape_cast %101 : vector<1x64x128xf32> to vector<64x128xf32>
    %cst_24 = arith.constant dense<0.000000e+00> : vector<64x128xf32>
    %103 = tpu.matmul %96, %0, %cst_24 {dimension_numbers = #tpu.dot_dimension_numbers<[1], [0], [0], [1], [0, 0, 1, 1], [], []>} : vector<64x32xf32>, vector<32x128xf32>, vector<64x128xf32> -> vector<64x128xf32>
    %104 = arith.addf %102, %103 : vector<64x128xf32>
    %105 = arith.negf %104 : vector<64x128xf32>
    %106 = math.exp %105 : vector<64x128xf32>
    %cst_25 = arith.constant 1.000000e+00 : f32
    %107 = vector.broadcast %cst_25 : f32 to vector<64x128xf32>
    %108 = arith.addf %107, %106 : vector<64x128xf32>
    %109 = arith.divf %107, %108 : vector<64x128xf32>
    %110 = math.tanh %104 : vector<64x128xf32>
    %111 = vector.extract_strided_slice %109 {offsets = [0, 0], sizes = [64, 32], strides = [1, 1]} : vector<64x128xf32> to vector<64x32xf32>
    %112 = vector.extract_strided_slice %109 {offsets = [0, 32], sizes = [64, 32], strides = [1, 1]} : vector<64x128xf32> to vector<64x32xf32>
    %113 = vector.extract_strided_slice %110 {offsets = [0, 64], sizes = [64, 32], strides = [1, 1]} : vector<64x128xf32> to vector<64x32xf32>
    %114 = vector.extract_strided_slice %109 {offsets = [0, 96], sizes = [64, 32], strides = [1, 1]} : vector<64x128xf32> to vector<64x32xf32>
    %115 = arith.mulf %112, %99 : vector<64x32xf32>
    %116 = arith.mulf %111, %113 : vector<64x32xf32>
    %117 = arith.addf %115, %116 : vector<64x32xf32>
    %118 = math.tanh %117 : vector<64x32xf32>
    %119 = arith.mulf %114, %118 : vector<64x32xf32>
    %120 = arith.index_cast %c3_i32 : i32 to index
    %c0_26 = arith.constant 0 : index
    %c0_27 = arith.constant 0 : index
    %121 = vector.load %arg7[%120, %c0_26, %c0_27] : memref<8x64x32xf32, #tpu.memory_space<vmem>>, vector<1x64x32xf32>
    %122 = vector.shape_cast %121 : vector<1x64x32xf32> to vector<64x32xf32>
    %123 = vector.shape_cast %119 : vector<64x32xf32> to vector<1x64x32xf32>
    tpu.vector_store %arg7[%120, %c0_26, %c0_27], %123 {strides = array<i32>} : memref<8x64x32xf32, #tpu.memory_space<vmem>>, vector<1x64x32xf32>,
    %124 = vector.broadcast %c3_i32 : i32 to vector<64x1xi32>
    %125 = arith.cmpi slt, %124, %1 : vector<64x1xi32>
    %126 = vector.shape_cast %125 : vector<64x1xi1> to vector<64x1xi1>
    %127 = vector.broadcast %126 : vector<64x1xi1> to vector<64x32xi1>
    %128 = arith.select %127, %119, %96 : vector<64x32xi1>, vector<64x32xf32>
    %129 = vector.shape_cast %125 : vector<64x1xi1> to vector<64x1xi1>
    %130 = vector.broadcast %129 : vector<64x1xi1> to vector<64x32xi1>
    %131 = arith.select %130, %117, %99 : vector<64x32xi1>, vector<64x32xf32>
    %c4_i32 = arith.constant 4 : i32
    %132 = arith.index_cast %c4_i32 : i32 to index
    %c0_28 = arith.constant 0 : index
    %c0_29 = arith.constant 0 : index
    %133 = vector.load %arg2[%132, %c0_28, %c0_29] : memref<8x64x128xf32, #tpu.memory_space<vmem>>, vector<1x64x128xf32>
    %134 = vector.shape_cast %133 : vector<1x64x128xf32> to vector<64x128xf32>
    %cst_30 = arith.constant dense<0.000000e+00> : vector<64x128xf32>
    %135 = tpu.matmul %128, %0, %cst_30 {dimension_numbers = #tpu.dot_dimension_numbers<[1], [0], [0], [1], [0, 0, 1, 1], [], []>} : vector<64x32xf32>, vector<32x128xf32>, vector<64x128xf32> -> vector<64x128xf32>
    %136 = arith.addf %134, %135 : vector<64x128xf32>
    %137 = arith.negf %136 : vector<64x128xf32>
    %138 = math.exp %137 : vector<64x128xf32>
    %cst_31 = arith.constant 1.000000e+00 : f32
    %139 = vector.broadcast %cst_31 : f32 to vector<64x128xf32>
    %140 = arith.addf %139, %138 : vector<64x128xf32>
    %141 = arith.divf %139, %140 : vector<64x128xf32>
    %142 = math.tanh %136 : vector<64x128xf32>
    %143 = vector.extract_strided_slice %141 {offsets = [0, 0], sizes = [64, 32], strides = [1, 1]} : vector<64x128xf32> to vector<64x32xf32>
    %144 = vector.extract_strided_slice %141 {offsets = [0, 32], sizes = [64, 32], strides = [1, 1]} : vector<64x128xf32> to vector<64x32xf32>
    %145 = vector.extract_strided_slice %142 {offsets = [0, 64], sizes = [64, 32], strides = [1, 1]} : vector<64x128xf32> to vector<64x32xf32>
    %146 = vector.extract_strided_slice %141 {offsets = [0, 96], sizes = [64, 32], strides = [1, 1]} : vector<64x128xf32> to vector<64x32xf32>
    %147 = arith.mulf %144, %131 : vector<64x32xf32>
    %148 = arith.mulf %143, %145 : vector<64x32xf32>
    %149 = arith.addf %147, %148 : vector<64x32xf32>
    %150 = math.tanh %149 : vector<64x32xf32>
    %151 = arith.mulf %146, %150 : vector<64x32xf32>
    %152 = arith.index_cast %c4_i32 : i32 to index
    %c0_32 = arith.constant 0 : index
    %c0_33 = arith.constant 0 : index
    %153 = vector.load %arg7[%152, %c0_32, %c0_33] : memref<8x64x32xf32, #tpu.memory_space<vmem>>, vector<1x64x32xf32>
    %154 = vector.shape_cast %153 : vector<1x64x32xf32> to vector<64x32xf32>
    %155 = vector.shape_cast %151 : vector<64x32xf32> to vector<1x64x32xf32>
    tpu.vector_store %arg7[%152, %c0_32, %c0_33], %155 {strides = array<i32>} : memref<8x64x32xf32, #tpu.memory_space<vmem>>, vector<1x64x32xf32>,
    %156 = vector.broadcast %c4_i32 : i32 to vector<64x1xi32>
    %157 = arith.cmpi slt, %156, %1 : vector<64x1xi32>
    %158 = vector.shape_cast %157 : vector<64x1xi1> to vector<64x1xi1>
    %159 = vector.broadcast %158 : vector<64x1xi1> to vector<64x32xi1>
    %160 = arith.select %159, %151, %128 : vector<64x32xi1>, vector<64x32xf32>
    %161 = vector.shape_cast %157 : vector<64x1xi1> to vector<64x1xi1>
    %162 = vector.broadcast %161 : vector<64x1xi1> to vector<64x32xi1>
    %163 = arith.select %162, %149, %131 : vector<64x32xi1>, vector<64x32xf32>
    %c5_i32 = arith.constant 5 : i32
    %164 = arith.index_cast %c5_i32 : i32 to index
    %c0_34 = arith.constant 0 : index
    %c0_35 = arith.constant 0 : index
    %165 = vector.load %arg2[%164, %c0_34, %c0_35] : memref<8x64x128xf32, #tpu.memory_space<vmem>>, vector<1x64x128xf32>
    %166 = vector.shape_cast %165 : vector<1x64x128xf32> to vector<64x128xf32>
    %cst_36 = arith.constant dense<0.000000e+00> : vector<64x128xf32>
    %167 = tpu.matmul %160, %0, %cst_36 {dimension_numbers = #tpu.dot_dimension_numbers<[1], [0], [0], [1], [0, 0, 1, 1], [], []>} : vector<64x32xf32>, vector<32x128xf32>, vector<64x128xf32> -> vector<64x128xf32>
    %168 = arith.addf %166, %167 : vector<64x128xf32>
    %169 = arith.negf %168 : vector<64x128xf32>
    %170 = math.exp %169 : vector<64x128xf32>
    %cst_37 = arith.constant 1.000000e+00 : f32
    %171 = vector.broadcast %cst_37 : f32 to vector<64x128xf32>
    %172 = arith.addf %171, %170 : vector<64x128xf32>
    %173 = arith.divf %171, %172 : vector<64x128xf32>
    %174 = math.tanh %168 : vector<64x128xf32>
    %175 = vector.extract_strided_slice %173 {offsets = [0, 0], sizes = [64, 32], strides = [1, 1]} : vector<64x128xf32> to vector<64x32xf32>
    %176 = vector.extract_strided_slice %173 {offsets = [0, 32], sizes = [64, 32], strides = [1, 1]} : vector<64x128xf32> to vector<64x32xf32>
    %177 = vector.extract_strided_slice %174 {offsets = [0, 64], sizes = [64, 32], strides = [1, 1]} : vector<64x128xf32> to vector<64x32xf32>
    %178 = vector.extract_strided_slice %173 {offsets = [0, 96], sizes = [64, 32], strides = [1, 1]} : vector<64x128xf32> to vector<64x32xf32>
    %179 = arith.mulf %176, %163 : vector<64x32xf32>
    %180 = arith.mulf %175, %177 : vector<64x32xf32>
    %181 = arith.addf %179, %180 : vector<64x32xf32>
    %182 = math.tanh %181 : vector<64x32xf32>
    %183 = arith.mulf %178, %182 : vector<64x32xf32>
    %184 = arith.index_cast %c5_i32 : i32 to index
    %c0_38 = arith.constant 0 : index
    %c0_39 = arith.constant 0 : index
    %185 = vector.load %arg7[%184, %c0_38, %c0_39] : memref<8x64x32xf32, #tpu.memory_space<vmem>>, vector<1x64x32xf32>
    %186 = vector.shape_cast %185 : vector<1x64x32xf32> to vector<64x32xf32>
    %187 = vector.shape_cast %183 : vector<64x32xf32> to vector<1x64x32xf32>
    tpu.vector_store %arg7[%184, %c0_38, %c0_39], %187 {strides = array<i32>} : memref<8x64x32xf32, #tpu.memory_space<vmem>>, vector<1x64x32xf32>,
    %188 = vector.broadcast %c5_i32 : i32 to vector<64x1xi32>
    %189 = arith.cmpi slt, %188, %1 : vector<64x1xi32>
    %190 = vector.shape_cast %189 : vector<64x1xi1> to vector<64x1xi1>
    %191 = vector.broadcast %190 : vector<64x1xi1> to vector<64x32xi1>
    %192 = arith.select %191, %183, %160 : vector<64x32xi1>, vector<64x32xf32>
    %193 = vector.shape_cast %189 : vector<64x1xi1> to vector<64x1xi1>
    %194 = vector.broadcast %193 : vector<64x1xi1> to vector<64x32xi1>
    %195 = arith.select %194, %181, %163 : vector<64x32xi1>, vector<64x32xf32>
    %c6_i32 = arith.constant 6 : i32
    %196 = arith.index_cast %c6_i32 : i32 to index
    %c0_40 = arith.constant 0 : index
    %c0_41 = arith.constant 0 : index
    %197 = vector.load %arg2[%196, %c0_40, %c0_41] : memref<8x64x128xf32, #tpu.memory_space<vmem>>, vector<1x64x128xf32>
    %198 = vector.shape_cast %197 : vector<1x64x128xf32> to vector<64x128xf32>
    %cst_42 = arith.constant dense<0.000000e+00> : vector<64x128xf32>
    %199 = tpu.matmul %192, %0, %cst_42 {dimension_numbers = #tpu.dot_dimension_numbers<[1], [0], [0], [1], [0, 0, 1, 1], [], []>} : vector<64x32xf32>, vector<32x128xf32>, vector<64x128xf32> -> vector<64x128xf32>
    %200 = arith.addf %198, %199 : vector<64x128xf32>
    %201 = arith.negf %200 : vector<64x128xf32>
    %202 = math.exp %201 : vector<64x128xf32>
    %cst_43 = arith.constant 1.000000e+00 : f32
    %203 = vector.broadcast %cst_43 : f32 to vector<64x128xf32>
    %204 = arith.addf %203, %202 : vector<64x128xf32>
    %205 = arith.divf %203, %204 : vector<64x128xf32>
    %206 = math.tanh %200 : vector<64x128xf32>
    %207 = vector.extract_strided_slice %205 {offsets = [0, 0], sizes = [64, 32], strides = [1, 1]} : vector<64x128xf32> to vector<64x32xf32>
    %208 = vector.extract_strided_slice %205 {offsets = [0, 32], sizes = [64, 32], strides = [1, 1]} : vector<64x128xf32> to vector<64x32xf32>
    %209 = vector.extract_strided_slice %206 {offsets = [0, 64], sizes = [64, 32], strides = [1, 1]} : vector<64x128xf32> to vector<64x32xf32>
    %210 = vector.extract_strided_slice %205 {offsets = [0, 96], sizes = [64, 32], strides = [1, 1]} : vector<64x128xf32> to vector<64x32xf32>
    %211 = arith.mulf %208, %195 : vector<64x32xf32>
    %212 = arith.mulf %207, %209 : vector<64x32xf32>
    %213 = arith.addf %211, %212 : vector<64x32xf32>
    %214 = math.tanh %213 : vector<64x32xf32>
    %215 = arith.mulf %210, %214 : vector<64x32xf32>
    %216 = arith.index_cast %c6_i32 : i32 to index
    %c0_44 = arith.constant 0 : index
    %c0_45 = arith.constant 0 : index
    %217 = vector.load %arg7[%216, %c0_44, %c0_45] : memref<8x64x32xf32, #tpu.memory_space<vmem>>, vector<1x64x32xf32>
    %218 = vector.shape_cast %217 : vector<1x64x32xf32> to vector<64x32xf32>
    %219 = vector.shape_cast %215 : vector<64x32xf32> to vector<1x64x32xf32>
    tpu.vector_store %arg7[%216, %c0_44, %c0_45], %219 {strides = array<i32>} : memref<8x64x32xf32, #tpu.memory_space<vmem>>, vector<1x64x32xf32>,
    %220 = vector.broadcast %c6_i32 : i32 to vector<64x1xi32>
    %221 = arith.cmpi slt, %220, %1 : vector<64x1xi32>
    %222 = vector.shape_cast %221 : vector<64x1xi1> to vector<64x1xi1>
    %223 = vector.broadcast %222 : vector<64x1xi1> to vector<64x32xi1>
    %224 = arith.select %223, %215, %192 : vector<64x32xi1>, vector<64x32xf32>
    %225 = vector.shape_cast %221 : vector<64x1xi1> to vector<64x1xi1>
    %226 = vector.broadcast %225 : vector<64x1xi1> to vector<64x32xi1>
    %227 = arith.select %226, %213, %195 : vector<64x32xi1>, vector<64x32xf32>
    %c7_i32 = arith.constant 7 : i32
    %228 = arith.index_cast %c7_i32 : i32 to index
    %c0_46 = arith.constant 0 : index
    %c0_47 = arith.constant 0 : index
    %229 = vector.load %arg2[%228, %c0_46, %c0_47] : memref<8x64x128xf32, #tpu.memory_space<vmem>>, vector<1x64x128xf32>
    %230 = vector.shape_cast %229 : vector<1x64x128xf32> to vector<64x128xf32>
    %cst_48 = arith.constant dense<0.000000e+00> : vector<64x128xf32>
    %231 = tpu.matmul %224, %0, %cst_48 {dimension_numbers = #tpu.dot_dimension_numbers<[1], [0], [0], [1], [0, 0, 1, 1], [], []>} : vector<64x32xf32>, vector<32x128xf32>, vector<64x128xf32> -> vector<64x128xf32>
    %232 = arith.addf %230, %231 : vector<64x128xf32>
    %233 = arith.negf %232 : vector<64x128xf32>
    %234 = math.exp %233 : vector<64x128xf32>
    %cst_49 = arith.constant 1.000000e+00 : f32
    %235 = vector.broadcast %cst_49 : f32 to vector<64x128xf32>
    %236 = arith.addf %235, %234 : vector<64x128xf32>
    %237 = arith.divf %235, %236 : vector<64x128xf32>
    %238 = math.tanh %232 : vector<64x128xf32>
    %239 = vector.extract_strided_slice %237 {offsets = [0, 0], sizes = [64, 32], strides = [1, 1]} : vector<64x128xf32> to vector<64x32xf32>
    %240 = vector.extract_strided_slice %237 {offsets = [0, 32], sizes = [64, 32], strides = [1, 1]} : vector<64x128xf32> to vector<64x32xf32>
    %241 = vector.extract_strided_slice %238 {offsets = [0, 64], sizes = [64, 32], strides = [1, 1]} : vector<64x128xf32> to vector<64x32xf32>
    %242 = vector.extract_strided_slice %237 {offsets = [0, 96], sizes = [64, 32], strides = [1, 1]} : vector<64x128xf32> to vector<64x32xf32>
    %243 = arith.mulf %240, %227 : vector<64x32xf32>
    %244 = arith.mulf %239, %241 : vector<64x32xf32>
    %245 = arith.addf %243, %244 : vector<64x32xf32>
    %246 = math.tanh %245 : vector<64x32xf32>
    %247 = arith.mulf %242, %246 : vector<64x32xf32>
    %248 = arith.index_cast %c7_i32 : i32 to index
    %c0_50 = arith.constant 0 : index
    %c0_51 = arith.constant 0 : index
    %249 = vector.load %arg7[%248, %c0_50, %c0_51] : memref<8x64x32xf32, #tpu.memory_space<vmem>>, vector<1x64x32xf32>
    %250 = vector.shape_cast %249 : vector<1x64x32xf32> to vector<64x32xf32>
    %251 = vector.shape_cast %247 : vector<64x32xf32> to vector<1x64x32xf32>
    tpu.vector_store %arg7[%248, %c0_50, %c0_51], %251 {strides = array<i32>} : memref<8x64x32xf32, #tpu.memory_space<vmem>>, vector<1x64x32xf32>,
    %252 = vector.broadcast %c7_i32 : i32 to vector<64x1xi32>
    %253 = arith.cmpi slt, %252, %1 : vector<64x1xi32>
    %254 = vector.shape_cast %253 : vector<64x1xi1> to vector<64x1xi1>
    %255 = vector.broadcast %254 : vector<64x1xi1> to vector<64x32xi1>
    %256 = arith.select %255, %247, %224 : vector<64x32xi1>, vector<64x32xf32>
    %257 = vector.shape_cast %253 : vector<64x1xi1> to vector<64x1xi1>
    %258 = vector.broadcast %257 : vector<64x1xi1> to vector<64x32xi1>
    %259 = arith.select %258, %245, %227 : vector<64x32xi1>, vector<64x32xf32>
    %c8_i32 = arith.constant 8 : i32
    %260 = tpu.iota {dimensions = array<i32: 0>} : vector<8x64x32xi32>
    %261 = vector.shape_cast %1 : vector<64x1xi32> to vector<1x64x1xi32>
    %262 = vector.broadcast %261 : vector<1x64x1xi32> to vector<8x64x32xi32>
    %263 = arith.cmpi slt, %260, %262 : vector<8x64x32xi32>
    %c0_52 = arith.constant 0 : index
    %c0_53 = arith.constant 0 : index
    %c0_54 = arith.constant 0 : index
    %264 = vector.load %arg7[%c0_52, %c0_53, %c0_54] : memref<8x64x32xf32, #tpu.memory_space<vmem>>, vector<8x64x32xf32>
    %cst_55 = arith.constant 0.000000e+00 : f32
    %265 = vector.broadcast %cst_55 : f32 to vector<8x64x32xf32>
    %266 = arith.select %263, %264, %265 : vector<8x64x32xi1>, vector<8x64x32xf32>
    %267 = vector.shape_cast %266 : vector<8x64x32xf32> to vector<512x32xf32>
    %c0_56 = arith.constant 0 : index
    %c0_57 = arith.constant 0 : index
    %268 = vector.load %arg4[%c0_56, %c0_57] : memref<32x128xf32, #tpu.memory_space<vmem>>, vector<32x128xf32>
    %cst_58 = arith.constant dense<0.000000e+00> : vector<512x128xf32>
    %269 = tpu.matmul %267, %268, %cst_58 {dimension_numbers = #tpu.dot_dimension_numbers<[1], [0], [0], [1], [0, 0, 1, 1], [], []>} : vector<512x32xf32>, vector<32x128xf32>, vector<512x128xf32> -> vector<512x128xf32>
    %c0_59 = arith.constant 0 : index
    %c0_60 = arith.constant 0 : index
    %270 = vector.load %arg5[%c0_59, %c0_60] : memref<1x128xf32, #tpu.memory_space<vmem>>, vector<1x128xf32>
    %271 = vector.broadcast %270 : vector<1x128xf32> to vector<512x128xf32>
    %272 = arith.addf %269, %271 : vector<512x128xf32>
    %273 = vector.shape_cast %272 : vector<512x128xf32> to vector<8x64x128xf32>
    %c0_61 = arith.constant 0 : index
    %c0_62 = arith.constant 0 : index
    %c0_63 = arith.constant 0 : index
    %274 = vector.load %arg6[%c0_61, %c0_62, %c0_63] : memref<8x64x128xf32, #tpu.memory_space<vmem>>, vector<8x64x128xf32>
    tpu.vector_store %arg6[%c0_61, %c0_62, %c0_63], %273 {strides = array<i32>} : memref<8x64x128xf32, #tpu.memory_space<vmem>>, vector<8x64x128xf32>,
    return
  }
  func.func @transform_0(%arg0: i32) -> (i32, i32) {
    %c0_i32 = arith.constant 0 : i32
    %c0_i32_0 = arith.constant 0 : i32
    return %arg0, %c0_i32 : i32, i32
  }
  func.func @transform_1(%arg0: i32) -> (i32, i32, i32) {
    %c0_i32 = arith.constant 0 : i32
    %c0_i32_0 = arith.constant 0 : i32
    %c0_i32_1 = arith.constant 0 : i32
    return %c0_i32, %arg0, %c0_i32_0 : i32, i32, i32
  }
  func.func @transform_2(%arg0: i32) -> (i32, i32) {
    %c0_i32 = arith.constant 0 : i32
    %c0_i32_0 = arith.constant 0 : i32
    %c0_i32_1 = arith.constant 0 : i32
    return %c0_i32, %c0_i32_0 : i32, i32
  }
  func.func @transform_3(%arg0: i32) -> (i32, i32) {
    %c0_i32 = arith.constant 0 : i32
    %c0_i32_0 = arith.constant 0 : i32
    %c0_i32_1 = arith.constant 0 : i32
    return %c0_i32, %c0_i32_0 : i32, i32
  }
  func.func @transform_4(%arg0: i32) -> (i32, i32) {
    %c0_i32 = arith.constant 0 : i32
    %c0_i32_0 = arith.constant 0 : i32
    %c0_i32_1 = arith.constant 0 : i32
    return %c0_i32, %c0_i32_0 : i32, i32
  }
  func.func @transform_5(%arg0: i32) -> (i32, i32, i32) {
    %c0_i32 = arith.constant 0 : i32
    %c0_i32_0 = arith.constant 0 : i32
    %c0_i32_1 = arith.constant 0 : i32
    return %c0_i32, %arg0, %c0_i32_0 : i32, i32, i32
  }
}

</mosaic_0001>

<llo_original>
// kernel: tpu_custom_call.1
$region0: #{tpu_custom_call.1}
  #allocation0 [shape = 'u32[]', space=smem, size = 0x4, offset = 0x4, fixed_abs, tag = 'smem constant byte address 0x4 - core index']
  #allocation1 [shape = 'u32[144,128]{1,0:T(1,128)}', space=vmem, size = 0x12000, scoped, tag = 'internal scratch']
  #allocation2 [shape = 'f32[8,64,32]{2,1,0:T(8,128)}', space=vmem, size = 0x40000, scoped, tag = 'scratch operand']
  %s0 = inlined_call_operand.vmem [shape: s32[64,1], index: 0, kind: input, shape index: {}]
  %s1 = inlined_call_operand.hbm [shape: f32[8,64,128], index: 1, kind: input, shape index: {}]
  %s2 = inlined_call_operand.vmem [shape: f32[32,128], index: 2, kind: input, shape index: {}]
  %s3 = inlined_call_operand.vmem [shape: f32[32,128], index: 3, kind: input, shape index: {}]
  %s4 = inlined_call_operand.vmem [shape: f32[1,128], index: 4, kind: input, shape index: {}]
  %s5 = inlined_call_operand.hbm [shape: f32[8,64,128], index: 5, kind: output, shape index: {}]
  %s6 = sld [smem:[#allocation0]]
  $region34: #{tpu_custom_call.1} parent=0
    _
  %s8 = ssub.s32 1, %s6
  %s9 = scalar_select 0, %s8, %s6
  $region1: #{tpu_custom_call.1} parent=0
    #allocation3 [shape = 'u8[262144]{0}', space=vmem, size = 0x40000, scoped, tag = 'input window, operand 1, single buffered']
    #allocation4 [shape = 's32[1]{0}', space=sflag, size = 0x4, scoped, tag = 'scoped memory for tpu_custom_call.1']
    #allocation5 [shape = 's32[1]{0}', space=sflag, size = 0x4, scoped, tag = 'scoped memory for tpu_custom_call.1']
    #allocation6 [shape = 'u8[262144]{0}', space=vmem, size = 0x40000, scoped, tag = 'output window, operand 0, single buffered']
    %10 = vsyncpa [#allocation4], 0
    %11 = vsyncpa [#allocation5], 0
    // Predicated region
    $region2: #{tpu_custom_call.1} parent=1 // pred_check
      _
    $region3: #{tpu_custom_call.1} parent=1 // pred_check_branch
      %13 = sbr.rel (0) target = $region5
    $region4: #{tpu_custom_call.1} parent=1 // pred_region
      _
    $region5: #{tpu_custom_call.1} parent=1 // pred_fallthru
      _
    // Predicated region
    $region6: #{tpu_custom_call.1} parent=1 // pred_check
      _
    $region7: #{tpu_custom_call.1} parent=1 // pred_check_branch
      %15 = sbr.rel (0) target = $region9
    $region8: #{tpu_custom_call.1} parent=1 // pred_region
      %s17 = ssub.s32 8192, 8192
      %18 = vsyncadd [#allocation4], %s17
      %s19 = sshll.u32 [#allocation3], 4
      %s20 = int_to_ptr.vmem [resolvable:$true] %s19
      %25 = dma.hbm_to_vmem [thread:$0]  %s1, 8192, %s20, [#allocation4], 128, 128, 8
    $region9: #{tpu_custom_call.1} parent=1 // pred_fallthru
      _
    // Predicated region
    $region10: #{tpu_custom_call.1} parent=1 // pred_check
      _
    $region11: #{tpu_custom_call.1} parent=1 // pred_check_branch
      %27 = sbr.rel (0) target = $region13
    $region12: #{tpu_custom_call.1} parent=1 // pred_region
      _
    $region13: #{tpu_custom_call.1} parent=1 // pred_fallthru
      _
    // Predicated region
    $region14: #{tpu_custom_call.1} parent=1 // pred_check
      _
    $region15: #{tpu_custom_call.1} parent=1 // pred_check_branch
      %29 = sbr.rel (0) target = $region17
    $region16: #{tpu_custom_call.1} parent=1 // pred_region
      _
    $region17: #{tpu_custom_call.1} parent=1 // pred_fallthru
      _
    // Predicated region
    $region18: #{tpu_custom_call.1} parent=1 // pred_check
      _
    $region19: #{tpu_custom_call.1} parent=1 // pred_check_branch
      %31 = sbr.rel (0) target = $region21
    $region20: #{tpu_custom_call.1} parent=1 // pred_region
      _
    $region21: #{tpu_custom_call.1} parent=1 // pred_fallthru
      _
    // Predicated region
    $region22: #{tpu_custom_call.1} parent=1 // pred_check
      _
    $region23: #{tpu_custom_call.1} parent=1 // pred_check_branch
      %33 = sbr.rel (0) target = $region25
    $region24: #{tpu_custom_call.1} parent=1 // pred_region
      %34 = dma.done [#allocation4], 8192
    $region25: #{tpu_custom_call.1} parent=1 // pred_fallthru
      _
    %v35 = vld [vmem:[%s2] sm:$0xff]
    %v36 = vld [vmem:[%s2 + $0x8] sm:$0xff]
    %v37 = vld [vmem:[%s2 + $0x10] sm:$0xff]
    %v38 = vld [vmem:[%s2 + $0x18] sm:$0xff]
    %v39 = vld [vmem:[%s0] sm:$0xff]
    %v40 = vld [vmem:[%s0 + $0x8] sm:$0xff]
    %v41 = vld [vmem:[%s0 + $0x10] sm:$0xff]
    %v42 = vld [vmem:[%s0 + $0x18] sm:$0xff]
    %v43 = vld [vmem:[%s0 + $0x20] sm:$0xff]
    %v44 = vld [vmem:[%s0 + $0x28] sm:$0xff]
    %v45 = vld [vmem:[%s0 + $0x30] sm:$0xff]
    %v46 = vld [vmem:[%s0 + $0x38] sm:$0xff]
    %v47 = vld [vmem:[#allocation3] sm:$0xff]
    %v48 = vld [vmem:[#allocation3 + $0x8] sm:$0xff]
    %v49 = vld [vmem:[#allocation3 + $0x10] sm:$0xff]
    %v50 = vld [vmem:[#allocation3 + $0x18] sm:$0xff]
    %v51 = vld [vmem:[#allocation3 + $0x20] sm:$0xff]
    %v52 = vld [vmem:[#allocation3 + $0x28] sm:$0xff]
    %v53 = vld [vmem:[#allocation3 + $0x30] sm:$0xff]
    %v54 = vld [vmem:[#allocation3 + $0x38] sm:$0xff]
    %vm55 = vcmask 261120
    %v57 = vsel %vm55, 0.0, 0
    %59 = vmatprep.subr.mxu0 0.0
    %60 = vmatpush1.msra.mxu0 %v35
    %61 = vmatprep.subr.mxu0 0.0
    %62 = vmatpush1.msra.mxu0 %v36
    %63 = vmatprep.subr.mxu0 0.0
    %64 = vmatpush1.msra.mxu0 %v37
    %65 = vmatprep.subr.mxu0 0.0
    %66 = vmatpush1.msra.mxu0 %v38
    %67 = vmatprep.subr.mxu0 0.0
    %68 = vmatpush1.msra.mxu0 0.0
    %69 = vmatprep.subr.mxu0 0.0
    %70 = vmatpush1.msra.mxu0 0.0
    %71 = vmatprep.subr.mxu0 0.0
    %72 = vmatpush1.msra.mxu0 0.0
    %73 = vmatprep.subr.mxu0 0.0
    %74 = vmatpush1.msra.mxu0 0.0
    %75 = vmatprep.subr.mxu0 0.0
    %76 = vmatpush1.msra.mxu0 0.0
    %77 = vmatprep.subr.mxu0 0.0
    %78 = vmatpush1.msra.mxu0 0.0
    %79 = vmatprep.subr.mxu0 0.0
    %80 = vmatpush1.msra.mxu0 0.0
    %81 = vmatprep.subr.mxu0 0.0
    %82 = vmatpush1.msra.mxu0 0.0
    %83 = vmatprep.subr.mxu0 0.0
    %84 = vmatpush1.msra.mxu0 0.0
    %85 = vmatprep.subr.mxu0 0.0
    %86 = vmatpush1.msra.mxu0 0.0
    %87 = vmatprep.subr.mxu0 0.0
    %88 = vmatpush1.msra.mxu0 0.0
    %89 = vmatprep.subr.mxu0 0.0
    %90 = vmatpush1.msra.mxu0 0.0
    %91 = vmatprep.subr.mxu0 0.0
    %92 = vmatpush1.msra.mxu0 0.0
    %93 = vmatprep.subr.mxu0 0.0
    %94 = vmatpush1.msra.mxu0 0.0
    %95 = vmatprep.subr.mxu0 0.0
    %96 = vmatpush1.msra.mxu0 0.0
    %97 = vmatprep.subr.mxu0 0.0
    %98 = vmatpush1.msra.mxu0 0.0
    %99 = vmatprep.subr.mxu0 0.0
    %100 = vmatpush1.msra.mxu0 0.0
    %101 = vmatprep.subr.mxu0 0.0
    %102 = vmatpush1.msra.mxu0 0.0
    %103 = vmatprep.subr.mxu0 0.0
    %104 = vmatpush1.msra.mxu0 0.0
    %105 = vmatprep.subr.mxu0 0.0
    %106 = vmatpush1.msra.mxu0 0.0
    %107 = vmatprep.subr.mxu0 0.0
    %108 = vmatpush1.msra.mxu0 0.0
    %109 = vmatprep.subr.mxu0 0.0
    %110 = vmatpush1.msra.mxu0 0.0
    %111 = vmatprep.subr.mxu0 0.0
    %112 = vmatpush1.msra.mxu0 0.0
    %113 = vmatprep.subr.mxu0 0.0
    %114 = vmatpush1.msra.mxu0 0.0
    %115 = vmatprep.subr.mxu0 0.0
    %116 = vmatpush1.msra.mxu0 0.0
    %117 = vmatprep.subr.mxu0 0.0
    %118 = vmatpush1.msra.mxu0 0.0
    %119 = vmatprep.subr.mxu0 0.0
    %120 = vmatpush1.msra.mxu0 0.0
    %121 = vmatprep.subr.mxu0 0.0
    %122 = vmatpush1.msra.mxu0 0.0
    %123 = vmatprep.mubr.f32.mxu0 0.0
    %124 = vmatmul.mubr.f32.gmra.mrb[0].mxu0 %v57
    %v125 = vpop.f32.mrb[0].mxu0
    %v126 = vadd.f32 0.0, %v125
    %v127 = vpop.f32.mrb[0].mxu0
    %128 = vmatprep.mubr.f32.mxu0 0.0
    %129 = vmatmul.mubr.f32.gmra.mrb[0].mxu0 %v57
    %v130 = vpop.f32.mrb[0].mxu0
    %v131 = vadd.f32 0.0, %v130
    %v132 = vpop.f32.mrb[0].mxu0
    %133 = vmatprep.mubr.f32.mxu0 0.0
    %134 = vmatmul.mubr.f32.gmra.mrb[0].mxu0 %v57
    %v135 = vpop.f32.mrb[0].mxu0
    %v136 = vadd.f32 0.0, %v135
    %v137 = vpop.f32.mrb[0].mxu0
    %138 = vmatprep.mubr.f32.mxu0 0.0
    %139 = vmatmul.mubr.f32.gmra.mrb[0].mxu0 %v57
    %v140 = vpop.f32.mrb[0].mxu0
    %v141 = vadd.f32 0.0, %v140
    %v142 = vpop.f32.mrb[0].mxu0
    %143 = vmatprep.mubr.f32.mxu0 0.0
    %144 = vmatmul.mubr.f32.gmra.mrb[0].mxu0 %v57
    %v145 = vpop.f32.mrb[0].mxu0
    %v146 = vadd.f32 0.0, %v145
    %v147 = vpop.f32.mrb[0].mxu0
    %148 = vmatprep.mubr.f32.mxu0 0.0
    %149 = vmatmul.mubr.f32.gmra.mrb[0].mxu0 %v57
    %v150 = vpop.f32.mrb[0].mxu0
    %v151 = vadd.f32 0.0, %v150
    %v152 = vpop.f32.mrb[0].mxu0
    %153 = vmatprep.mubr.f32.mxu0 0.0
    %154 = vmatmul.mubr.f32.gmra.mrb[0].mxu0 %v57
    %v155 = vpop.f32.mrb[0].mxu0
    %v156 = vadd.f32 0.0, %v155
    %v157 = vpop.f32.mrb[0].mxu0
    %158 = vmatprep.mubr.f32.mxu0 0.0
    %159 = vmatmul.mubr.f32.gmra.mrb[0].mxu0 %v57
    %v160 = vpop.f32.mrb[0].mxu0
    %v161 = vadd.f32 0.0, %v160
    %v162 = vpop.f32.mrb[0].mxu0
    %163 = vdwg.mxu0
    %v164 = vadd.f32 %v47, %v126
    %v165 = vadd.f32 %v48, %v131
    %v166 = vadd.f32 %v49, %v136
    %v167 = vadd.f32 %v50, %v141
    %v168 = vadd.f32 %v51, %v146
    %v169 = vadd.f32 %v52, %v151
    %v170 = vadd.f32 %v53, %v156
    %v171 = vadd.f32 %v54, %v161
    %v172 = vxor.u32 %v164, 2147483648
    %v173 = vxor.u32 %v165, 2147483648
    %v174 = vxor.u32 %v166, 2147483648
    %v175 = vxor.u32 %v167, 2147483648
    %v176 = vxor.u32 %v168, 2147483648
    %v177 = vxor.u32 %v169, 2147483648
    %v178 = vxor.u32 %v170, 2147483648
    %v179 = vxor.u32 %v171, 2147483648
    %v180 = vmul.f32 %v172, 1.442695
    %v181 = vpow.pop %v180
    %v182 = vmul.f32 %v173, 1.442695
    %v183 = vpow.pop %v182
    %v184 = vmul.f32 %v174, 1.442695
    %v185 = vpow.pop %v184
    %v186 = vmul.f32 %v175, 1.442695
    %v187 = vpow.pop %v186
    %v188 = vmul.f32 %v176, 1.442695
    %v189 = vpow.pop %v188
    %v190 = vmul.f32 %v177, 1.442695
    %v191 = vpow.pop %v190
    %v192 = vmul.f32 %v178, 1.442695
    %v193 = vpow.pop %v192
    %v194 = vmul.f32 %v179, 1.442695
    %v195 = vpow.pop %v194
    %v196 = vadd.f32 %v181, 1.0
    %v197 = vadd.f32 %v183, 1.0
    %v198 = vadd.f32 %v185, 1.0
    %v199 = vadd.f32 %v187, 1.0
    %v200 = vadd.f32 %v189, 1.0
    %v201 = vadd.f32 %v191, 1.0
    %v202 = vadd.f32 %v193, 1.0
    %v203 = vadd.f32 %v195, 1.0
    %v204 = vrcp.pop %v196
    %v205 = vmul.f32 1.0, %v204
    %v206 = vrcp.pop %v197
    %v207 = vmul.f32 1.0, %v206
    %v208 = vrcp.pop %v198
    %v209 = vmul.f32 1.0, %v208
    %v210 = vrcp.pop %v199
    %v211 = vmul.f32 1.0, %v210
    %v212 = vrcp.pop %v200
    %v213 = vmul.f32 1.0, %v212
    %v214 = vrcp.pop %v201
    %v215 = vmul.f32 1.0, %v214
    %v216 = vrcp.pop %v202
    %v217 = vmul.f32 1.0, %v216
    %v218 = vrcp.pop %v203
    %v219 = vmul.f32 1.0, %v218
    %v220 = vtanh.pop %v164
    %v221 = vtanh.pop %v165
    %v222 = vtanh.pop %v166
    %v223 = vtanh.pop %v167
    %v224 = vtanh.pop %v168
    %v225 = vtanh.pop %v169
    %v226 = vtanh.pop %v170
    %v227 = vtanh.pop %v171
    %v228 = vmul.f32 %v205, 0.0
    %v229 = vmul.f32 %v207, 0.0
    %v230 = vmul.f32 %v209, 0.0
    %v231 = vmul.f32 %v211, 0.0
    %v232 = vmul.f32 %v213, 0.0
    %v233 = vmul.f32 %v215, 0.0
    %v234 = vmul.f32 %v217, 0.0
    %v235 = vmul.f32 %v219, 0.0
    %244 = vrot.lane.b32.xlu0 %v220, 64
    %v245 = vpop.permute.xlu0 %244
    %246 = vrot.lane.b32.xlu0 %v221, 64
    %v247 = vpop.permute.xlu0 %246
    %248 = vrot.lane.b32.xlu0 %v222, 64
    %v249 = vpop.permute.xlu0 %248
    %250 = vrot.lane.b32.xlu0 %v223, 64
    %v251 = vpop.permute.xlu0 %250
    %252 = vrot.lane.b32.xlu0 %v224, 64
    %v253 = vpop.permute.xlu0 %252
    %254 = vrot.lane.b32.xlu0 %v225, 64
    %v255 = vpop.permute.xlu0 %254
    %256 = vrot.lane.b32.xlu0 %v226, 64
    %v257 = vpop.permute.xlu0 %256
    %258 = vrot.lane.b32.xlu0 %v227, 64
    %v259 = vpop.permute.xlu0 %258
    %v268 = vmul.f32 %v205, %v245
    %v269 = vmul.f32 %v207, %v247
    %v270 = vmul.f32 %v209, %v249
    %v271 = vmul.f32 %v211, %v251
    %v272 = vmul.f32 %v213, %v253
    %v273 = vmul.f32 %v215, %v255
    %v274 = vmul.f32 %v217, %v257
    %v275 = vmul.f32 %v219, %v259
    %284 = vrot.lane.b32.xlu0 %v268, 32
    %v285 = vpop.permute.xlu0 %284
    %286 = vrot.lane.b32.xlu0 %v269, 32
    %v287 = vpop.permute.xlu0 %286
    %288 = vrot.lane.b32.xlu0 %v270, 32
    %v289 = vpop.permute.xlu0 %288
    %290 = vrot.lane.b32.xlu0 %v271, 32
    %v291 = vpop.permute.xlu0 %290
    %292 = vrot.lane.b32.xlu0 %v272, 32
    %v293 = vpop.permute.xlu0 %292
    %294 = vrot.lane.b32.xlu0 %v273, 32
    %v295 = vpop.permute.xlu0 %294
    %296 = vrot.lane.b32.xlu0 %v274, 32
    %v297 = vpop.permute.xlu0 %296
    %298 = vrot.lane.b32.xlu0 %v275, 32
    %v299 = vpop.permute.xlu0 %298
    %v308 = vadd.f32 %v228, %v285
    %v309 = vadd.f32 %v229, %v287
    %v310 = vadd.f32 %v230, %v289
    %v311 = vadd.f32 %v231, %v291
    %v312 = vadd.f32 %v232, %v293
    %v313 = vadd.f32 %v233, %v295
    %v314 = vadd.f32 %v234, %v297
    %v315 = vadd.f32 %v235, %v299
    %v316 = vtanh.pop %v308
    %v317 = vtanh.pop %v309
    %v318 = vtanh.pop %v310
    %v319 = vtanh.pop %v311
    %v320 = vtanh.pop %v312
    %v321 = vtanh.pop %v313
    %v322 = vtanh.pop %v314
    %v323 = vtanh.pop %v315
    %332 = vrot.lane.b32.xlu0 %v316, 64
    %v333 = vpop.permute.xlu0 %332
    %334 = vrot.lane.b32.xlu0 %v317, 64
    %v335 = vpop.permute.xlu0 %334
    %336 = vrot.lane.b32.xlu0 %v318, 64
    %v337 = vpop.permute.xlu0 %336
    %338 = vrot.lane.b32.xlu0 %v319, 64
    %v339 = vpop.permute.xlu0 %338
    %340 = vrot.lane.b32.xlu0 %v320, 64
    %v341 = vpop.permute.xlu0 %340
    %342 = vrot.lane.b32.xlu0 %v321, 64
    %v343 = vpop.permute.xlu0 %342
    %344 = vrot.lane.b32.xlu0 %v322, 64
    %v345 = vpop.permute.xlu0 %344
    %346 = vrot.lane.b32.xlu0 %v323, 64
    %v347 = vpop.permute.xlu0 %346
    %v356 = vmul.f32 %v205, %v333
    %v357 = vmul.f32 %v207, %v335
    %v358 = vmul.f32 %v209, %v337
    %v359 = vmul.f32 %v211, %v339
    %v360 = vmul.f32 %v213, %v341
    %v361 = vmul.f32 %v215, %v343
    %v362 = vmul.f32 %v217, %v345
    %v363 = vmul.f32 %v219, %v347
    %372 = vrot.lane.b32.xlu0 %v356, 32
    %v373 = vpop.permute.xlu0 %372
    %374 = vrot.lane.b32.xlu0 %v357, 32
    %v375 = vpop.permute.xlu0 %374
    %376 = vrot.lane.b32.xlu0 %v358, 32
    %v377 = vpop.permute.xlu0 %376
    %378 = vrot.lane.b32.xlu0 %v359, 32
    %v379 = vpop.permute.xlu0 %378
    %380 = vrot.lane.b32.xlu0 %v360, 32
    %v381 = vpop.permute.xlu0 %380
    %382 = vrot.lane.b32.xlu0 %v361, 32
    %v383 = vpop.permute.xlu0 %382
    %384 = vrot.lane.b32.xlu0 %v362, 32
    %v385 = vpop.permute.xlu0 %384
    %386 = vrot.lane.b32.xlu0 %v363, 32
    %v387 = vpop.permute.xlu0 %386
    %396 = vst.msk [vmem:[#allocation2] sm:$0xff] %vm55, %v373
    %397 = vst.msk [vmem:[#allocation2 + $0x8] sm:$0xff] %vm55, %v375
    %398 = vst.msk [vmem:[#allocation2 + $0x10] sm:$0xff] %vm55, %v377
    %399 = vst.msk [vmem:[#allocation2 + $0x18] sm:$0xff] %vm55, %v379
    %400 = vst.msk [vmem:[#allocation2 + $0x20] sm:$0xff] %vm55, %v381
    %401 = vst.msk [vmem:[#allocation2 + $0x28] sm:$0xff] %vm55, %v383
    %402 = vst.msk [vmem:[#allocation2 + $0x30] sm:$0xff] %vm55, %v385
    %403 = vst.msk [vmem:[#allocation2 + $0x38] sm:$0xff] %vm55, %v387
    %vm404 = vcmp.gt.s32.totalorder %v39, 0
    %vm405 = vcmp.gt.s32.totalorder %v40, 0
    %vm406 = vcmp.gt.s32.totalorder %v41, 0
    %vm407 = vcmp.gt.s32.totalorder %v42, 0
    %vm408 = vcmp.gt.s32.totalorder %v43, 0
    %vm409 = vcmp.gt.s32.totalorder %v44, 0
    %vm410 = vcmp.gt.s32.totalorder %v45, 0
    %vm411 = vcmp.gt.s32.totalorder %v46, 0
    %v412 = vsel %vm404, 1, 0
    %v413 = vsel %vm405, 1, 0
    %v414 = vsel %vm406, 1, 0
    %v415 = vsel %vm407, 1, 0
    %v416 = vsel %vm408, 1, 0
    %v417 = vsel %vm409, 1, 0
    %v418 = vsel %vm410, 1, 0
    %v419 = vsel %vm411, 1, 0
    %420 = vset.pattern.permute.xlu0 0
    %421 = vperm.xlu0 %420, %v412
    %v422 = vpop.permute.xlu0 %421
    %423 = vset.pattern.permute.xlu0 0
    %424 = vperm.xlu0 %423, %v413
    %v425 = vpop.permute.xlu0 %424
    %426 = vset.pattern.permute.xlu0 0
    %427 = vperm.xlu0 %426, %v414
    %v428 = vpop.permute.xlu0 %427
    %429 = vset.pattern.permute.xlu0 0
    %430 = vperm.xlu0 %429, %v415
    %v431 = vpop.permute.xlu0 %430
    %432 = vset.pattern.permute.xlu0 0
    %433 = vperm.xlu0 %432, %v416
    %v434 = vpop.permute.xlu0 %433
    %435 = vset.pattern.permute.xlu0 0
    %436 = vperm.xlu0 %435, %v417
    %v437 = vpop.permute.xlu0 %436
    %438 = vset.pattern.permute.xlu0 0
    %439 = vperm.xlu0 %438, %v418
    %v440 = vpop.permute.xlu0 %439
    %441 = vset.pattern.permute.xlu0 0
    %442 = vperm.xlu0 %441, %v419
    %v443 = vpop.permute.xlu0 %442
    %vm444 = vcmp.eq.s32.totalorder %v422, 1
    %vm445 = vcmp.eq.s32.totalorder %v425, 1
    %vm446 = vcmp.eq.s32.totalorder %v428, 1
    %vm447 = vcmp.eq.s32.totalorder %v431, 1
    %vm448 = vcmp.eq.s32.totalorder %v434, 1
    %vm449 = vcmp.eq.s32.totalorder %v437, 1
    %vm450 = vcmp.eq.s32.totalorder %v440, 1
    %vm451 = vcmp.eq.s32.totalorder %v443, 1
    %v452 = vsel %vm444, %v356, 0.0
    %v453 = vsel %vm445, %v357, 0.0
    %v454 = vsel %vm446, %v358, 0.0
    %v455 = vsel %vm447, %v359, 0.0
    %v456 = vsel %vm448, %v360, 0.0
    %v457 = vsel %vm449, %v361, 0.0
    %v458 = vsel %vm450, %v362, 0.0
    %v459 = vsel %vm451, %v363, 0.0
    %v460 = vsel %vm444, %v308, 0.0
    %v461 = vsel %vm445, %v309, 0.0
    %v462 = vsel %vm446, %v310, 0.0
    %v463 = vsel %vm447, %v311, 0.0
    %v464 = vsel %vm448, %v312, 0.0
    %v465 = vsel %vm449, %v313, 0.0
    %v466 = vsel %vm450, %v314, 0.0
    %v467 = vsel %vm451, %v315, 0.0
    %s468 = scalar_lea.vmem [#allocation3], 64
    %v469 = vld [vmem:[%s468] sm:$0xff]
    %v470 = vld [vmem:[%s468 + $0x8] sm:$0xff]
    %v471 = vld [vmem:[%s468 + $0x10] sm:$0xff]
    %v472 = vld [vmem:[%s468 + $0x18] sm:$0xff]
    %v473 = vld [vmem:[%s468 + $0x20] sm:$0xff]
    %v474 = vld [vmem:[%s468 + $0x28] sm:$0xff]
    %v475 = vld [vmem:[%s468 + $0x30] sm:$0xff]
    %v476 = vld [vmem:[%s468 + $0x38] sm:$0xff]
    %485 = vrot.lane.b32.xlu0 %v452, 32
    %v486 = vpop.permute.xlu0 %485
    %487 = vrot.lane.b32.xlu0 %v453, 32
    %v488 = vpop.permute.xlu0 %487
    %489 = vrot.lane.b32.xlu0 %v454, 32
    %v490 = vpop.permute.xlu0 %489
    %491 = vrot.lane.b32.xlu0 %v455, 32
    %v492 = vpop.permute.xlu0 %491
    %493 = vrot.lane.b32.xlu0 %v456, 32
    %v494 = vpop.permute.xlu0 %493
    %495 = vrot.lane.b32.xlu0 %v457, 32
    %v496 = vpop.permute.xlu0 %495
    %497 = vrot.lane.b32.xlu0 %v458, 32
    %v498 = vpop.permute.xlu0 %497
    %499 = vrot.lane.b32.xlu0 %v459, 32
    %v500 = vpop.permute.xlu0 %499
    %v501 = vsel %vm55, %v486, 0
    %v503 = vsel %vm55, %v488, 0
    %v505 = vsel %vm55, %v490, 0
    %v507 = vsel %vm55, %v492, 0
    %v509 = vsel %vm55, %v494, 0
    %v511 = vsel %vm55, %v496, 0
    %v513 = vsel %vm55, %v498, 0
    %v515 = vsel %vm55, %v500, 0
    %517 = vmatprep.subr.mxu0 0.0
    %518 = vmatpush1.msra.mxu0 %v35
    %519 = vmatprep.subr.mxu0 0.0
    %520 = vmatpush1.msra.mxu0 %v36
    %521 = vmatprep.subr.mxu0 0.0
    %522 = vmatpush1.msra.mxu0 %v37
    %523 = vmatprep.subr.mxu0 0.0
    %524 = vmatpush1.msra.mxu0 %v38
    %525 = vmatprep.subr.mxu0 0.0
    %526 = vmatpush1.msra.mxu0 0.0
    %527 = vmatprep.subr.mxu0 0.0
    %528 = vmatpush1.msra.mxu0 0.0
    %529 = vmatprep.subr.mxu0 0.0
    %530 = vmatpush1.msra.mxu0 0.0
    %531 = vmatprep.subr.mxu0 0.0
    %532 = vmatpush1.msra.mxu0 0.0
    %533 = vmatprep.subr.mxu0 0.0
    %534 = vmatpush1.msra.mxu0 0.0
    %535 = vmatprep.subr.mxu0 0.0
    %536 = vmatpush1.msra.mxu0 0.0
    %537 = vmatprep.subr.mxu0 0.0
    %538 = vmatpush1.msra.mxu0 0.0
    %539 = vmatprep.subr.mxu0 0.0
    %540 = vmatpush1.msra.mxu0 0.0
    %541 = vmatprep.subr.mxu0 0.0
    %542 = vmatpush1.msra.mxu0 0.0
    %543 = vmatprep.subr.mxu0 0.0
    %544 = vmatpush1.msra.mxu0 0.0
    %545 = vmatprep.subr.mxu0 0.0
    %546 = vmatpush1.msra.mxu0 0.0
    %547 = vmatprep.subr.mxu0 0.0
    %548 = vmatpush1.msra.mxu0 0.0
    %549 = vmatprep.subr.mxu0 0.0
    %550 = vmatpush1.msra.mxu0 0.0
    %551 = vmatprep.subr.mxu0 0.0
    %552 = vmatpush1.msra.mxu0 0.0
    %553 = vmatprep.subr.mxu0 0.0
    %554 = vmatpush1.msra.mxu0 0.0
    %555 = vmatprep.subr.mxu0 0.0
    %556 = vmatpush1.msra.mxu0 0.0
    %557 = vmatprep.subr.mxu0 0.0
    %558 = vmatpush1.msra.mxu0 0.0
    %559 = vmatprep.subr.mxu0 0.0
    %560 = vmatpush1.msra.mxu0 0.0
    %561 = vmatprep.subr.mxu0 0.0
    %562 = vmatpush1.msra.mxu0 0.0
    %563 = vmatprep.subr.mxu0 0.0
    %564 = vmatpush1.msra.mxu0 0.0
    %565 = vmatprep.subr.mxu0 0.0
    %566 = vmatpush1.msra.mxu0 0.0
    %567 = vmatprep.subr.mxu0 0.0
    %568 = vmatpush1.msra.mxu0 0.0
    %569 = vmatprep.subr.mxu0 0.0
    %570 = vmatpush1.msra.mxu0 0.0
    %571 = vmatprep.subr.mxu0 0.0
    %572 = vmatpush1.msra.mxu0 0.0
    %573 = vmatprep.subr.mxu0 0.0
    %574 = vmatpush1.msra.mxu0 0.0
    %575 = vmatprep.subr.mxu0 0.0
    %576 = vmatpush1.msra.mxu0 0.0
    %577 = vmatprep.subr.mxu0 0.0
    %578 = vmatpush1.msra.mxu0 0.0
    %579 = vmatprep.subr.mxu0 0.0
    %580 = vmatpush1.msra.mxu0 0.0
    %581 = vmatprep.mubr.f32.mxu0 0.0
    %582 = vmatmul.mubr.f32.gmra.mrb[0].mxu0 %v501
    %v583 = vpop.f32.mrb[0].mxu0
    %v584 = vadd.f32 0.0, %v583
    %v585 = vpop.f32.mrb[0].mxu0
    %586 = vmatprep.mubr.f32.mxu0 0.0
    %587 = vmatmul.mubr.f32.gmra.mrb[0].mxu0 %v503
    %v588 = vpop.f32.mrb[0].mxu0
    %v589 = vadd.f32 0.0, %v588
    %v590 = vpop.f32.mrb[0].mxu0
    %591 = vmatprep.mubr.f32.mxu0 0.0
    %592 = vmatmul.mubr.f32.gmra.mrb[0].mxu0 %v505
    %v593 = vpop.f32.mrb[0].mxu0
    %v594 = vadd.f32 0.0, %v593
    %v595 = vpop.f32.mrb[0].mxu0
    %596 = vmatprep.mubr.f32.mxu0 0.0
    %597 = vmatmul.mubr.f32.gmra.mrb[0].mxu0 %v507
    %v598 = vpop.f32.mrb[0].mxu0
    %v599 = vadd.f32 0.0, %v598
    %v600 = vpop.f32.mrb[0].mxu0
    %601 = vmatprep.mubr.f32.mxu0 0.0
    %602 = vmatmul.mubr.f32.gmra.mrb[0].mxu0 %v509
    %v603 = vpop.f32.mrb[0].mxu0
    %v604 = vadd.f32 0.0, %v603
    %v605 = vpop.f32.mrb[0].mxu0
    %606 = vmatprep.mubr.f32.mxu0 0.0
    %607 = vmatmul.mubr.f32.gmra.mrb[0].mxu0 %v511
    %v608 = vpop.f32.mrb[0].mxu0
    %v609 = vadd.f32 0.0, %v608
    %v610 = vpop.f32.mrb[0].mxu0
    %611 = vmatprep.mubr.f32.mxu0 0.0
    %612 = vmatmul.mubr.f32.gmra.mrb[0].mxu0 %v513
    %v613 = vpop.f32.mrb[0].mxu0
    %v614 = vadd.f32 0.0, %v613
    %v615 = vpop.f32.mrb[0].mxu0
    %616 = vmatprep.mubr.f32.mxu0 0.0
    %617 = vmatmul.mubr.f32.gmra.mrb[0].mxu0 %v515
    %v618 = vpop.f32.mrb[0].mxu0
    %v619 = vadd.f32 0.0, %v618
    %v620 = vpop.f32.mrb[0].mxu0
    %621 = vdwg.mxu0
    %v622 = vadd.f32 %v469, %v584
    %v623 = vadd.f32 %v470, %v589
    %v624 = vadd.f32 %v471, %v594
    %v625 = vadd.f32 %v472, %v599
    %v626 = vadd.f32 %v473, %v604
    %v627 = vadd.f32 %v474, %v609
    %v628 = vadd.f32 %v475, %v614
    %v629 = vadd.f32 %v476, %v619
    %v630 = vxor.u32 %v622, 2147483648
    %v631 = vxor.u32 %v623, 2147483648
    %v632 = vxor.u32 %v624, 2147483648
    %v633 = vxor.u32 %v625, 2147483648
    %v634 = vxor.u32 %v626, 2147483648
    %v635 = vxor.u32 %v627, 2147483648
    %v636 = vxor.u32 %v628, 2147483648
    %v637 = vxor.u32 %v629, 2147483648
    %v638 = vmul.f32 %v630, 1.442695
    %v639 = vpow.pop %v638
    %v640 = vmul.f32 %v631, 1.442695
    %v641 = vpow.pop %v640
    %v642 = vmul.f32 %v632, 1.442695
    %v643 = vpow.pop %v642
    %v644 = vmul.f32 %v633, 1.442695
    %v645 = vpow.pop %v644
    %v646 = vmul.f32 %v634, 1.442695
    %v647 = vpow.pop %v646
    %v648 = vmul.f32 %v635, 1.442695
    %v649 = vpow.pop %v648
    %v650 = vmul.f32 %v636, 1.442695
    %v651 = vpow.pop %v650
    %v652 = vmul.f32 %v637, 1.442695
    %v653 = vpow.pop %v652
    %v654 = vadd.f32 %v639, 1.0
    %v655 = vadd.f32 %v641, 1.0
    %v656 = vadd.f32 %v643, 1.0
    %v657 = vadd.f32 %v645, 1.0
    %v658 = vadd.f32 %v647, 1.0
    %v659 = vadd.f32 %v649, 1.0
    %v660 = vadd.f32 %v651, 1.0
    %v661 = vadd.f32 %v653, 1.0
    %v662 = vrcp.pop %v654
    %v663 = vmul.f32 1.0, %v662
    %v664 = vrcp.pop %v655
    %v665 = vmul.f32 1.0, %v664
    %v666 = vrcp.pop %v656
    %v667 = vmul.f32 1.0, %v666
    %v668 = vrcp.pop %v657
    %v669 = vmul.f32 1.0, %v668
    %v670 = vrcp.pop %v658
    %v671 = vmul.f32 1.0, %v670
    %v672 = vrcp.pop %v659
    %v673 = vmul.f32 1.0, %v672
    %v674 = vrcp.pop %v660
    %v675 = vmul.f32 1.0, %v674
    %v676 = vrcp.pop %v661
    %v677 = vmul.f32 1.0, %v676
    %v678 = vtanh.pop %v622
    %v679 = vtanh.pop %v623
    %v680 = vtanh.pop %v624
    %v681 = vtanh.pop %v625
    %v682 = vtanh.pop %v626
    %v683 = vtanh.pop %v627
    %v684 = vtanh.pop %v628
    %v685 = vtanh.pop %v629
    %v686 = vmul.f32 %v663, %v460
    %v687 = vmul.f32 %v665, %v461
    %v688 = vmul.f32 %v667, %v462
    %v689 = vmul.f32 %v669, %v463
    %v690 = vmul.f32 %v671, %v464
    %v691 = vmul.f32 %v673, %v465
    %v692 = vmul.f32 %v675, %v466
    %v693 = vmul.f32 %v677, %v467
    %702 = vrot.lane.b32.xlu0 %v678, 64
    %v703 = vpop.permute.xlu0 %702
    %704 = vrot.lane.b32.xlu0 %v679, 64
    %v705 = vpop.permute.xlu0 %704
    %706 = vrot.lane.b32.xlu0 %v680, 64
    %v707 = vpop.permute.xlu0 %706
    %708 = vrot.lane.b32.xlu0 %v681, 64
    %v709 = vpop.permute.xlu0 %708
    %710 = vrot.lane.b32.xlu0 %v682, 64
    %v711 = vpop.permute.xlu0 %710
    %712 = vrot.lane.b32.xlu0 %v683, 64
    %v713 = vpop.permute.xlu0 %712
    %714 = vrot.lane.b32.xlu0 %v684, 64
    %v715 = vpop.permute.xlu0 %714
    %716 = vrot.lane.b32.xlu0 %v685, 64
    %v717 = vpop.permute.xlu0 %716
    %v726 = vmul.f32 %v663, %v703
    %v727 = vmul.f32 %v665, %v705
    %v728 = vmul.f32 %v667, %v707
    %v729 = vmul.f32 %v669, %v709
    %v730 = vmul.f32 %v671, %v711
    %v731 = vmul.f32 %v673, %v713
    %v732 = vmul.f32 %v675, %v715
    %v733 = vmul.f32 %v677, %v717
    %742 = vrot.lane.b32.xlu0 %v726, 32
    %v743 = vpop.permute.xlu0 %742
    %744 = vrot.lane.b32.xlu0 %v727, 32
    %v745 = vpop.permute.xlu0 %744
    %746 = vrot.lane.b32.xlu0 %v728, 32
    %v747 = vpop.permute.xlu0 %746
    %748 = vrot.lane.b32.xlu0 %v729, 32
    %v749 = vpop.permute.xlu0 %748
    %750 = vrot.lane.b32.xlu0 %v730, 32
    %v751 = vpop.permute.xlu0 %750
    %752 = vrot.lane.b32.xlu0 %v731, 32
    %v753 = vpop.permute.xlu0 %752
    %754 = vrot.lane.b32.xlu0 %v732, 32
    %v755 = vpop.permute.xlu0 %754
    %756 = vrot.lane.b32.xlu0 %v733, 32
    %v757 = vpop.permute.xlu0 %756
    %v766 = vadd.f32 %v686, %v743
    %v767 = vadd.f32 %v687, %v745
    %v768 = vadd.f32 %v688, %v747
    %v769 = vadd.f32 %v689, %v749
    %v770 = vadd.f32 %v690, %v751
    %v771 = vadd.f32 %v691, %v753
    %v772 = vadd.f32 %v692, %v755
    %v773 = vadd.f32 %v693, %v757
    %v774 = vtanh.pop %v766
    %v775 = vtanh.pop %v767
    %v776 = vtanh.pop %v768
    %v777 = vtanh.pop %v769
    %v778 = vtanh.pop %v770
    %v779 = vtanh.pop %v771
    %v780 = vtanh.pop %v772
    %v781 = vtanh.pop %v773
    %790 = vrot.lane.b32.xlu0 %v774, 64
    %v791 = vpop.permute.xlu0 %790
    %792 = vrot.lane.b32.xlu0 %v775, 64
    %v793 = vpop.permute.xlu0 %792
    %794 = vrot.lane.b32.xlu0 %v776, 64
    %v795 = vpop.permute.xlu0 %794
    %796 = vrot.lane.b32.xlu0 %v777, 64
    %v797 = vpop.permute.xlu0 %796
    %798 = vrot.lane.b32.xlu0 %v778, 64
    %v799 = vpop.permute.xlu0 %798
    %800 = vrot.lane.b32.xlu0 %v779, 64
    %v801 = vpop.permute.xlu0 %800
    %802 = vrot.lane.b32.xlu0 %v780, 64
    %v803 = vpop.permute.xlu0 %802
    %804 = vrot.lane.b32.xlu0 %v781, 64
    %v805 = vpop.permute.xlu0 %804
    %v814 = vmul.f32 %v663, %v791
    %v815 = vmul.f32 %v665, %v793
    %v816 = vmul.f32 %v667, %v795
    %v817 = vmul.f32 %v669, %v797
    %v818 = vmul.f32 %v671, %v799
    %v819 = vmul.f32 %v673, %v801
    %v820 = vmul.f32 %v675, %v803
    %v821 = vmul.f32 %v677, %v805
    %830 = vrot.lane.b32.xlu0 %v814, 32
    %v831 = vpop.permute.xlu0 %830
    %832 = vrot.lane.b32.xlu0 %v815, 32
    %v833 = vpop.permute.xlu0 %832
    %834 = vrot.lane.b32.xlu0 %v816, 32
    %v835 = vpop.permute.xlu0 %834
    %836 = vrot.lane.b32.xlu0 %v817, 32
    %v837 = vpop.permute.xlu0 %836
    %838 = vrot.lane.b32.xlu0 %v818, 32
    %v839 = vpop.permute.xlu0 %838
    %840 = vrot.lane.b32.xlu0 %v819, 32
    %v841 = vpop.permute.xlu0 %840
    %842 = vrot.lane.b32.xlu0 %v820, 32
    %v843 = vpop.permute.xlu0 %842
    %844 = vrot.lane.b32.xlu0 %v821, 32
    %v845 = vpop.permute.xlu0 %844
    %s854 = scalar_lea.vmem [#allocation2], 64
    %855 = vst.msk [vmem:[%s854] sm:$0xff] %vm55, %v831
    %856 = vst.msk [vmem:[%s854 + $0x8] sm:$0xff] %vm55, %v833
    %857 = vst.msk [vmem:[%s854 + $0x10] sm:$0xff] %vm55, %v835
    %858 = vst.msk [vmem:[%s854 + $0x18] sm:$0xff] %vm55, %v837
    %859 = vst.msk [vmem:[%s854 + $0x20] sm:$0xff] %vm55, %v839
    %860 = vst.msk [vmem:[%s854 + $0x28] sm:$0xff] %vm55, %v841
    %861 = vst.msk [vmem:[%s854 + $0x30] sm:$0xff] %vm55, %v843
    %862 = vst.msk [vmem:[%s854 + $0x38] sm:$0xff] %vm55, %v845
    %vm863 = vcmp.gt.s32.totalorder %v39, 1
    %vm864 = vcmp.gt.s32.totalorder %v40, 1
    %vm865 = vcmp.gt.s32.totalorder %v41, 1
    %vm866 = vcmp.gt.s32.totalorder %v42, 1
    %vm867 = vcmp.gt.s32.totalorder %v43, 1
    %vm868 = vcmp.gt.s32.totalorder %v44, 1
    %vm869 = vcmp.gt.s32.totalorder %v45, 1
    %vm870 = vcmp.gt.s32.totalorder %v46, 1
    %v871 = vsel %vm863, 1, 0
    %v872 = vsel %vm864, 1, 0
    %v873 = vsel %vm865, 1, 0
    %v874 = vsel %vm866, 1, 0
    %v875 = vsel %vm867, 1, 0
    %v876 = vsel %vm868, 1, 0
    %v877 = vsel %vm869, 1, 0
    %v878 = vsel %vm870, 1, 0
    %879 = vset.pattern.permute.xlu0 0
    %880 = vperm.xlu0 %879, %v871
    %v881 = vpop.permute.xlu0 %880
    %882 = vset.pattern.permute.xlu0 0
    %883 = vperm.xlu0 %882, %v872
    %v884 = vpop.permute.xlu0 %883
    %885 = vset.pattern.permute.xlu0 0
    %886 = vperm.xlu0 %885, %v873
    %v887 = vpop.permute.xlu0 %886
    %888 = vset.pattern.permute.xlu0 0
    %889 = vperm.xlu0 %888, %v874
    %v890 = vpop.permute.xlu0 %889
    %891 = vset.pattern.permute.xlu0 0
    %892 = vperm.xlu0 %891, %v875
    %v893 = vpop.permute.xlu0 %892
    %894 = vset.pattern.permute.xlu0 0
    %895 = vperm.xlu0 %894, %v876
    %v896 = vpop.permute.xlu0 %895
    %897 = vset.pattern.permute.xlu0 0
    %898 = vperm.xlu0 %897, %v877
    %v899 = vpop.permute.xlu0 %898
    %900 = vset.pattern.permute.xlu0 0
    %901 = vperm.xlu0 %900, %v878
    %v902 = vpop.permute.xlu0 %901
    %vm903 = vcmp.eq.s32.totalorder %v881, 1
    %vm904 = vcmp.eq.s32.totalorder %v884, 1
    %vm905 = vcmp.eq.s32.totalorder %v887, 1
    %vm906 = vcmp.eq.s32.totalorder %v890, 1
    %vm907 = vcmp.eq.s32.totalorder %v893, 1
    %vm908 = vcmp.eq.s32.totalorder %v896, 1
    %vm909 = vcmp.eq.s32.totalorder %v899, 1
    %vm910 = vcmp.eq.s32.totalorder %v902, 1
    %v911 = vsel %vm903, %v814, %v452
    %v912 = vsel %vm904, %v815, %v453
    %v913 = vsel %vm905, %v816, %v454
    %v914 = vsel %vm906, %v817, %v455
    %v915 = vsel %vm907, %v818, %v456
    %v916 = vsel %vm908, %v819, %v457
    %v917 = vsel %vm909, %v820, %v458
    %v918 = vsel %vm910, %v821, %v459
    %v919 = vsel %vm903, %v766, %v460
    %v920 = vsel %vm904, %v767, %v461
    %v921 = vsel %vm905, %v768, %v462
    %v922 = vsel %vm906, %v769, %v463
    %v923 = vsel %vm907, %v770, %v464
    %v924 = vsel %vm908, %v771, %v465
    %v925 = vsel %vm909, %v772, %v466
    %v926 = vsel %vm910, %v773, %v467
    %s927 = scalar_lea.vmem [#allocation3], 128
    %v928 = vld [vmem:[%s927] sm:$0xff]
    %v929 = vld [vmem:[%s927 + $0x8] sm:$0xff]
    %v930 = vld [vmem:[%s927 + $0x10] sm:$0xff]
    %v931 = vld [vmem:[%s927 + $0x18] sm:$0xff]
    %v932 = vld [vmem:[%s927 + $0x20] sm:$0xff]
    %v933 = vld [vmem:[%s927 + $0x28] sm:$0xff]
    %v934 = vld [vmem:[%s927 + $0x30] sm:$0xff]
    %v935 = vld [vmem:[%s927 + $0x38] sm:$0xff]
    %944 = vrot.lane.b32.xlu0 %v911, 32
    %v945 = vpop.permute.xlu0 %944
    %946 = vrot.lane.b32.xlu0 %v912, 32
    %v947 = vpop.permute.xlu0 %946
    %948 = vrot.lane.b32.xlu0 %v913, 32
    %v949 = vpop.permute.xlu0 %948
    %950 = vrot.lane.b32.xlu0 %v914, 32
    %v951 = vpop.permute.xlu0 %950
    %952 = vrot.lane.b32.xlu0 %v915, 32
    %v953 = vpop.permute.xlu0 %952
    %954 = vrot.lane.b32.xlu0 %v916, 32
    %v955 = vpop.permute.xlu0 %954
    %956 = vrot.lane.b32.xlu0 %v917, 32
    %v957 = vpop.permute.xlu0 %956
    %958 = vrot.lane.b32.xlu0 %v918, 32
    %v959 = vpop.permute.xlu0 %958
    %v960 = vsel %vm55, %v945, 0
    %v962 = vsel %vm55, %v947, 0
    %v964 = vsel %vm55, %v949, 0
    %v966 = vsel %vm55, %v951, 0
    %v968 = vsel %vm55, %v953, 0
    %v970 = vsel %vm55, %v955, 0
    %v972 = vsel %vm55, %v957, 0
    %v974 = vsel %vm55, %v959, 0
    %976 = vmatprep.subr.mxu0 0.0
    %977 = vmatpush1.msra.mxu0 %v35
    %978 = vmatprep.subr.mxu0 0.0
    %979 = vmatpush1.msra.mxu0 %v36
    %980 = vmatprep.subr.mxu0 0.0
    %981 = vmatpush1.msra.mxu0 %v37
    %982 = vmatprep.subr.mxu0 0.0
    %983 = vmatpush1.msra.mxu0 %v38
    %984 = vmatprep.subr.mxu0 0.0
    %985 = vmatpush1.msra.mxu0 0.0
    %986 = vmatprep.subr.mxu0 0.0
    %987 = vmatpush1.msra.mxu0 0.0
    %988 = vmatprep.subr.mxu0 0.0
    %989 = vmatpush1.msra.mxu0 0.0
    %990 = vmatprep.subr.mxu0 0.0
    %991 = vmatpush1.msra.mxu0 0.0
    %992 = vmatprep.subr.mxu0 0.0
    %993 = vmatpush1.msra.mxu0 0.0
    %994 = vmatprep.subr.mxu0 0.0
    %995 = vmatpush1.msra.mxu0 0.0
    %996 = vmatprep.subr.mxu0 0.0
    %997 = vmatpush1.msra.mxu0 0.0
    %998 = vmatprep.subr.mxu0 0.0
    %999 = vmatpush1.msra.mxu0 0.0
    %1000 = vmatprep.subr.mxu0 0.0
    %1001 = vmatpush1.msra.mxu0 0.0
    %1002 = vmatprep.subr.mxu0 0.0
    %1003 = vmatpush1.msra.mxu0 0.0
    %1004 = vmatprep.subr.mxu0 0.0
    %1005 = vmatpush1.msra.mxu0 0.0
    %1006 = vmatprep.subr.mxu0 0.0
    %1007 = vmatpush1.msra.mxu0 0.0
    %1008 = vmatprep.subr.mxu0 0.0
    %1009 = vmatpush1.msra.mxu0 0.0
    %1010 = vmatprep.subr.mxu0 0.0
    %1011 = vmatpush1.msra.mxu0 0.0
    %1012 = vmatprep.subr.mxu0 0.0
    %1013 = vmatpush1.msra.mxu0 0.0
    %1014 = vmatprep.subr.mxu0 0.0
    %1015 = vmatpush1.msra.mxu0 0.0
    %1016 = vmatprep.subr.mxu0 0.0
    %1017 = vmatpush1.msra.mxu0 0.0
    %1018 = vmatprep.subr.mxu0 0.0
    %1019 = vmatpush1.msra.mxu0 0.0
    %1020 = vmatprep.subr.mxu0 0.0
    %1021 = vmatpush1.msra.mxu0 0.0
    %1022 = vmatprep.subr.mxu0 0.0
    %1023 = vmatpush1.msra.mxu0 0.0
    %1024 = vmatprep.subr.mxu0 0.0
    %1025 = vmatpush1.msra.mxu0 0.0
    %1026 = vmatprep.subr.mxu0 0.0
    %1027 = vmatpush1.msra.mxu0 0.0
    %1028 = vmatprep.subr.mxu0 0.0
    %1029 = vmatpush1.msra.mxu0 0.0
    %1030 = vmatprep.subr.mxu0 0.0
    %1031 = vmatpush1.msra.mxu0 0.0
    %1032 = vmatprep.subr.mxu0 0.0
    %1033 = vmatpush1.msra.mxu0 0.0
    %1034 = vmatprep.subr.mxu0 0.0
    %1035 = vmatpush1.msra.mxu0 0.0
    %1036 = vmatprep.subr.mxu0 0.0
    %1037 = vmatpush1.msra.mxu0 0.0
    %1038 = vmatprep.subr.mxu0 0.0
    %1039 = vmatpush1.msra.mxu0 0.0
    %1040 = vmatprep.mubr.f32.mxu0 0.0
    %1041 = vmatmul.mubr.f32.gmra.mrb[0].mxu0 %v960
    %v1042 = vpop.f32.mrb[0].mxu0
    %v1043 = vadd.f32 0.0, %v1042
    %v1044 = vpop.f32.mrb[0].mxu0
    %1045 = vmatprep.mubr.f32.mxu0 0.0
    %1046 = vmatmul.mubr.f32.gmra.mrb[0].mxu0 %v962
    %v1047 = vpop.f32.mrb[0].mxu0
    %v1048 = vadd.f32 0.0, %v1047
    %v1049 = vpop.f32.mrb[0].mxu0
    %1050 = vmatprep.mubr.f32.mxu0 0.0
    %1051 = vmatmul.mubr.f32.gmra.mrb[0].mxu0 %v964
    %v1052 = vpop.f32.mrb[0].mxu0
    %v1053 = vadd.f32 0.0, %v1052
    %v1054 = vpop.f32.mrb[0].mxu0
    %1055 = vmatprep.mubr.f32.mxu0 0.0
    %1056 = vmatmul.mubr.f32.gmra.mrb[0].mxu0 %v966
    %v1057 = vpop.f32.mrb[0].mxu0
    %v1058 = vadd.f32 0.0, %v1057
    %v1059 = vpop.f32.mrb[0].mxu0
    %1060 = vmatprep.mubr.f32.mxu0 0.0
    %1061 = vmatmul.mubr.f32.gmra.mrb[0].mxu0 %v968
    %v1062 = vpop.f32.mrb[0].mxu0
    %v1063 = vadd.f32 0.0, %v1062
    %v1064 = vpop.f32.mrb[0].mxu0
    %1065 = vmatprep.mubr.f32.mxu0 0.0
    %1066 = vmatmul.mubr.f32.gmra.mrb[0].mxu0 %v970
    %v1067 = vpop.f32.mrb[0].mxu0
    %v1068 = vadd.f32 0.0, %v1067
    %v1069 = vpop.f32.mrb[0].mxu0
    %1070 = vmatprep.mubr.f32.mxu0 0.0
    %1071 = vmatmul.mubr.f32.gmra.mrb[0].mxu0 %v972
    %v1072 = vpop.f32.mrb[0].mxu0
    %v1073 = vadd.f32 0.0, %v1072
    %v1074 = vpop.f32.mrb[0].mxu0
    %1075 = vmatprep.mubr.f32.mxu0 0.0
    %1076 = vmatmul.mubr.f32.gmra.mrb[0].mxu0 %v974
    %v1077 = vpop.f32.mrb[0].mxu0
    %v1078 = vadd.f32 0.0, %v1077
    %v1079 = vpop.f32.mrb[0].mxu0
    %1080 = vdwg.mxu0
    %v1081 = vadd.f32 %v928, %v1043
    %v1082 = vadd.f32 %v929, %v1048
    %v1083 = vadd.f32 %v930, %v1053
    %v1084 = vadd.f32 %v931, %v1058
    %v1085 = vadd.f32 %v932, %v1063
    %v1086 = vadd.f32 %v933, %v1068
    %v1087 = vadd.f32 %v934, %v1073
    %v1088 = vadd.f32 %v935, %v1078
    %v1089 = vxor.u32 %v1081, 2147483648
    %v1090 = vxor.u32 %v1082, 2147483648
    %v1091 = vxor.u32 %v1083, 2147483648
    %v1092 = vxor.u32 %v1084, 2147483648
    %v1093 = vxor.u32 %v1085, 2147483648
    %v1094 = vxor.u32 %v1086, 2147483648
    %v1095 = vxor.u32 %v1087, 2147483648
    %v1096 = vxor.u32 %v1088, 2147483648
    %v1097 = vmul.f32 %v1089, 1.442695
    %v1098 = vpow.pop %v1097
    %v1099 = vmul.f32 %v1090, 1.442695
    %v1100 = vpow.pop %v1099
    %v1101 = vmul.f32 %v1091, 1.442695
    %v1102 = vpow.pop %v1101
    %v1103 = vmul.f32 %v1092, 1.442695
    %v1104 = vpow.pop %v1103
    %v1105 = vmul.f32 %v1093, 1.442695
    %v1106 = vpow.pop %v1105
    %v1107 = vmul.f32 %v1094, 1.442695
    %v1108 = vpow.pop %v1107
    %v1109 = vmul.f32 %v1095, 1.442695
    %v1110 = vpow.pop %v1109
    %v1111 = vmul.f32 %v1096, 1.442695
    %v1112 = vpow.pop %v1111
    %v1113 = vadd.f32 %v1098, 1.0
    %v1114 = vadd.f32 %v1100, 1.0
    %v1115 = vadd.f32 %v1102, 1.0
    %v1116 = vadd.f32 %v1104, 1.0
    %v1117 = vadd.f32 %v1106, 1.0
    %v1118 = vadd.f32 %v1108, 1.0
    %v1119 = vadd.f32 %v1110, 1.0
    %v1120 = vadd.f32 %v1112, 1.0
    %v1121 = vrcp.pop %v1113
    %v1122 = vmul.f32 1.0, %v1121
    %v1123 = vrcp.pop %v1114
    %v1124 = vmul.f32 1.0, %v1123
    %v1125 = vrcp.pop %v1115
    %v1126 = vmul.f32 1.0, %v1125
    %v1127 = vrcp.pop %v1116
    %v1128 = vmul.f32 1.0, %v1127
    %v1129 = vrcp.pop %v1117
    %v1130 = vmul.f32 1.0, %v1129
    %v1131 = vrcp.pop %v1118
    %v1132 = vmul.f32 1.0, %v1131
    %v1133 = vrcp.pop %v1119
    %v1134 = vmul.f32 1.0, %v1133
    %v1135 = vrcp.pop %v1120
    %v1136 = vmul.f32 1.0, %v1135
    %v1137 = vtanh.pop %v1081
    %v1138 = vtanh.pop %v1082
    %v1139 = vtanh.pop %v1083
    %v1140 = vtanh.pop %v1084
    %v1141 = vtanh.pop %v1085
    %v1142 = vtanh.pop %v1086
    %v1143 = vtanh.pop %v1087
    %v1144 = vtanh.pop %v1088
    %v1145 = vmul.f32 %v1122, %v919
    %v1146 = vmul.f32 %v1124, %v920
    %v1147 = vmul.f32 %v1126, %v921
    %v1148 = vmul.f32 %v1128, %v922
    %v1149 = vmul.f32 %v1130, %v923
    %v1150 = vmul.f32 %v1132, %v924
    %v1151 = vmul.f32 %v1134, %v925
    %v1152 = vmul.f32 %v1136, %v926
    %1161 = vrot.lane.b32.xlu0 %v1137, 64
    %v1162 = vpop.permute.xlu0 %1161
    %1163 = vrot.lane.b32.xlu0 %v1138, 64
    %v1164 = vpop.permute.xlu0 %1163
    %1165 = vrot.lane.b32.xlu0 %v1139, 64
    %v1166 = vpop.permute.xlu0 %1165
    %1167 = vrot.lane.b32.xlu0 %v1140, 64
    %v1168 = vpop.permute.xlu0 %1167
    %1169 = vrot.lane.b32.xlu0 %v1141, 64
    %v1170 = vpop.permute.xlu0 %1169
    %1171 = vrot.lane.b32.xlu0 %v1142, 64
    %v1172 = vpop.permute.xlu0 %1171
    %1173 = vrot.lane.b32.xlu0 %v1143, 64
    %v1174 = vpop.permute.xlu0 %1173
    %1175 = vrot.lane.b32.xlu0 %v1144, 64
    %v1176 = vpop.permute.xlu0 %1175
    %v1185 = vmul.f32 %v1122, %v1162
    %v1186 = vmul.f32 %v1124, %v1164
    %v1187 = vmul.f32 %v1126, %v1166
    %v1188 = vmul.f32 %v1128, %v1168
    %v1189 = vmul.f32 %v1130, %v1170
    %v1190 = vmul.f32 %v1132, %v1172
    %v1191 = vmul.f32 %v1134, %v1174
    %v1192 = vmul.f32 %v1136, %v1176
    %1201 = vrot.lane.b32.xlu0 %v1185, 32
    %v1202 = vpop.permute.xlu0 %1201
    %1203 = vrot.lane.b32.xlu0 %v1186, 32
    %v1204 = vpop.permute.xlu0 %1203
    %1205 = vrot.lane.b32.xlu0 %v1187, 32
    %v1206 = vpop.permute.xlu0 %1205
    %1207 = vrot.lane.b32.xlu0 %v1188, 32
    %v1208 = vpop.permute.xlu0 %1207
    %1209 = vrot.lane.b32.xlu0 %v1189, 32
    %v1210 = vpop.permute.xlu0 %1209
    %1211 = vrot.lane.b32.xlu0 %v1190, 32
    %v1212 = vpop.permute.xlu0 %1211
    %1213 = vrot.lane.b32.xlu0 %v1191, 32
    %v1214 = vpop.permute.xlu0 %1213
    %1215 = vrot.lane.b32.xlu0 %v1192, 32
    %v1216 = vpop.permute.xlu0 %1215
    %v1225 = vadd.f32 %v1145, %v1202
    %v1226 = vadd.f32 %v1146, %v1204
    %v1227 = vadd.f32 %v1147, %v1206
    %v1228 = vadd.f32 %v1148, %v1208
    %v1229 = vadd.f32 %v1149, %v1210
    %v1230 = vadd.f32 %v1150, %v1212
    %v1231 = vadd.f32 %v1151, %v1214
    %v1232 = vadd.f32 %v1152, %v1216
    %v1233 = vtanh.pop %v1225
    %v1234 = vtanh.pop %v1226
    %v1235 = vtanh.pop %v1227
    %v1236 = vtanh.pop %v1228
    %v1237 = vtanh.pop %v1229
    %v1238 = vtanh.pop %v1230
    %v1239 = vtanh.pop %v1231
    %v1240 = vtanh.pop %v1232
    %1249 = vrot.lane.b32.xlu0 %v1233, 64
    %v1250 = vpop.permute.xlu0 %1249
    %1251 = vrot.lane.b32.xlu0 %v1234, 64
    %v1252 = vpop.permute.xlu0 %1251
    %1253 = vrot.lane.b32.xlu0 %v1235, 64
    %v1254 = vpop.permute.xlu0 %1253
    %1255 = vrot.lane.b32.xlu0 %v1236, 64
    %v1256 = vpop.permute.xlu0 %1255
    %1257 = vrot.lane.b32.xlu0 %v1237, 64
    %v1258 = vpop.permute.xlu0 %1257
    %1259 = vrot.lane.b32.xlu0 %v1238, 64
    %v1260 = vpop.permute.xlu0 %1259
    %1261 = vrot.lane.b32.xlu0 %v1239, 64
    %v1262 = vpop.permute.xlu0 %1261
    %1263 = vrot.lane.b32.xlu0 %v1240, 64
    %v1264 = vpop.permute.xlu0 %1263
    %v1273 = vmul.f32 %v1122, %v1250
    %v1274 = vmul.f32 %v1124, %v1252
    %v1275 = vmul.f32 %v1126, %v1254
    %v1276 = vmul.f32 %v1128, %v1256
    %v1277 = vmul.f32 %v1130, %v1258
    %v1278 = vmul.f32 %v1132, %v1260
    %v1279 = vmul.f32 %v1134, %v1262
    %v1280 = vmul.f32 %v1136, %v1264
    %1289 = vrot.lane.b32.xlu0 %v1273, 32
    %v1290 = vpop.permute.xlu0 %1289
    %1291 = vrot.lane.b32.xlu0 %v1274, 32
    %v1292 = vpop.permute.xlu0 %1291
    %1293 = vrot.lane.b32.xlu0 %v1275, 32
    %v1294 = vpop.permute.xlu0 %1293
    %1295 = vrot.lane.b32.xlu0 %v1276, 32
    %v1296 = vpop.permute.xlu0 %1295
    %1297 = vrot.lane.b32.xlu0 %v1277, 32
    %v1298 = vpop.permute.xlu0 %1297
    %1299 = vrot.lane.b32.xlu0 %v1278, 32
    %v1300 = vpop.permute.xlu0 %1299
    %1301 = vrot.lane.b32.xlu0 %v1279, 32
    %v1302 = vpop.permute.xlu0 %1301
    %1303 = vrot.lane.b32.xlu0 %v1280, 32
    %v1304 = vpop.permute.xlu0 %1303
    %s1313 = scalar_lea.vmem [#allocation2], 128
    %1314 = vst.msk [vmem:[%s1313] sm:$0xff] %vm55, %v1290
    %1315 = vst.msk [vmem:[%s1313 + $0x8] sm:$0xff] %vm55, %v1292
    %1316 = vst.msk [vmem:[%s1313 + $0x10] sm:$0xff] %vm55, %v1294
    %1317 = vst.msk [vmem:[%s1313 + $0x18] sm:$0xff] %vm55, %v1296
    %1318 = vst.msk [vmem:[%s1313 + $0x20] sm:$0xff] %vm55, %v1298
    %1319 = vst.msk [vmem:[%s1313 + $0x28] sm:$0xff] %vm55, %v1300
    %1320 = vst.msk [vmem:[%s1313 + $0x30] sm:$0xff] %vm55, %v1302
    %1321 = vst.msk [vmem:[%s1313 + $0x38] sm:$0xff] %vm55, %v1304
    %vm1322 = vcmp.gt.s32.totalorder %v39, 2
    %vm1323 = vcmp.gt.s32.totalorder %v40, 2
    %vm1324 = vcmp.gt.s32.totalorder %v41, 2
    %vm1325 = vcmp.gt.s32.totalorder %v42, 2
    %vm1326 = vcmp.gt.s32.totalorder %v43, 2
    %vm1327 = vcmp.gt.s32.totalorder %v44, 2
    %vm1328 = vcmp.gt.s32.totalorder %v45, 2
    %vm1329 = vcmp.gt.s32.totalorder %v46, 2
    %v1330 = vsel %vm1322, 1, 0
    %v1331 = vsel %vm1323, 1, 0
    %v1332 = vsel %vm1324, 1, 0
    %v1333 = vsel %vm1325, 1, 0
    %v1334 = vsel %vm1326, 1, 0
    %v1335 = vsel %vm1327, 1, 0
    %v1336 = vsel %vm1328, 1, 0
    %v1337 = vsel %vm1329, 1, 0
    %1338 = vset.pattern.permute.xlu0 0
    %1339 = vperm.xlu0 %1338, %v1330
    %v1340 = vpop.permute.xlu0 %1339
    %1341 = vset.pattern.permute.xlu0 0
    %1342 = vperm.xlu0 %1341, %v1331
    %v1343 = vpop.permute.xlu0 %1342
    %1344 = vset.pattern.permute.xlu0 0
    %1345 = vperm.xlu0 %1344, %v1332
    %v1346 = vpop.permute.xlu0 %1345
    %1347 = vset.pattern.permute.xlu0 0
    %1348 = vperm.xlu0 %1347, %v1333
    %v1349 = vpop.permute.xlu0 %1348
    %1350 = vset.pattern.permute.xlu0 0
    %1351 = vperm.xlu0 %1350, %v1334
    %v1352 = vpop.permute.xlu0 %1351
    %1353 = vset.pattern.permute.xlu0 0
    %1354 = vperm.xlu0 %1353, %v1335
    %v1355 = vpop.permute.xlu0 %1354
    %1356 = vset.pattern.permute.xlu0 0
    %1357 = vperm.xlu0 %1356, %v1336
    %v1358 = vpop.permute.xlu0 %1357
    %1359 = vset.pattern.permute.xlu0 0
    %1360 = vperm.xlu0 %1359, %v1337
    %v1361 = vpop.permute.xlu0 %1360
    %vm1362 = vcmp.eq.s32.totalorder %v1340, 1
    %vm1363 = vcmp.eq.s32.totalorder %v1343, 1
    %vm1364 = vcmp.eq.s32.totalorder %v1346, 1
    %vm1365 = vcmp.eq.s32.totalorder %v1349, 1
    %vm1366 = vcmp.eq.s32.totalorder %v1352, 1
    %vm1367 = vcmp.eq.s32.totalorder %v1355, 1
    %vm1368 = vcmp.eq.s32.totalorder %v1358, 1
    %vm1369 = vcmp.eq.s32.totalorder %v1361, 1
    %v1370 = vsel %vm1362, %v1273, %v911
    %v1371 = vsel %vm1363, %v1274, %v912
    %v1372 = vsel %vm1364, %v1275, %v913
    %v1373 = vsel %vm1365, %v1276, %v914
    %v1374 = vsel %vm1366, %v1277, %v915
    %v1375 = vsel %vm1367, %v1278, %v916
    %v1376 = vsel %vm1368, %v1279, %v917
    %v1377 = vsel %vm1369, %v1280, %v918
    %v1378 = vsel %vm1362, %v1225, %v919
    %v1379 = vsel %vm1363, %v1226, %v920
    %v1380 = vsel %vm1364, %v1227, %v921
    %v1381 = vsel %vm1365, %v1228, %v922
    %v1382 = vsel %vm1366, %v1229, %v923
    %v1383 = vsel %vm1367, %v1230, %v924
    %v1384 = vsel %vm1368, %v1231, %v925
    %v1385 = vsel %vm1369, %v1232, %v926
    %s1386 = scalar_lea.vmem [#allocation3], 192
    %v1387 = vld [vmem:[%s1386] sm:$0xff]
    %v1388 = vld [vmem:[%s1386 + $0x8] sm:$0xff]
    %v1389 = vld [vmem:[%s1386 + $0x10] sm:$0xff]
    %v1390 = vld [vmem:[%s1386 + $0x18] sm:$0xff]
    %v1391 = vld [vmem:[%s1386 + $0x20] sm:$0xff]
    %v1392 = vld [vmem:[%s1386 + $0x28] sm:$0xff]
    %v1393 = vld [vmem:[%s1386 + $0x30] sm:$0xff]
    %v1394 = vld [vmem:[%s1386 + $0x38] sm:$0xff]
    %1403 = vrot.lane.b32.xlu0 %v1370, 32
    %v1404 = vpop.permute.xlu0 %1403
    %1405 = vrot.lane.b32.xlu0 %v1371, 32
    %v1406 = vpop.permute.xlu0 %1405
    %1407 = vrot.lane.b32.xlu0 %v1372, 32
    %v1408 = vpop.permute.xlu0 %1407
    %1409 = vrot.lane.b32.xlu0 %v1373, 32
    %v1410 = vpop.permute.xlu0 %1409
    %1411 = vrot.lane.b32.xlu0 %v1374, 32
    %v1412 = vpop.permute.xlu0 %1411
    %1413 = vrot.lane.b32.xlu0 %v1375, 32
    %v1414 = vpop.permute.xlu0 %1413
    %1415 = vrot.lane.b32.xlu0 %v1376, 32
    %v1416 = vpop.permute.xlu0 %1415
    %1417 = vrot.lane.b32.xlu0 %v1377, 32
    %v1418 = vpop.permute.xlu0 %1417
    %v1419 = vsel %vm55, %v1404, 0
    %v1421 = vsel %vm55, %v1406, 0
    %v1423 = vsel %vm55, %v1408, 0
    %v1425 = vsel %vm55, %v1410, 0
    %v1427 = vsel %vm55, %v1412, 0
    %v1429 = vsel %vm55, %v1414, 0
    %v1431 = vsel %vm55, %v1416, 0
    %v1433 = vsel %vm55, %v1418, 0
    %1435 = vmatprep.subr.mxu0 0.0
    %1436 = vmatpush1.msra.mxu0 %v35
    %1437 = vmatprep.subr.mxu0 0.0
    %1438 = vmatpush1.msra.mxu0 %v36
    %1439 = vmatprep.subr.mxu0 0.0
    %1440 = vmatpush1.msra.mxu0 %v37
    %1441 = vmatprep.subr.mxu0 0.0
    %1442 = vmatpush1.msra.mxu0 %v38
    %1443 = vmatprep.subr.mxu0 0.0
    %1444 = vmatpush1.msra.mxu0 0.0
    %1445 = vmatprep.subr.mxu0 0.0
    %1446 = vmatpush1.msra.mxu0 0.0
    %1447 = vmatprep.subr.mxu0 0.0
    %1448 = vmatpush1.msra.mxu0 0.0
    %1449 = vmatprep.subr.mxu0 0.0
    %1450 = vmatpush1.msra.mxu0 0.0
    %1451 = vmatprep.subr.mxu0 0.0
    %1452 = vmatpush1.msra.mxu0 0.0
    %1453 = vmatprep.subr.mxu0 0.0
    %1454 = vmatpush1.msra.mxu0 0.0
    %1455 = vmatprep.subr.mxu0 0.0
    %1456 = vmatpush1.msra.mxu0 0.0
    %1457 = vmatprep.subr.mxu0 0.0
    %1458 = vmatpush1.msra.mxu0 0.0
    %1459 = vmatprep.subr.mxu0 0.0
    %1460 = vmatpush1.msra.mxu0 0.0
    %1461 = vmatprep.subr.mxu0 0.0
    %1462 = vmatpush1.msra.mxu0 0.0
    %1463 = vmatprep.subr.mxu0 0.0
    %1464 = vmatpush1.msra.mxu0 0.0
    %1465 = vmatprep.subr.mxu0 0.0
    %1466 = vmatpush1.msra.mxu0 0.0
    %1467 = vmatprep.subr.mxu0 0.0
    %1468 = vmatpush1.msra.mxu0 0.0
    %1469 = vmatprep.subr.mxu0 0.0
    %1470 = vmatpush1.msra.mxu0 0.0
    %1471 = vmatprep.subr.mxu0 0.0
    %1472 = vmatpush1.msra.mxu0 0.0
    %1473 = vmatprep.subr.mxu0 0.0
    %1474 = vmatpush1.msra.mxu0 0.0
    %1475 = vmatprep.subr.mxu0 0.0
    %1476 = vmatpush1.msra.mxu0 0.0
    %1477 = vmatprep.subr.mxu0 0.0
    %1478 = vmatpush1.msra.mxu0 0.0
    %1479 = vmatprep.subr.mxu0 0.0
    %1480 = vmatpush1.msra.mxu0 0.0
    %1481 = vmatprep.subr.mxu0 0.0
    %1482 = vmatpush1.msra.mxu0 0.0
    %1483 = vmatprep.subr.mxu0 0.0
    %1484 = vmatpush1.msra.mxu0 0.0
    %1485 = vmatprep.subr.mxu0 0.0
    %1486 = vmatpush1.msra.mxu0 0.0
    %1487 = vmatprep.subr.mxu0 0.0
    %1488 = vmatpush1.msra.mxu0 0.0
    %1489 = vmatprep.subr.mxu0 0.0
    %1490 = vmatpush1.msra.mxu0 0.0
    %1491 = vmatprep.subr.mxu0 0.0
    %1492 = vmatpush1.msra.mxu0 0.0
    %1493 = vmatprep.subr.mxu0 0.0
    %1494 = vmatpush1.msra.mxu0 0.0
    %1495 = vmatprep.subr.mxu0 0.0
    %1496 = vmatpush1.msra.mxu0 0.0
    %1497 = vmatprep.subr.mxu0 0.0
    %1498 = vmatpush1.msra.mxu0 0.0
    %1499 = vmatprep.mubr.f32.mxu0 0.0
    %1500 = vmatmul.mubr.f32.gmra.mrb[0].mxu0 %v1419
    %v1501 = vpop.f32.mrb[0].mxu0
    %v1502 = vadd.f32 0.0, %v1501
    %v1503 = vpop.f32.mrb[0].mxu0
    %1504 = vmatprep.mubr.f32.mxu0 0.0
    %1505 = vmatmul.mubr.f32.gmra.mrb[0].mxu0 %v1421
    %v1506 = vpop.f32.mrb[0].mxu0
    %v1507 = vadd.f32 0.0, %v1506
    %v1508 = vpop.f32.mrb[0].mxu0
    %1509 = vmatprep.mubr.f32.mxu0 0.0
    %1510 = vmatmul.mubr.f32.gmra.mrb[0].mxu0 %v1423
    %v1511 = vpop.f32.mrb[0].mxu0
    %v1512 = vadd.f32 0.0, %v1511
    %v1513 = vpop.f32.mrb[0].mxu0
    %1514 = vmatprep.mubr.f32.mxu0 0.0
    %1515 = vmatmul.mubr.f32.gmra.mrb[0].mxu0 %v1425
    %v1516 = vpop.f32.mrb[0].mxu0
    %v1517 = vadd.f32 0.0, %v1516
    %v1518 = vpop.f32.mrb[0].mxu0
    %1519 = vmatprep.mubr.f32.mxu0 0.0
    %1520 = vmatmul.mubr.f32.gmra.mrb[0].mxu0 %v1427
    %v1521 = vpop.f32.mrb[0].mxu0
    %v1522 = vadd.f32 0.0, %v1521
    %v1523 = vpop.f32.mrb[0].mxu0
    %1524 = vmatprep.mubr.f32.mxu0 0.0
    %1525 = vmatmul.mubr.f32.gmra.mrb[0].mxu0 %v1429
    %v1526 = vpop.f32.mrb[0].mxu0
    %v1527 = vadd.f32 0.0, %v1526
    %v1528 = vpop.f32.mrb[0].mxu0
    %1529 = vmatprep.mubr.f32.mxu0 0.0
    %1530 = vmatmul.mubr.f32.gmra.mrb[0].mxu0 %v1431
    %v1531 = vpop.f32.mrb[0].mxu0
    %v1532 = vadd.f32 0.0, %v1531
    %v1533 = vpop.f32.mrb[0].mxu0
    %1534 = vmatprep.mubr.f32.mxu0 0.0
    %1535 = vmatmul.mubr.f32.gmra.mrb[0].mxu0 %v1433
    %v1536 = vpop.f32.mrb[0].mxu0
    %v1537 = vadd.f32 0.0, %v1536
    %v1538 = vpop.f32.mrb[0].mxu0
    %1539 = vdwg.mxu0
    %v1540 = vadd.f32 %v1387, %v1502
    %v1541 = vadd.f32 %v1388, %v1507
    %v1542 = vadd.f32 %v1389, %v1512
    %v1543 = vadd.f32 %v1390, %v1517
    %v1544 = vadd.f32 %v1391, %v1522
    %v1545 = vadd.f32 %v1392, %v1527
    %v1546 = vadd.f32 %v1393, %v1532
    %v1547 = vadd.f32 %v1394, %v1537
    %v1548 = vxor.u32 %v1540, 2147483648
    %v1549 = vxor.u32 %v1541, 2147483648
    %v1550 = vxor.u32 %v1542, 2147483648
    %v1551 = vxor.u32 %v1543, 2147483648
    %v1552 = vxor.u32 %v1544, 2147483648
    %v1553 = vxor.u32 %v1545, 2147483648
    %v1554 = vxor.u32 %v1546, 2147483648
    %v1555 = vxor.u32 %v1547, 2147483648
    %v1556 = vmul.f32 %v1548, 1.442695
    %v1557 = vpow.pop %v1556
    %v1558 = vmul.f32 %v1549, 1.442695
    %v1559 = vpow.pop %v1558
    %v1560 = vmul.f32 %v1550, 1.442695
    %v1561 = vpow.pop %v1560
    %v1562 = vmul.f32 %v1551, 1.442695
    %v1563 = vpow.pop %v1562
    %v1564 = vmul.f32 %v1552, 1.442695
    %v1565 = vpow.pop %v1564
    %v1566 = vmul.f32 %v1553, 1.442695
    %v1567 = vpow.pop %v1566
    %v1568 = vmul.f32 %v1554, 1.442695
    %v1569 = vpow.pop %v1568
    %v1570 = vmul.f32 %v1555, 1.442695
    %v1571 = vpow.pop %v1570
    %v1572 = vadd.f32 %v1557, 1.0
    %v1573 = vadd.f32 %v1559, 1.0
    %v1574 = vadd.f32 %v1561, 1.0
    %v1575 = vadd.f32 %v1563, 1.0
    %v1576 = vadd.f32 %v1565, 1.0
    %v1577 = vadd.f32 %v1567, 1.0
    %v1578 = vadd.f32 %v1569, 1.0
    %v1579 = vadd.f32 %v1571, 1.0
    %v1580 = vrcp.pop %v1572
    %v1581 = vmul.f32 1.0, %v1580
    %v1582 = vrcp.pop %v1573
    %v1583 = vmul.f32 1.0, %v1582
    %v1584 = vrcp.pop %v1574
    %v1585 = vmul.f32 1.0, %v1584
    %v1586 = vrcp.pop %v1575
    %v1587 = vmul.f32 1.0, %v1586
    %v1588 = vrcp.pop %v1576
    %v1589 = vmul.f32 1.0, %v1588
    %v1590 = vrcp.pop %v1577
    %v1591 = vmul.f32 1.0, %v1590
    %v1592 = vrcp.pop %v1578
    %v1593 = vmul.f32 1.0, %v1592
    %v1594 = vrcp.pop %v1579
    %v1595 = vmul.f32 1.0, %v1594
    %v1596 = vtanh.pop %v1540
    %v1597 = vtanh.pop %v1541
    %v1598 = vtanh.pop %v1542
    %v1599 = vtanh.pop %v1543
    %v1600 = vtanh.pop %v1544
    %v1601 = vtanh.pop %v1545
    %v1602 = vtanh.pop %v1546
    %v1603 = vtanh.pop %v1547
    %v1604 = vmul.f32 %v1581, %v1378
    %v1605 = vmul.f32 %v1583, %v1379
    %v1606 = vmul.f32 %v1585, %v1380
    %v1607 = vmul.f32 %v1587, %v1381
    %v1608 = vmul.f32 %v1589, %v1382
    %v1609 = vmul.f32 %v1591, %v1383
    %v1610 = vmul.f32 %v1593, %v1384
    %v1611 = vmul.f32 %v1595, %v1385
    %1620 = vrot.lane.b32.xlu0 %v1596, 64
    %v1621 = vpop.permute.xlu0 %1620
    %1622 = vrot.lane.b32.xlu0 %v1597, 64
    %v1623 = vpop.permute.xlu0 %1622
    %1624 = vrot.lane.b32.xlu0 %v1598, 64
    %v1625 = vpop.permute.xlu0 %1624
    %1626 = vrot.lane.b32.xlu0 %v1599, 64
    %v1627 = vpop.permute.xlu0 %1626
    %1628 = vrot.lane.b32.xlu0 %v1600, 64
    %v1629 = vpop.permute.xlu0 %1628
    %1630 = vrot.lane.b32.xlu0 %v1601, 64
    %v1631 = vpop.permute.xlu0 %1630
    %1632 = vrot.lane.b32.xlu0 %v1602, 64
    %v1633 = vpop.permute.xlu0 %1632
    %1634 = vrot.lane.b32.xlu0 %v1603, 64
    %v1635 = vpop.permute.xlu0 %1634
    %v1644 = vmul.f32 %v1581, %v1621
    %v1645 = vmul.f32 %v1583, %v1623
    %v1646 = vmul.f32 %v1585, %v1625
    %v1647 = vmul.f32 %v1587, %v1627
    %v1648 = vmul.f32 %v1589, %v1629
    %v1649 = vmul.f32 %v1591, %v1631
    %v1650 = vmul.f32 %v1593, %v1633
    %v1651 = vmul.f32 %v1595, %v1635
    %1660 = vrot.lane.b32.xlu0 %v1644, 32
    %v1661 = vpop.permute.xlu0 %1660
    %1662 = vrot.lane.b32.xlu0 %v1645, 32
    %v1663 = vpop.permute.xlu0 %1662
    %1664 = vrot.lane.b32.xlu0 %v1646, 32
    %v1665 = vpop.permute.xlu0 %1664
    %1666 = vrot.lane.b32.xlu0 %v1647, 32
    %v1667 = vpop.permute.xlu0 %1666
    %1668 = vrot.lane.b32.xlu0 %v1648, 32
    %v1669 = vpop.permute.xlu0 %1668
    %1670 = vrot.lane.b32.xlu0 %v1649, 32
    %v1671 = vpop.permute.xlu0 %1670
    %1672 = vrot.lane.b32.xlu0 %v1650, 32
    %v1673 = vpop.permute.xlu0 %1672
    %1674 = vrot.lane.b32.xlu0 %v1651, 32
    %v1675 = vpop.permute.xlu0 %1674
    %v1684 = vadd.f32 %v1604, %v1661
    %v1685 = vadd.f32 %v1605, %v1663
    %v1686 = vadd.f32 %v1606, %v1665
    %v1687 = vadd.f32 %v1607, %v1667
    %v1688 = vadd.f32 %v1608, %v1669
    %v1689 = vadd.f32 %v1609, %v1671
    %v1690 = vadd.f32 %v1610, %v1673
    %v1691 = vadd.f32 %v1611, %v1675
    %v1692 = vtanh.pop %v1684
    %v1693 = vtanh.pop %v1685
    %v1694 = vtanh.pop %v1686
    %v1695 = vtanh.pop %v1687
    %v1696 = vtanh.pop %v1688
    %v1697 = vtanh.pop %v1689
    %v1698 = vtanh.pop %v1690
    %v1699 = vtanh.pop %v1691
    %1708 = vrot.lane.b32.xlu0 %v1692, 64
    %v1709 = vpop.permute.xlu0 %1708
    %1710 = vrot.lane.b32.xlu0 %v1693, 64
    %v1711 = vpop.permute.xlu0 %1710
    %1712 = vrot.lane.b32.xlu0 %v1694, 64
    %v1713 = vpop.permute.xlu0 %1712
    %1714 = vrot.lane.b32.xlu0 %v1695, 64
    %v1715 = vpop.permute.xlu0 %1714
    %1716 = vrot.lane.b32.xlu0 %v1696, 64
    %v1717 = vpop.permute.xlu0 %1716
    %1718 = vrot.lane.b32.xlu0 %v1697, 64
    %v1719 = vpop.permute.xlu0 %1718
    %1720 = vrot.lane.b32.xlu0 %v1698, 64
    %v1721 = vpop.permute.xlu0 %1720
    %1722 = vrot.lane.b32.xlu0 %v1699, 64
    %v1723 = vpop.permute.xlu0 %1722
    %v1732 = vmul.f32 %v1581, %v1709
    %v1733 = vmul.f32 %v1583, %v1711
    %v1734 = vmul.f32 %v1585, %v1713
    %v1735 = vmul.f32 %v1587, %v1715
    %v1736 = vmul.f32 %v1589, %v1717
    %v1737 = vmul.f32 %v1591, %v1719
    %v1738 = vmul.f32 %v1593, %v1721
    %v1739 = vmul.f32 %v1595, %v1723
    %1748 = vrot.lane.b32.xlu0 %v1732, 32
    %v1749 = vpop.permute.xlu0 %1748
    %1750 = vrot.lane.b32.xlu0 %v1733, 32
    %v1751 = vpop.permute.xlu0 %1750
    %1752 = vrot.lane.b32.xlu0 %v1734, 32
    %v1753 = vpop.permute.xlu0 %1752
    %1754 = vrot.lane.b32.xlu0 %v1735, 32
    %v1755 = vpop.permute.xlu0 %1754
    %1756 = vrot.lane.b32.xlu0 %v1736, 32
    %v1757 = vpop.permute.xlu0 %1756
    %1758 = vrot.lane.b32.xlu0 %v1737, 32
    %v1759 = vpop.permute.xlu0 %1758
    %1760 = vrot.lane.b32.xlu0 %v1738, 32
    %v1761 = vpop.permute.xlu0 %1760
    %1762 = vrot.lane.b32.xlu0 %v1739, 32
    %v1763 = vpop.permute.xlu0 %1762
    %s1772 = scalar_lea.vmem [#allocation2], 192
    %1773 = vst.msk [vmem:[%s1772] sm:$0xff] %vm55, %v1749
    %1774 = vst.msk [vmem:[%s1772 + $0x8] sm:$0xff] %vm55, %v1751
    %1775 = vst.msk [vmem:[%s1772 + $0x10] sm:$0xff] %vm55, %v1753
    %1776 = vst.msk [vmem:[%s1772 + $0x18] sm:$0xff] %vm55, %v1755
    %1777 = vst.msk [vmem:[%s1772 + $0x20] sm:$0xff] %vm55, %v1757
    %1778 = vst.msk [vmem:[%s1772 + $0x28] sm:$0xff] %vm55, %v1759
    %1779 = vst.msk [vmem:[%s1772 + $0x30] sm:$0xff] %vm55, %v1761
    %1780 = vst.msk [vmem:[%s1772 + $0x38] sm:$0xff] %vm55, %v1763
    %vm1781 = vcmp.gt.s32.totalorder %v39, 3
    %vm1782 = vcmp.gt.s32.totalorder %v40, 3
    %vm1783 = vcmp.gt.s32.totalorder %v41, 3
    %vm1784 = vcmp.gt.s32.totalorder %v42, 3
    %vm1785 = vcmp.gt.s32.totalorder %v43, 3
    %vm1786 = vcmp.gt.s32.totalorder %v44, 3
    %vm1787 = vcmp.gt.s32.totalorder %v45, 3
    %vm1788 = vcmp.gt.s32.totalorder %v46, 3
    %v1789 = vsel %vm1781, 1, 0
    %v1790 = vsel %vm1782, 1, 0
    %v1791 = vsel %vm1783, 1, 0
    %v1792 = vsel %vm1784, 1, 0
    %v1793 = vsel %vm1785, 1, 0
    %v1794 = vsel %vm1786, 1, 0
    %v1795 = vsel %vm1787, 1, 0
    %v1796 = vsel %vm1788, 1, 0
    %1797 = vset.pattern.permute.xlu0 0
    %1798 = vperm.xlu0 %1797, %v1789
    %v1799 = vpop.permute.xlu0 %1798
    %1800 = vset.pattern.permute.xlu0 0
    %1801 = vperm.xlu0 %1800, %v1790
    %v1802 = vpop.permute.xlu0 %1801
    %1803 = vset.pattern.permute.xlu0 0
    %1804 = vperm.xlu0 %1803, %v1791
    %v1805 = vpop.permute.xlu0 %1804
    %1806 = vset.pattern.permute.xlu0 0
    %1807 = vperm.xlu0 %1806, %v1792
    %v1808 = vpop.permute.xlu0 %1807
    %1809 = vset.pattern.permute.xlu0 0
    %1810 = vperm.xlu0 %1809, %v1793
    %v1811 = vpop.permute.xlu0 %1810
    %1812 = vset.pattern.permute.xlu0 0
    %1813 = vperm.xlu0 %1812, %v1794
    %v1814 = vpop.permute.xlu0 %1813
    %1815 = vset.pattern.permute.xlu0 0
    %1816 = vperm.xlu0 %1815, %v1795
    %v1817 = vpop.permute.xlu0 %1816
    %1818 = vset.pattern.permute.xlu0 0
    %1819 = vperm.xlu0 %1818, %v1796
    %v1820 = vpop.permute.xlu0 %1819
    %vm1821 = vcmp.eq.s32.totalorder %v1799, 1
    %vm1822 = vcmp.eq.s32.totalorder %v1802, 1
    %vm1823 = vcmp.eq.s32.totalorder %v1805, 1
    %vm1824 = vcmp.eq.s32.totalorder %v1808, 1
    %vm1825 = vcmp.eq.s32.totalorder %v1811, 1
    %vm1826 = vcmp.eq.s32.totalorder %v1814, 1
    %vm1827 = vcmp.eq.s32.totalorder %v1817, 1
    %vm1828 = vcmp.eq.s32.totalorder %v1820, 1
    %v1829 = vsel %vm1821, %v1732, %v1370
    %v1830 = vsel %vm1822, %v1733, %v1371
    %v1831 = vsel %vm1823, %v1734, %v1372
    %v1832 = vsel %vm1824, %v1735, %v1373
    %v1833 = vsel %vm1825, %v1736, %v1374
    %v1834 = vsel %vm1826, %v1737, %v1375
    %v1835 = vsel %vm1827, %v1738, %v1376
    %v1836 = vsel %vm1828, %v1739, %v1377
    %v1837 = vsel %vm1821, %v1684, %v1378
    %v1838 = vsel %vm1822, %v1685, %v1379
    %v1839 = vsel %vm1823, %v1686, %v1380
    %v1840 = vsel %vm1824, %v1687, %v1381
    %v1841 = vsel %vm1825, %v1688, %v1382
    %v1842 = vsel %vm1826, %v1689, %v1383
    %v1843 = vsel %vm1827, %v1690, %v1384
    %v1844 = vsel %vm1828, %v1691, %v1385
    %s1845 = scalar_lea.vmem [#allocation3], 256
    %v1846 = vld [vmem:[%s1845] sm:$0xff]
    %v1847 = vld [vmem:[%s1845 + $0x8] sm:$0xff]
    %v1848 = vld [vmem:[%s1845 + $0x10] sm:$0xff]
    %v1849 = vld [vmem:[%s1845 + $0x18] sm:$0xff]
    %v1850 = vld [vmem:[%s1845 + $0x20] sm:$0xff]
    %v1851 = vld [vmem:[%s1845 + $0x28] sm:$0xff]
    %v1852 = vld [vmem:[%s1845 + $0x30] sm:$0xff]
    %v1853 = vld [vmem:[%s1845 + $0x38] sm:$0xff]
    %1862 = vrot.lane.b32.xlu0 %v1829, 32
    %v1863 = vpop.permute.xlu0 %1862
    %1864 = vrot.lane.b32.xlu0 %v1830, 32
    %v1865 = vpop.permute.xlu0 %1864
    %1866 = vrot.lane.b32.xlu0 %v1831, 32
    %v1867 = vpop.permute.xlu0 %1866
    %1868 = vrot.lane.b32.xlu0 %v1832, 32
    %v1869 = vpop.permute.xlu0 %1868
    %1870 = vrot.lane.b32.xlu0 %v1833, 32
    %v1871 = vpop.permute.xlu0 %1870
    %1872 = vrot.lane.b32.xlu0 %v1834, 32
    %v1873 = vpop.permute.xlu0 %1872
    %1874 = vrot.lane.b32.xlu0 %v1835, 32
    %v1875 = vpop.permute.xlu0 %1874
    %1876 = vrot.lane.b32.xlu0 %v1836, 32
    %v1877 = vpop.permute.xlu0 %1876
    %v1878 = vsel %vm55, %v1863, 0
    %v1880 = vsel %vm55, %v1865, 0
    %v1882 = vsel %vm55, %v1867, 0
    %v1884 = vsel %vm55, %v1869, 0
    %v1886 = vsel %vm55, %v1871, 0
    %v1888 = vsel %vm55, %v1873, 0
    %v1890 = vsel %vm55, %v1875, 0
    %v1892 = vsel %vm55, %v1877, 0
    %1894 = vmatprep.subr.mxu0 0.0
    %1895 = vmatpush1.msra.mxu0 %v35
    %1896 = vmatprep.subr.mxu0 0.0
    %1897 = vmatpush1.msra.mxu0 %v36
    %1898 = vmatprep.subr.mxu0 0.0
    %1899 = vmatpush1.msra.mxu0 %v37
    %1900 = vmatprep.subr.mxu0 0.0
    %1901 = vmatpush1.msra.mxu0 %v38
    %1902 = vmatprep.subr.mxu0 0.0
    %1903 = vmatpush1.msra.mxu0 0.0
    %1904 = vmatprep.subr.mxu0 0.0
    %1905 = vmatpush1.msra.mxu0 0.0
    %1906 = vmatprep.subr.mxu0 0.0
    %1907 = vmatpush1.msra.mxu0 0.0
    %1908 = vmatprep.subr.mxu0 0.0
    %1909 = vmatpush1.msra.mxu0 0.0
    %1910 = vmatprep.subr.mxu0 0.0
    %1911 = vmatpush1.msra.mxu0 0.0
    %1912 = vmatprep.subr.mxu0 0.0
    %1913 = vmatpush1.msra.mxu0 0.0
    %1914 = vmatprep.subr.mxu0 0.0
    %1915 = vmatpush1.msra.mxu0 0.0
    %1916 = vmatprep.subr.mxu0 0.0
    %1917 = vmatpush1.msra.mxu0 0.0
    %1918 = vmatprep.subr.mxu0 0.0
    %1919 = vmatpush1.msra.mxu0 0.0
    %1920 = vmatprep.subr.mxu0 0.0
    %1921 = vmatpush1.msra.mxu0 0.0
    %1922 = vmatprep.subr.mxu0 0.0
    %1923 = vmatpush1.msra.mxu0 0.0
    %1924 = vmatprep.subr.mxu0 0.0
    %1925 = vmatpush1.msra.mxu0 0.0
    %1926 = vmatprep.subr.mxu0 0.0
    %1927 = vmatpush1.msra.mxu0 0.0
    %1928 = vmatprep.subr.mxu0 0.0
    %1929 = vmatpush1.msra.mxu0 0.0
    %1930 = vmatprep.subr.mxu0 0.0
    %1931 = vmatpush1.msra.mxu0 0.0
    %1932 = vmatprep.subr.mxu0 0.0
    %1933 = vmatpush1.msra.mxu0 0.0
    %1934 = vmatprep.subr.mxu0 0.0
    %1935 = vmatpush1.msra.mxu0 0.0
    %1936 = vmatprep.subr.mxu0 0.0
    %1937 = vmatpush1.msra.mxu0 0.0
    %1938 = vmatprep.subr.mxu0 0.0
    %1939 = vmatpush1.msra.mxu0 0.0
    %1940 = vmatprep.subr.mxu0 0.0
    %1941 = vmatpush1.msra.mxu0 0.0
    %1942 = vmatprep.subr.mxu0 0.0
    %1943 = vmatpush1.msra.mxu0 0.0
    %1944 = vmatprep.subr.mxu0 0.0
    %1945 = vmatpush1.msra.mxu0 0.0
    %1946 = vmatprep.subr.mxu0 0.0
    %1947 = vmatpush1.msra.mxu0 0.0
    %1948 = vmatprep.subr.mxu0 0.0
    %1949 = vmatpush1.msra.mxu0 0.0
    %1950 = vmatprep.subr.mxu0 0.0
    %1951 = vmatpush1.msra.mxu0 0.0
    %1952 = vmatprep.subr.mxu0 0.0
    %1953 = vmatpush1.msra.mxu0 0.0
    %1954 = vmatprep.subr.mxu0 0.0
    %1955 = vmatpush1.msra.mxu0 0.0
    %1956 = vmatprep.subr.mxu0 0.0
    %1957 = vmatpush1.msra.mxu0 0.0
    %1958 = vmatprep.mubr.f32.mxu0 0.0
    %1959 = vmatmul.mubr.f32.gmra.mrb[0].mxu0 %v1878
    %v1960 = vpop.f32.mrb[0].mxu0
    %v1961 = vadd.f32 0.0, %v1960
    %v1962 = vpop.f32.mrb[0].mxu0
    %1963 = vmatprep.mubr.f32.mxu0 0.0
    %1964 = vmatmul.mubr.f32.gmra.mrb[0].mxu0 %v1880
    %v1965 = vpop.f32.mrb[0].mxu0
    %v1966 = vadd.f32 0.0, %v1965
    %v1967 = vpop.f32.mrb[0].mxu0
    %1968 = vmatprep.mubr.f32.mxu0 0.0
    %1969 = vmatmul.mubr.f32.gmra.mrb[0].mxu0 %v1882
    %v1970 = vpop.f32.mrb[0].mxu0
    %v1971 = vadd.f32 0.0, %v1970
    %v1972 = vpop.f32.mrb[0].mxu0
    %1973 = vmatprep.mubr.f32.mxu0 0.0
    %1974 = vmatmul.mubr.f32.gmra.mrb[0].mxu0 %v1884
    %v1975 = vpop.f32.mrb[0].mxu0
    %v1976 = vadd.f32 0.0, %v1975
    %v1977 = vpop.f32.mrb[0].mxu0
    %1978 = vmatprep.mubr.f32.mxu0 0.0
    %1979 = vmatmul.mubr.f32.gmra.mrb[0].mxu0 %v1886
    %v1980 = vpop.f32.mrb[0].mxu0
    %v1981 = vadd.f32 0.0, %v1980
    %v1982 = vpop.f32.mrb[0].mxu0
    %1983 = vmatprep.mubr.f32.mxu0 0.0
    %1984 = vmatmul.mubr.f32.gmra.mrb[0].mxu0 %v1888
    %v1985 = vpop.f32.mrb[0].mxu0
    %v1986 = vadd.f32 0.0, %v1985
    %v1987 = vpop.f32.mrb[0].mxu0
    %1988 = vmatprep.mubr.f32.mxu0 0.0
    %1989 = vmatmul.mubr.f32.gmra.mrb[0].mxu0 %v1890
    %v1990 = vpop.f32.mrb[0].mxu0
    %v1991 = vadd.f32 0.0, %v1990
    %v1992 = vpop.f32.mrb[0].mxu0
    %1993 = vmatprep.mubr.f32.mxu0 0.0
    %1994 = vmatmul.mubr.f32.gmra.mrb[0].mxu0 %v1892
    %v1995 = vpop.f32.mrb[0].mxu0
    %v1996 = vadd.f32 0.0, %v1995
    %v1997 = vpop.f32.mrb[0].mxu0
    %1998 = vdwg.mxu0
    %v1999 = vadd.f32 %v1846, %v1961
    %v2000 = vadd.f32 %v1847, %v1966
    %v2001 = vadd.f32 %v1848, %v1971
    %v2002 = vadd.f32 %v1849, %v1976
    %v2003 = vadd.f32 %v1850, %v1981
    %v2004 = vadd.f32 %v1851, %v1986
    %v2005 = vadd.f32 %v1852, %v1991
    %v2006 = vadd.f32 %v1853, %v1996
    %v2007 = vxor.u32 %v1999, 2147483648
    %v2008 = vxor.u32 %v2000, 2147483648
    %v2009 = vxor.u32 %v2001, 2147483648
    %v2010 = vxor.u32 %v2002, 2147483648
    %v2011 = vxor.u32 %v2003, 2147483648
    %v2012 = vxor.u32 %v2004, 2147483648
    %v2013 = vxor.u32 %v2005, 2147483648
    %v2014 = vxor.u32 %v2006, 2147483648
    %v2015 = vmul.f32 %v2007, 1.442695
    %v2016 = vpow.pop %v2015
    %v2017 = vmul.f32 %v2008, 1.442695
    %v2018 = vpow.pop %v2017
    %v2019 = vmul.f32 %v2009, 1.442695
    %v2020 = vpow.pop %v2019
    %v2021 = vmul.f32 %v2010, 1.442695
    %v2022 = vpow.pop %v2021
    %v2023 = vmul.f32 %v2011, 1.442695
    %v2024 = vpow.pop %v2023
    %v2025 = vmul.f32 %v2012, 1.442695
    %v2026 = vpow.pop %v2025
    %v2027 = vmul.f32 %v2013, 1.442695
    %v2028 = vpow.pop %v2027
    %v2029 = vmul.f32 %v2014, 1.442695
    %v2030 = vpow.pop %v2029
    %v2031 = vadd.f32 %v2016, 1.0
    %v2032 = vadd.f32 %v2018, 1.0
    %v2033 = vadd.f32 %v2020, 1.0
    %v2034 = vadd.f32 %v2022, 1.0
    %v2035 = vadd.f32 %v2024, 1.0
    %v2036 = vadd.f32 %v2026, 1.0
    %v2037 = vadd.f32 %v2028, 1.0
    %v2038 = vadd.f32 %v2030, 1.0
    %v2039 = vrcp.pop %v2031
    %v2040 = vmul.f32 1.0, %v2039
    %v2041 = vrcp.pop %v2032
    %v2042 = vmul.f32 1.0, %v2041
    %v2043 = vrcp.pop %v2033
    %v2044 = vmul.f32 1.0, %v2043
    %v2045 = vrcp.pop %v2034
    %v2046 = vmul.f32 1.0, %v2045
    %v2047 = vrcp.pop %v2035
    %v2048 = vmul.f32 1.0, %v2047
    %v2049 = vrcp.pop %v2036
    %v2050 = vmul.f32 1.0, %v2049
    %v2051 = vrcp.pop %v2037
    %v2052 = vmul.f32 1.0, %v2051
    %v2053 = vrcp.pop %v2038
    %v2054 = vmul.f32 1.0, %v2053
    %v2055 = vtanh.pop %v1999
    %v2056 = vtanh.pop %v2000
    %v2057 = vtanh.pop %v2001
    %v2058 = vtanh.pop %v2002
    %v2059 = vtanh.pop %v2003
    %v2060 = vtanh.pop %v2004
    %v2061 = vtanh.pop %v2005
    %v2062 = vtanh.pop %v2006
    %v2063 = vmul.f32 %v2040, %v1837
    %v2064 = vmul.f32 %v2042, %v1838
    %v2065 = vmul.f32 %v2044, %v1839
    %v2066 = vmul.f32 %v2046, %v1840
    %v2067 = vmul.f32 %v2048, %v1841
    %v2068 = vmul.f32 %v2050, %v1842
    %v2069 = vmul.f32 %v2052, %v1843
    %v2070 = vmul.f32 %v2054, %v1844
    %2079 = vrot.lane.b32.xlu0 %v2055, 64
    %v2080 = vpop.permute.xlu0 %2079
    %2081 = vrot.lane.b32.xlu0 %v2056, 64
    %v2082 = vpop.permute.xlu0 %2081
    %2083 = vrot.lane.b32.xlu0 %v2057, 64
    %v2084 = vpop.permute.xlu0 %2083
    %2085 = vrot.lane.b32.xlu0 %v2058, 64
    %v2086 = vpop.permute.xlu0 %2085
    %2087 = vrot.lane.b32.xlu0 %v2059, 64
    %v2088 = vpop.permute.xlu0 %2087
    %2089 = vrot.lane.b32.xlu0 %v2060, 64
    %v2090 = vpop.permute.xlu0 %2089
    %2091 = vrot.lane.b32.xlu0 %v2061, 64
    %v2092 = vpop.permute.xlu0 %2091
    %2093 = vrot.lane.b32.xlu0 %v2062, 64
    %v2094 = vpop.permute.xlu0 %2093
    %v2103 = vmul.f32 %v2040, %v2080
    %v2104 = vmul.f32 %v2042, %v2082
    %v2105 = vmul.f32 %v2044, %v2084
    %v2106 = vmul.f32 %v2046, %v2086
    %v2107 = vmul.f32 %v2048, %v2088
    %v2108 = vmul.f32 %v2050, %v2090
    %v2109 = vmul.f32 %v2052, %v2092
    %v2110 = vmul.f32 %v2054, %v2094
    %2119 = vrot.lane.b32.xlu0 %v2103, 32
    %v2120 = vpop.permute.xlu0 %2119
    %2121 = vrot.lane.b32.xlu0 %v2104, 32
    %v2122 = vpop.permute.xlu0 %2121
    %2123 = vrot.lane.b32.xlu0 %v2105, 32
    %v2124 = vpop.permute.xlu0 %2123
    %2125 = vrot.lane.b32.xlu0 %v2106, 32
    %v2126 = vpop.permute.xlu0 %2125
    %2127 = vrot.lane.b32.xlu0 %v2107, 32
    %v2128 = vpop.permute.xlu0 %2127
    %2129 = vrot.lane.b32.xlu0 %v2108, 32
    %v2130 = vpop.permute.xlu0 %2129
    %2131 = vrot.lane.b32.xlu0 %v2109, 32
    %v2132 = vpop.permute.xlu0 %2131
    %2133 = vrot.lane.b32.xlu0 %v2110, 32
    %v2134 = vpop.permute.xlu0 %2133
    %v2143 = vadd.f32 %v2063, %v2120
    %v2144 = vadd.f32 %v2064, %v2122
    %v2145 = vadd.f32 %v2065, %v2124
    %v2146 = vadd.f32 %v2066, %v2126
    %v2147 = vadd.f32 %v2067, %v2128
    %v2148 = vadd.f32 %v2068, %v2130
    %v2149 = vadd.f32 %v2069, %v2132
    %v2150 = vadd.f32 %v2070, %v2134
    %v2151 = vtanh.pop %v2143
    %v2152 = vtanh.pop %v2144
    %v2153 = vtanh.pop %v2145
    %v2154 = vtanh.pop %v2146
    %v2155 = vtanh.pop %v2147
    %v2156 = vtanh.pop %v2148
    %v2157 = vtanh.pop %v2149
    %v2158 = vtanh.pop %v2150
    %2167 = vrot.lane.b32.xlu0 %v2151, 64
    %v2168 = vpop.permute.xlu0 %2167
    %2169 = vrot.lane.b32.xlu0 %v2152, 64
    %v2170 = vpop.permute.xlu0 %2169
    %2171 = vrot.lane.b32.xlu0 %v2153, 64
    %v2172 = vpop.permute.xlu0 %2171
    %2173 = vrot.lane.b32.xlu0 %v2154, 64
    %v2174 = vpop.permute.xlu0 %2173
    %2175 = vrot.lane.b32.xlu0 %v2155, 64
    %v2176 = vpop.permute.xlu0 %2175
    %2177 = vrot.lane.b32.xlu0 %v2156, 64
    %v2178 = vpop.permute.xlu0 %2177
    %2179 = vrot.lane.b32.xlu0 %v2157, 64
    %v2180 = vpop.permute.xlu0 %2179
    %2181 = vrot.lane.b32.xlu0 %v2158, 64
    %v2182 = vpop.permute.xlu0 %2181
    %v2191 = vmul.f32 %v2040, %v2168
    %v2192 = vmul.f32 %v2042, %v2170
    %v2193 = vmul.f32 %v2044, %v2172
    %v2194 = vmul.f32 %v2046, %v2174
    %v2195 = vmul.f32 %v2048, %v2176
    %v2196 = vmul.f32 %v2050, %v2178
    %v2197 = vmul.f32 %v2052, %v2180
    %v2198 = vmul.f32 %v2054, %v2182
    %2207 = vrot.lane.b32.xlu0 %v2191, 32
    %v2208 = vpop.permute.xlu0 %2207
    %2209 = vrot.lane.b32.xlu0 %v2192, 32
    %v2210 = vpop.permute.xlu0 %2209
    %2211 = vrot.lane.b32.xlu0 %v2193, 32
    %v2212 = vpop.permute.xlu0 %2211
    %2213 = vrot.lane.b32.xlu0 %v2194, 32
    %v2214 = vpop.permute.xlu0 %2213
    %2215 = vrot.lane.b32.xlu0 %v2195, 32
    %v2216 = vpop.permute.xlu0 %2215
    %2217 = vrot.lane.b32.xlu0 %v2196, 32
    %v2218 = vpop.permute.xlu0 %2217
    %2219 = vrot.lane.b32.xlu0 %v2197, 32
    %v2220 = vpop.permute.xlu0 %2219
    %2221 = vrot.lane.b32.xlu0 %v2198, 32
    %v2222 = vpop.permute.xlu0 %2221
    %s2231 = scalar_lea.vmem [#allocation2], 256
    %2232 = vst.msk [vmem:[%s2231] sm:$0xff] %vm55, %v2208
    %2233 = vst.msk [vmem:[%s2231 + $0x8] sm:$0xff] %vm55, %v2210
    %2234 = vst.msk [vmem:[%s2231 + $0x10] sm:$0xff] %vm55, %v2212
    %2235 = vst.msk [vmem:[%s2231 + $0x18] sm:$0xff] %vm55, %v2214
    %2236 = vst.msk [vmem:[%s2231 + $0x20] sm:$0xff] %vm55, %v2216
    %2237 = vst.msk [vmem:[%s2231 + $0x28] sm:$0xff] %vm55, %v2218
    %2238 = vst.msk [vmem:[%s2231 + $0x30] sm:$0xff] %vm55, %v2220
    %2239 = vst.msk [vmem:[%s2231 + $0x38] sm:$0xff] %vm55, %v2222
    %vm2240 = vcmp.gt.s32.totalorder %v39, 4
    %vm2241 = vcmp.gt.s32.totalorder %v40, 4
    %vm2242 = vcmp.gt.s32.totalorder %v41, 4
    %vm2243 = vcmp.gt.s32.totalorder %v42, 4
    %vm2244 = vcmp.gt.s32.totalorder %v43, 4
    %vm2245 = vcmp.gt.s32.totalorder %v44, 4
    %vm2246 = vcmp.gt.s32.totalorder %v45, 4
    %vm2247 = vcmp.gt.s32.totalorder %v46, 4
    %v2248 = vsel %vm2240, 1, 0
    %v2249 = vsel %vm2241, 1, 0
    %v2250 = vsel %vm2242, 1, 0
    %v2251 = vsel %vm2243, 1, 0
    %v2252 = vsel %vm2244, 1, 0
    %v2253 = vsel %vm2245, 1, 0
    %v2254 = vsel %vm2246, 1, 0
    %v2255 = vsel %vm2247, 1, 0
    %2256 = vset.pattern.permute.xlu0 0
    %2257 = vperm.xlu0 %2256, %v2248
    %v2258 = vpop.permute.xlu0 %2257
    %2259 = vset.pattern.permute.xlu0 0
    %2260 = vperm.xlu0 %2259, %v2249
    %v2261 = vpop.permute.xlu0 %2260
    %2262 = vset.pattern.permute.xlu0 0
    %2263 = vperm.xlu0 %2262, %v2250
    %v2264 = vpop.permute.xlu0 %2263
    %2265 = vset.pattern.permute.xlu0 0
    %2266 = vperm.xlu0 %2265, %v2251
    %v2267 = vpop.permute.xlu0 %2266
    %2268 = vset.pattern.permute.xlu0 0
    %2269 = vperm.xlu0 %2268, %v2252
    %v2270 = vpop.permute.xlu0 %2269
    %2271 = vset.pattern.permute.xlu0 0
    %2272 = vperm.xlu0 %2271, %v2253
    %v2273 = vpop.permute.xlu0 %2272
    %2274 = vset.pattern.permute.xlu0 0
    %2275 = vperm.xlu0 %2274, %v2254
    %v2276 = vpop.permute.xlu0 %2275
    %2277 = vset.pattern.permute.xlu0 0
    %2278 = vperm.xlu0 %2277, %v2255
    %v2279 = vpop.permute.xlu0 %2278
    %vm2280 = vcmp.eq.s32.totalorder %v2258, 1
    %vm2281 = vcmp.eq.s32.totalorder %v2261, 1
    %vm2282 = vcmp.eq.s32.totalorder %v2264, 1
    %vm2283 = vcmp.eq.s32.totalorder %v2267, 1
    %vm2284 = vcmp.eq.s32.totalorder %v2270, 1
    %vm2285 = vcmp.eq.s32.totalorder %v2273, 1
    %vm2286 = vcmp.eq.s32.totalorder %v2276, 1
    %vm2287 = vcmp.eq.s32.totalorder %v2279, 1
    %v2288 = vsel %vm2280, %v2191, %v1829
    %v2289 = vsel %vm2281, %v2192, %v1830
    %v2290 = vsel %vm2282, %v2193, %v1831
    %v2291 = vsel %vm2283, %v2194, %v1832
    %v2292 = vsel %vm2284, %v2195, %v1833
    %v2293 = vsel %vm2285, %v2196, %v1834
    %v2294 = vsel %vm2286, %v2197, %v1835
    %v2295 = vsel %vm2287, %v2198, %v1836
    %v2296 = vsel %vm2280, %v2143, %v1837
    %v2297 = vsel %vm2281, %v2144, %v1838
    %v2298 = vsel %vm2282, %v2145, %v1839
    %v2299 = vsel %vm2283, %v2146, %v1840
    %v2300 = vsel %vm2284, %v2147, %v1841
    %v2301 = vsel %vm2285, %v2148, %v1842
    %v2302 = vsel %vm2286, %v2149, %v1843
    %v2303 = vsel %vm2287, %v2150, %v1844
    %s2304 = scalar_lea.vmem [#allocation3], 320
    %v2305 = vld [vmem:[%s2304] sm:$0xff]
    %v2306 = vld [vmem:[%s2304 + $0x8] sm:$0xff]
    %v2307 = vld [vmem:[%s2304 + $0x10] sm:$0xff]
    %v2308 = vld [vmem:[%s2304 + $0x18] sm:$0xff]
    %v2309 = vld [vmem:[%s2304 + $0x20] sm:$0xff]
    %v2310 = vld [vmem:[%s2304 + $0x28] sm:$0xff]
    %v2311 = vld [vmem:[%s2304 + $0x30] sm:$0xff]
    %v2312 = vld [vmem:[%s2304 + $0x38] sm:$0xff]
    %2321 = vrot.lane.b32.xlu0 %v2288, 32
    %v2322 = vpop.permute.xlu0 %2321
    %2323 = vrot.lane.b32.xlu0 %v2289, 32
    %v2324 = vpop.permute.xlu0 %2323
    %2325 = vrot.lane.b32.xlu0 %v2290, 32
    %v2326 = vpop.permute.xlu0 %2325
    %2327 = vrot.lane.b32.xlu0 %v2291, 32
    %v2328 = vpop.permute.xlu0 %2327
    %2329 = vrot.lane.b32.xlu0 %v2292, 32
    %v2330 = vpop.permute.xlu0 %2329
    %2331 = vrot.lane.b32.xlu0 %v2293, 32
    %v2332 = vpop.permute.xlu0 %2331
    %2333 = vrot.lane.b32.xlu0 %v2294, 32
    %v2334 = vpop.permute.xlu0 %2333
    %2335 = vrot.lane.b32.xlu0 %v2295, 32
    %v2336 = vpop.permute.xlu0 %2335
    %v2337 = vsel %vm55, %v2322, 0
    %v2339 = vsel %vm55, %v2324, 0
    %v2341 = vsel %vm55, %v2326, 0
    %v2343 = vsel %vm55, %v2328, 0
    %v2345 = vsel %vm55, %v2330, 0
    %v2347 = vsel %vm55, %v2332, 0
    %v2349 = vsel %vm55, %v2334, 0
    %v2351 = vsel %vm55, %v2336, 0
    %2353 = vmatprep.subr.mxu0 0.0
    %2354 = vmatpush1.msra.mxu0 %v35
    %2355 = vmatprep.subr.mxu0 0.0
    %2356 = vmatpush1.msra.mxu0 %v36
    %2357 = vmatprep.subr.mxu0 0.0
    %2358 = vmatpush1.msra.mxu0 %v37
    %2359 = vmatprep.subr.mxu0 0.0
    %2360 = vmatpush1.msra.mxu0 %v38
    %2361 = vmatprep.subr.mxu0 0.0
    %2362 = vmatpush1.msra.mxu0 0.0
    %2363 = vmatprep.subr.mxu0 0.0
    %2364 = vmatpush1.msra.mxu0 0.0
    %2365 = vmatprep.subr.mxu0 0.0
    %2366 = vmatpush1.msra.mxu0 0.0
    %2367 = vmatprep.subr.mxu0 0.0
    %2368 = vmatpush1.msra.mxu0 0.0
    %2369 = vmatprep.subr.mxu0 0.0
    %2370 = vmatpush1.msra.mxu0 0.0
    %2371 = vmatprep.subr.mxu0 0.0
    %2372 = vmatpush1.msra.mxu0 0.0
    %2373 = vmatprep.subr.mxu0 0.0
    %2374 = vmatpush1.msra.mxu0 0.0
    %2375 = vmatprep.subr.mxu0 0.0
    %2376 = vmatpush1.msra.mxu0 0.0
    %2377 = vmatprep.subr.mxu0 0.0
    %2378 = vmatpush1.msra.mxu0 0.0
    %2379 = vmatprep.subr.mxu0 0.0
    %2380 = vmatpush1.msra.mxu0 0.0
    %2381 = vmatprep.subr.mxu0 0.0
    %2382 = vmatpush1.msra.mxu0 0.0
    %2383 = vmatprep.subr.mxu0 0.0
    %2384 = vmatpush1.msra.mxu0 0.0
    %2385 = vmatprep.subr.mxu0 0.0
    %2386 = vmatpush1.msra.mxu0 0.0
    %2387 = vmatprep.subr.mxu0 0.0
    %2388 = vmatpush1.msra.mxu0 0.0
    %2389 = vmatprep.subr.mxu0 0.0
    %2390 = vmatpush1.msra.mxu0 0.0
    %2391 = vmatprep.subr.mxu0 0.0
    %2392 = vmatpush1.msra.mxu0 0.0
    %2393 = vmatprep.subr.mxu0 0.0
    %2394 = vmatpush1.msra.mxu0 0.0
    %2395 = vmatprep.subr.mxu0 0.0
    %2396 = vmatpush1.msra.mxu0 0.0
    %2397 = vmatprep.subr.mxu0 0.0
    %2398 = vmatpush1.msra.mxu0 0.0
    %2399 = vmatprep.subr.mxu0 0.0
    %2400 = vmatpush1.msra.mxu0 0.0
    %2401 = vmatprep.subr.mxu0 0.0
    %2402 = vmatpush1.msra.mxu0 0.0
    %2403 = vmatprep.subr.mxu0 0.0
    %2404 = vmatpush1.msra.mxu0 0.0
    %2405 = vmatprep.subr.mxu0 0.0
    %2406 = vmatpush1.msra.mxu0 0.0
    %2407 = vmatprep.subr.mxu0 0.0
    %2408 = vmatpush1.msra.mxu0 0.0
    %2409 = vmatprep.subr.mxu0 0.0
    %2410 = vmatpush1.msra.mxu0 0.0
    %2411 = vmatprep.subr.mxu0 0.0
    %2412 = vmatpush1.msra.mxu0 0.0
    %2413 = vmatprep.subr.mxu0 0.0
    %2414 = vmatpush1.msra.mxu0 0.0
    %2415 = vmatprep.subr.mxu0 0.0
    %2416 = vmatpush1.msra.mxu0 0.0
    %2417 = vmatprep.mubr.f32.mxu0 0.0
    %2418 = vmatmul.mubr.f32.gmra.mrb[0].mxu0 %v2337
    %v2419 = vpop.f32.mrb[0].mxu0
    %v2420 = vadd.f32 0.0, %v2419
    %v2421 = vpop.f32.mrb[0].mxu0
    %2422 = vmatprep.mubr.f32.mxu0 0.0
    %2423 = vmatmul.mubr.f32.gmra.mrb[0].mxu0 %v2339
    %v2424 = vpop.f32.mrb[0].mxu0
    %v2425 = vadd.f32 0.0, %v2424
    %v2426 = vpop.f32.mrb[0].mxu0
    %2427 = vmatprep.mubr.f32.mxu0 0.0
    %2428 = vmatmul.mubr.f32.gmra.mrb[0].mxu0 %v2341
    %v2429 = vpop.f32.mrb[0].mxu0
    %v2430 = vadd.f32 0.0, %v2429
    %v2431 = vpop.f32.mrb[0].mxu0
    %2432 = vmatprep.mubr.f32.mxu0 0.0
    %2433 = vmatmul.mubr.f32.gmra.mrb[0].mxu0 %v2343
    %v2434 = vpop.f32.mrb[0].mxu0
    %v2435 = vadd.f32 0.0, %v2434
    %v2436 = vpop.f32.mrb[0].mxu0
    %2437 = vmatprep.mubr.f32.mxu0 0.0
    %2438 = vmatmul.mubr.f32.gmra.mrb[0].mxu0 %v2345
    %v2439 = vpop.f32.mrb[0].mxu0
    %v2440 = vadd.f32 0.0, %v2439
    %v2441 = vpop.f32.mrb[0].mxu0
    %2442 = vmatprep.mubr.f32.mxu0 0.0
    %2443 = vmatmul.mubr.f32.gmra.mrb[0].mxu0 %v2347
    %v2444 = vpop.f32.mrb[0].mxu0
    %v2445 = vadd.f32 0.0, %v2444
    %v2446 = vpop.f32.mrb[0].mxu0
    %2447 = vmatprep.mubr.f32.mxu0 0.0
    %2448 = vmatmul.mubr.f32.gmra.mrb[0].mxu0 %v2349
    %v2449 = vpop.f32.mrb[0].mxu0
    %v2450 = vadd.f32 0.0, %v2449
    %v2451 = vpop.f32.mrb[0].mxu0
    %2452 = vmatprep.mubr.f32.mxu0 0.0
    %2453 = vmatmul.mubr.f32.gmra.mrb[0].mxu0 %v2351
    %v2454 = vpop.f32.mrb[0].mxu0
    %v2455 = vadd.f32 0.0, %v2454
    %v2456 = vpop.f32.mrb[0].mxu0
    %2457 = vdwg.mxu0
    %v2458 = vadd.f32 %v2305, %v2420
    %v2459 = vadd.f32 %v2306, %v2425
    %v2460 = vadd.f32 %v2307, %v2430
    %v2461 = vadd.f32 %v2308, %v2435
    %v2462 = vadd.f32 %v2309, %v2440
    %v2463 = vadd.f32 %v2310, %v2445
    %v2464 = vadd.f32 %v2311, %v2450
    %v2465 = vadd.f32 %v2312, %v2455
    %v2466 = vxor.u32 %v2458, 2147483648
    %v2467 = vxor.u32 %v2459, 2147483648
    %v2468 = vxor.u32 %v2460, 2147483648
    %v2469 = vxor.u32 %v2461, 2147483648
    %v2470 = vxor.u32 %v2462, 2147483648
    %v2471 = vxor.u32 %v2463, 2147483648
    %v2472 = vxor.u32 %v2464, 2147483648
    %v2473 = vxor.u32 %v2465, 2147483648
    %v2474 = vmul.f32 %v2466, 1.442695
    %v2475 = vpow.pop %v2474
    %v2476 = vmul.f32 %v2467, 1.442695
    %v2477 = vpow.pop %v2476
    %v2478 = vmul.f32 %v2468, 1.442695
    %v2479 = vpow.pop %v2478
    %v2480 = vmul.f32 %v2469, 1.442695
    %v2481 = vpow.pop %v2480
    %v2482 = vmul.f32 %v2470, 1.442695
    %v2483 = vpow.pop %v2482
    %v2484 = vmul.f32 %v2471, 1.442695
    %v2485 = vpow.pop %v2484
    %v2486 = vmul.f32 %v2472, 1.442695
    %v2487 = vpow.pop %v2486
    %v2488 = vmul.f32 %v2473, 1.442695
    %v2489 = vpow.pop %v2488
    %v2490 = vadd.f32 %v2475, 1.0
    %v2491 = vadd.f32 %v2477, 1.0
    %v2492 = vadd.f32 %v2479, 1.0
    %v2493 = vadd.f32 %v2481, 1.0
    %v2494 = vadd.f32 %v2483, 1.0
    %v2495 = vadd.f32 %v2485, 1.0
    %v2496 = vadd.f32 %v2487, 1.0
    %v2497 = vadd.f32 %v2489, 1.0
    %v2498 = vrcp.pop %v2490
    %v2499 = vmul.f32 1.0, %v2498
    %v2500 = vrcp.pop %v2491
    %v2501 = vmul.f32 1.0, %v2500
    %v2502 = vrcp.pop %v2492
    %v2503 = vmul.f32 1.0, %v2502
    %v2504 = vrcp.pop %v2493
    %v2505 = vmul.f32 1.0, %v2504
    %v2506 = vrcp.pop %v2494
    %v2507 = vmul.f32 1.0, %v2506
    %v2508 = vrcp.pop %v2495
    %v2509 = vmul.f32 1.0, %v2508
    %v2510 = vrcp.pop %v2496
    %v2511 = vmul.f32 1.0, %v2510
    %v2512 = vrcp.pop %v2497
    %v2513 = vmul.f32 1.0, %v2512
    %v2514 = vtanh.pop %v2458
    %v2515 = vtanh.pop %v2459
    %v2516 = vtanh.pop %v2460
    %v2517 = vtanh.pop %v2461
    %v2518 = vtanh.pop %v2462
    %v2519 = vtanh.pop %v2463
    %v2520 = vtanh.pop %v2464
    %v2521 = vtanh.pop %v2465
    %v2522 = vmul.f32 %v2499, %v2296
    %v2523 = vmul.f32 %v2501, %v2297
    %v2524 = vmul.f32 %v2503, %v2298
    %v2525 = vmul.f32 %v2505, %v2299
    %v2526 = vmul.f32 %v2507, %v2300
    %v2527 = vmul.f32 %v2509, %v2301
    %v2528 = vmul.f32 %v2511, %v2302
    %v2529 = vmul.f32 %v2513, %v2303
    %2538 = vrot.lane.b32.xlu0 %v2514, 64
    %v2539 = vpop.permute.xlu0 %2538
    %2540 = vrot.lane.b32.xlu0 %v2515, 64
    %v2541 = vpop.permute.xlu0 %2540
    %2542 = vrot.lane.b32.xlu0 %v2516, 64
    %v2543 = vpop.permute.xlu0 %2542
    %2544 = vrot.lane.b32.xlu0 %v2517, 64
    %v2545 = vpop.permute.xlu0 %2544
    %2546 = vrot.lane.b32.xlu0 %v2518, 64
    %v2547 = vpop.permute.xlu0 %2546
    %2548 = vrot.lane.b32.xlu0 %v2519, 64
    %v2549 = vpop.permute.xlu0 %2548
    %2550 = vrot.lane.b32.xlu0 %v2520, 64
    %v2551 = vpop.permute.xlu0 %2550
    %2552 = vrot.lane.b32.xlu0 %v2521, 64
    %v2553 = vpop.permute.xlu0 %2552
    %v2562 = vmul.f32 %v2499, %v2539
    %v2563 = vmul.f32 %v2501, %v2541
    %v2564 = vmul.f32 %v2503, %v2543
    %v2565 = vmul.f32 %v2505, %v2545
    %v2566 = vmul.f32 %v2507, %v2547
    %v2567 = vmul.f32 %v2509, %v2549
    %v2568 = vmul.f32 %v2511, %v2551
    %v2569 = vmul.f32 %v2513, %v2553
    %2578 = vrot.lane.b32.xlu0 %v2562, 32
    %v2579 = vpop.permute.xlu0 %2578
    %2580 = vrot.lane.b32.xlu0 %v2563, 32
    %v2581 = vpop.permute.xlu0 %2580
    %2582 = vrot.lane.b32.xlu0 %v2564, 32
    %v2583 = vpop.permute.xlu0 %2582
    %2584 = vrot.lane.b32.xlu0 %v2565, 32
    %v2585 = vpop.permute.xlu0 %2584
    %2586 = vrot.lane.b32.xlu0 %v2566, 32
    %v2587 = vpop.permute.xlu0 %2586
    %2588 = vrot.lane.b32.xlu0 %v2567, 32
    %v2589 = vpop.permute.xlu0 %2588
    %2590 = vrot.lane.b32.xlu0 %v2568, 32
    %v2591 = vpop.permute.xlu0 %2590
    %2592 = vrot.lane.b32.xlu0 %v2569, 32
    %v2593 = vpop.permute.xlu0 %2592
    %v2602 = vadd.f32 %v2522, %v2579
    %v2603 = vadd.f32 %v2523, %v2581
    %v2604 = vadd.f32 %v2524, %v2583
    %v2605 = vadd.f32 %v2525, %v2585
    %v2606 = vadd.f32 %v2526, %v2587
    %v2607 = vadd.f32 %v2527, %v2589
    %v2608 = vadd.f32 %v2528, %v2591
    %v2609 = vadd.f32 %v2529, %v2593
    %v2610 = vtanh.pop %v2602
    %v2611 = vtanh.pop %v2603
    %v2612 = vtanh.pop %v2604
    %v2613 = vtanh.pop %v2605
    %v2614 = vtanh.pop %v2606
    %v2615 = vtanh.pop %v2607
    %v2616 = vtanh.pop %v2608
    %v2617 = vtanh.pop %v2609
    %2626 = vrot.lane.b32.xlu0 %v2610, 64
    %v2627 = vpop.permute.xlu0 %2626
    %2628 = vrot.lane.b32.xlu0 %v2611, 64
    %v2629 = vpop.permute.xlu0 %2628
    %2630 = vrot.lane.b32.xlu0 %v2612, 64
    %v2631 = vpop.permute.xlu0 %2630
    %2632 = vrot.lane.b32.xlu0 %v2613, 64
    %v2633 = vpop.permute.xlu0 %2632
    %2634 = vrot.lane.b32.xlu0 %v2614, 64
    %v2635 = vpop.permute.xlu0 %2634
    %2636 = vrot.lane.b32.xlu0 %v2615, 64
    %v2637 = vpop.permute.xlu0 %2636
    %2638 = vrot.lane.b32.xlu0 %v2616, 64
    %v2639 = vpop.permute.xlu0 %2638
    %2640 = vrot.lane.b32.xlu0 %v2617, 64
    %v2641 = vpop.permute.xlu0 %2640
    %v2650 = vmul.f32 %v2499, %v2627
    %v2651 = vmul.f32 %v2501, %v2629
    %v2652 = vmul.f32 %v2503, %v2631
    %v2653 = vmul.f32 %v2505, %v2633
    %v2654 = vmul.f32 %v2507, %v2635
    %v2655 = vmul.f32 %v2509, %v2637
    %v2656 = vmul.f32 %v2511, %v2639
    %v2657 = vmul.f32 %v2513, %v2641
    %2666 = vrot.lane.b32.xlu0 %v2650, 32
    %v2667 = vpop.permute.xlu0 %2666
    %2668 = vrot.lane.b32.xlu0 %v2651, 32
    %v2669 = vpop.permute.xlu0 %2668
    %2670 = vrot.lane.b32.xlu0 %v2652, 32
    %v2671 = vpop.permute.xlu0 %2670
    %2672 = vrot.lane.b32.xlu0 %v2653, 32
    %v2673 = vpop.permute.xlu0 %2672
    %2674 = vrot.lane.b32.xlu0 %v2654, 32
    %v2675 = vpop.permute.xlu0 %2674
    %2676 = vrot.lane.b32.xlu0 %v2655, 32
    %v2677 = vpop.permute.xlu0 %2676
    %2678 = vrot.lane.b32.xlu0 %v2656, 32
    %v2679 = vpop.permute.xlu0 %2678
    %2680 = vrot.lane.b32.xlu0 %v2657, 32
    %v2681 = vpop.permute.xlu0 %2680
    %s2690 = scalar_lea.vmem [#allocation2], 320
    %2691 = vst.msk [vmem:[%s2690] sm:$0xff] %vm55, %v2667
    %2692 = vst.msk [vmem:[%s2690 + $0x8] sm:$0xff] %vm55, %v2669
    %2693 = vst.msk [vmem:[%s2690 + $0x10] sm:$0xff] %vm55, %v2671
    %2694 = vst.msk [vmem:[%s2690 + $0x18] sm:$0xff] %vm55, %v2673
    %2695 = vst.msk [vmem:[%s2690 + $0x20] sm:$0xff] %vm55, %v2675
    %2696 = vst.msk [vmem:[%s2690 + $0x28] sm:$0xff] %vm55, %v2677
    %2697 = vst.msk [vmem:[%s2690 + $0x30] sm:$0xff] %vm55, %v2679
    %2698 = vst.msk [vmem:[%s2690 + $0x38] sm:$0xff] %vm55, %v2681
    %vm2699 = vcmp.gt.s32.totalorder %v39, 5
    %vm2700 = vcmp.gt.s32.totalorder %v40, 5
    %vm2701 = vcmp.gt.s32.totalorder %v41, 5
    %vm2702 = vcmp.gt.s32.totalorder %v42, 5
    %vm2703 = vcmp.gt.s32.totalorder %v43, 5
    %vm2704 = vcmp.gt.s32.totalorder %v44, 5
    %vm2705 = vcmp.gt.s32.totalorder %v45, 5
    %vm2706 = vcmp.gt.s32.totalorder %v46, 5
    %v2707 = vsel %vm2699, 1, 0
    %v2708 = vsel %vm2700, 1, 0
    %v2709 = vsel %vm2701, 1, 0
    %v2710 = vsel %vm2702, 1, 0
    %v2711 = vsel %vm2703, 1, 0
    %v2712 = vsel %vm2704, 1, 0
    %v2713 = vsel %vm2705, 1, 0
    %v2714 = vsel %vm2706, 1, 0
    %2715 = vset.pattern.permute.xlu0 0
    %2716 = vperm.xlu0 %2715, %v2707
    %v2717 = vpop.permute.xlu0 %2716
    %2718 = vset.pattern.permute.xlu0 0
    %2719 = vperm.xlu0 %2718, %v2708
    %v2720 = vpop.permute.xlu0 %2719
    %2721 = vset.pattern.permute.xlu0 0
    %2722 = vperm.xlu0 %2721, %v2709
    %v2723 = vpop.permute.xlu0 %2722
    %2724 = vset.pattern.permute.xlu0 0
    %2725 = vperm.xlu0 %2724, %v2710
    %v2726 = vpop.permute.xlu0 %2725
    %2727 = vset.pattern.permute.xlu0 0
    %2728 = vperm.xlu0 %2727, %v2711
    %v2729 = vpop.permute.xlu0 %2728
    %2730 = vset.pattern.permute.xlu0 0
    %2731 = vperm.xlu0 %2730, %v2712
    %v2732 = vpop.permute.xlu0 %2731
    %2733 = vset.pattern.permute.xlu0 0
    %2734 = vperm.xlu0 %2733, %v2713
    %v2735 = vpop.permute.xlu0 %2734
    %2736 = vset.pattern.permute.xlu0 0
    %2737 = vperm.xlu0 %2736, %v2714
    %v2738 = vpop.permute.xlu0 %2737
    %vm2739 = vcmp.eq.s32.totalorder %v2717, 1
    %vm2740 = vcmp.eq.s32.totalorder %v2720, 1
    %vm2741 = vcmp.eq.s32.totalorder %v2723, 1
    %vm2742 = vcmp.eq.s32.totalorder %v2726, 1
    %vm2743 = vcmp.eq.s32.totalorder %v2729, 1
    %vm2744 = vcmp.eq.s32.totalorder %v2732, 1
    %vm2745 = vcmp.eq.s32.totalorder %v2735, 1
    %vm2746 = vcmp.eq.s32.totalorder %v2738, 1
    %v2747 = vsel %vm2739, %v2650, %v2288
    %v2748 = vsel %vm2740, %v2651, %v2289
    %v2749 = vsel %vm2741, %v2652, %v2290
    %v2750 = vsel %vm2742, %v2653, %v2291
    %v2751 = vsel %vm2743, %v2654, %v2292
    %v2752 = vsel %vm2744, %v2655, %v2293
    %v2753 = vsel %vm2745, %v2656, %v2294
    %v2754 = vsel %vm2746, %v2657, %v2295
    %v2755 = vsel %vm2739, %v2602, %v2296
    %v2756 = vsel %vm2740, %v2603, %v2297
    %v2757 = vsel %vm2741, %v2604, %v2298
    %v2758 = vsel %vm2742, %v2605, %v2299
    %v2759 = vsel %vm2743, %v2606, %v2300
    %v2760 = vsel %vm2744, %v2607, %v2301
    %v2761 = vsel %vm2745, %v2608, %v2302
    %v2762 = vsel %vm2746, %v2609, %v2303
    %s2763 = scalar_lea.vmem [#allocation3], 384
    %v2764 = vld [vmem:[%s2763] sm:$0xff]
    %v2765 = vld [vmem:[%s2763 + $0x8] sm:$0xff]
    %v2766 = vld [vmem:[%s2763 + $0x10] sm:$0xff]
    %v2767 = vld [vmem:[%s2763 + $0x18] sm:$0xff]
    %v2768 = vld [vmem:[%s2763 + $0x20] sm:$0xff]
    %v2769 = vld [vmem:[%s2763 + $0x28] sm:$0xff]
    %v2770 = vld [vmem:[%s2763 + $0x30] sm:$0xff]
    %v2771 = vld [vmem:[%s2763 + $0x38] sm:$0xff]
    %2780 = vrot.lane.b32.xlu0 %v2747, 32
    %v2781 = vpop.permute.xlu0 %2780
    %2782 = vrot.lane.b32.xlu0 %v2748, 32
    %v2783 = vpop.permute.xlu0 %2782
    %2784 = vrot.lane.b32.xlu0 %v2749, 32
    %v2785 = vpop.permute.xlu0 %2784
    %2786 = vrot.lane.b32.xlu0 %v2750, 32
    %v2787 = vpop.permute.xlu0 %2786
    %2788 = vrot.lane.b32.xlu0 %v2751, 32
    %v2789 = vpop.permute.xlu0 %2788
    %2790 = vrot.lane.b32.xlu0 %v2752, 32
    %v2791 = vpop.permute.xlu0 %2790
    %2792 = vrot.lane.b32.xlu0 %v2753, 32
    %v2793 = vpop.permute.xlu0 %2792
    %2794 = vrot.lane.b32.xlu0 %v2754, 32
    %v2795 = vpop.permute.xlu0 %2794
    %v2796 = vsel %vm55, %v2781, 0
    %v2798 = vsel %vm55, %v2783, 0
    %v2800 = vsel %vm55, %v2785, 0
    %v2802 = vsel %vm55, %v2787, 0
    %v2804 = vsel %vm55, %v2789, 0
    %v2806 = vsel %vm55, %v2791, 0
    %v2808 = vsel %vm55, %v2793, 0
    %v2810 = vsel %vm55, %v2795, 0
    %2812 = vmatprep.subr.mxu0 0.0
    %2813 = vmatpush1.msra.mxu0 %v35
    %2814 = vmatprep.subr.mxu0 0.0
    %2815 = vmatpush1.msra.mxu0 %v36
    %2816 = vmatprep.subr.mxu0 0.0
    %2817 = vmatpush1.msra.mxu0 %v37
    %2818 = vmatprep.subr.mxu0 0.0
    %2819 = vmatpush1.msra.mxu0 %v38
    %2820 = vmatprep.subr.mxu0 0.0
    %2821 = vmatpush1.msra.mxu0 0.0
    %2822 = vmatprep.subr.mxu0 0.0
    %2823 = vmatpush1.msra.mxu0 0.0
    %2824 = vmatprep.subr.mxu0 0.0
    %2825 = vmatpush1.msra.mxu0 0.0
    %2826 = vmatprep.subr.mxu0 0.0
    %2827 = vmatpush1.msra.mxu0 0.0
    %2828 = vmatprep.subr.mxu0 0.0
    %2829 = vmatpush1.msra.mxu0 0.0
    %2830 = vmatprep.subr.mxu0 0.0
    %2831 = vmatpush1.msra.mxu0 0.0
    %2832 = vmatprep.subr.mxu0 0.0
    %2833 = vmatpush1.msra.mxu0 0.0
    %2834 = vmatprep.subr.mxu0 0.0
    %2835 = vmatpush1.msra.mxu0 0.0
    %2836 = vmatprep.subr.mxu0 0.0
    %2837 = vmatpush1.msra.mxu0 0.0
    %2838 = vmatprep.subr.mxu0 0.0
    %2839 = vmatpush1.msra.mxu0 0.0
    %2840 = vmatprep.subr.mxu0 0.0
    %2841 = vmatpush1.msra.mxu0 0.0
    %2842 = vmatprep.subr.mxu0 0.0
    %2843 = vmatpush1.msra.mxu0 0.0
    %2844 = vmatprep.subr.mxu0 0.0
    %2845 = vmatpush1.msra.mxu0 0.0
    %2846 = vmatprep.subr.mxu0 0.0
    %2847 = vmatpush1.msra.mxu0 0.0
    %2848 = vmatprep.subr.mxu0 0.0
    %2849 = vmatpush1.msra.mxu0 0.0
    %2850 = vmatprep.subr.mxu0 0.0
    %2851 = vmatpush1.msra.mxu0 0.0
    %2852 = vmatprep.subr.mxu0 0.0
    %2853 = vmatpush1.msra.mxu0 0.0
    %2854 = vmatprep.subr.mxu0 0.0
    %2855 = vmatpush1.msra.mxu0 0.0
    %2856 = vmatprep.subr.mxu0 0.0
    %2857 = vmatpush1.msra.mxu0 0.0
    %2858 = vmatprep.subr.mxu0 0.0
    %2859 = vmatpush1.msra.mxu0 0.0
    %2860 = vmatprep.subr.mxu0 0.0
    %2861 = vmatpush1.msra.mxu0 0.0
    %2862 = vmatprep.subr.mxu0 0.0
    %2863 = vmatpush1.msra.mxu0 0.0
    %2864 = vmatprep.subr.mxu0 0.0
    %2865 = vmatpush1.msra.mxu0 0.0
    %2866 = vmatprep.subr.mxu0 0.0
    %2867 = vmatpush1.msra.mxu0 0.0
    %2868 = vmatprep.subr.mxu0 0.0
    %2869 = vmatpush1.msra.mxu0 0.0
    %2870 = vmatprep.subr.mxu0 0.0
    %2871 = vmatpush1.msra.mxu0 0.0
    %2872 = vmatprep.subr.mxu0 0.0
    %2873 = vmatpush1.msra.mxu0 0.0
    %2874 = vmatprep.subr.mxu0 0.0
    %2875 = vmatpush1.msra.mxu0 0.0
    %2876 = vmatprep.mubr.f32.mxu0 0.0
    %2877 = vmatmul.mubr.f32.gmra.mrb[0].mxu0 %v2796
    %v2878 = vpop.f32.mrb[0].mxu0
    %v2879 = vadd.f32 0.0, %v2878
    %v2880 = vpop.f32.mrb[0].mxu0
    %2881 = vmatprep.mubr.f32.mxu0 0.0
    %2882 = vmatmul.mubr.f32.gmra.mrb[0].mxu0 %v2798
    %v2883 = vpop.f32.mrb[0].mxu0
    %v2884 = vadd.f32 0.0, %v2883
    %v2885 = vpop.f32.mrb[0].mxu0
    %2886 = vmatprep.mubr.f32.mxu0 0.0
    %2887 = vmatmul.mubr.f32.gmra.mrb[0].mxu0 %v2800
    %v2888 = vpop.f32.mrb[0].mxu0
    %v2889 = vadd.f32 0.0, %v2888
    %v2890 = vpop.f32.mrb[0].mxu0
    %2891 = vmatprep.mubr.f32.mxu0 0.0
    %2892 = vmatmul.mubr.f32.gmra.mrb[0].mxu0 %v2802
    %v2893 = vpop.f32.mrb[0].mxu0
    %v2894 = vadd.f32 0.0, %v2893
    %v2895 = vpop.f32.mrb[0].mxu0
    %2896 = vmatprep.mubr.f32.mxu0 0.0
    %2897 = vmatmul.mubr.f32.gmra.mrb[0].mxu0 %v2804
    %v2898 = vpop.f32.mrb[0].mxu0
    %v2899 = vadd.f32 0.0, %v2898
    %v2900 = vpop.f32.mrb[0].mxu0
    %2901 = vmatprep.mubr.f32.mxu0 0.0
    %2902 = vmatmul.mubr.f32.gmra.mrb[0].mxu0 %v2806
    %v2903 = vpop.f32.mrb[0].mxu0
    %v2904 = vadd.f32 0.0, %v2903
    %v2905 = vpop.f32.mrb[0].mxu0
    %2906 = vmatprep.mubr.f32.mxu0 0.0
    %2907 = vmatmul.mubr.f32.gmra.mrb[0].mxu0 %v2808
    %v2908 = vpop.f32.mrb[0].mxu0
    %v2909 = vadd.f32 0.0, %v2908
    %v2910 = vpop.f32.mrb[0].mxu0
    %2911 = vmatprep.mubr.f32.mxu0 0.0
    %2912 = vmatmul.mubr.f32.gmra.mrb[0].mxu0 %v2810
    %v2913 = vpop.f32.mrb[0].mxu0
    %v2914 = vadd.f32 0.0, %v2913
    %v2915 = vpop.f32.mrb[0].mxu0
    %2916 = vdwg.mxu0
    %v2917 = vadd.f32 %v2764, %v2879
    %v2918 = vadd.f32 %v2765, %v2884
    %v2919 = vadd.f32 %v2766, %v2889
    %v2920 = vadd.f32 %v2767, %v2894
    %v2921 = vadd.f32 %v2768, %v2899
    %v2922 = vadd.f32 %v2769, %v2904
    %v2923 = vadd.f32 %v2770, %v2909
    %v2924 = vadd.f32 %v2771, %v2914
    %v2925 = vxor.u32 %v2917, 2147483648
    %v2926 = vxor.u32 %v2918, 2147483648
    %v2927 = vxor.u32 %v2919, 2147483648
    %v2928 = vxor.u32 %v2920, 2147483648
    %v2929 = vxor.u32 %v2921, 2147483648
    %v2930 = vxor.u32 %v2922, 2147483648
    %v2931 = vxor.u32 %v2923, 2147483648
    %v2932 = vxor.u32 %v2924, 2147483648
    %v2933 = vmul.f32 %v2925, 1.442695
    %v2934 = vpow.pop %v2933
    %v2935 = vmul.f32 %v2926, 1.442695
    %v2936 = vpow.pop %v2935
    %v2937 = vmul.f32 %v2927, 1.442695
    %v2938 = vpow.pop %v2937
    %v2939 = vmul.f32 %v2928, 1.442695
    %v2940 = vpow.pop %v2939
    %v2941 = vmul.f32 %v2929, 1.442695
    %v2942 = vpow.pop %v2941
    %v2943 = vmul.f32 %v2930, 1.442695
    %v2944 = vpow.pop %v2943
    %v2945 = vmul.f32 %v2931, 1.442695
    %v2946 = vpow.pop %v2945
    %v2947 = vmul.f32 %v2932, 1.442695
    %v2948 = vpow.pop %v2947
    %v2949 = vadd.f32 %v2934, 1.0
    %v2950 = vadd.f32 %v2936, 1.0
    %v2951 = vadd.f32 %v2938, 1.0
    %v2952 = vadd.f32 %v2940, 1.0
    %v2953 = vadd.f32 %v2942, 1.0
    %v2954 = vadd.f32 %v2944, 1.0
    %v2955 = vadd.f32 %v2946, 1.0
    %v2956 = vadd.f32 %v2948, 1.0
    %v2957 = vrcp.pop %v2949
    %v2958 = vmul.f32 1.0, %v2957
    %v2959 = vrcp.pop %v2950
    %v2960 = vmul.f32 1.0, %v2959
    %v2961 = vrcp.pop %v2951
    %v2962 = vmul.f32 1.0, %v2961
    %v2963 = vrcp.pop %v2952
    %v2964 = vmul.f32 1.0, %v2963
    %v2965 = vrcp.pop %v2953
    %v2966 = vmul.f32 1.0, %v2965
    %v2967 = vrcp.pop %v2954
    %v2968 = vmul.f32 1.0, %v2967
    %v2969 = vrcp.pop %v2955
    %v2970 = vmul.f32 1.0, %v2969
    %v2971 = vrcp.pop %v2956
    %v2972 = vmul.f32 1.0, %v2971
    %v2973 = vtanh.pop %v2917
    %v2974 = vtanh.pop %v2918
    %v2975 = vtanh.pop %v2919
    %v2976 = vtanh.pop %v2920
    %v2977 = vtanh.pop %v2921
    %v2978 = vtanh.pop %v2922
    %v2979 = vtanh.pop %v2923
    %v2980 = vtanh.pop %v2924
    %v2981 = vmul.f32 %v2958, %v2755
    %v2982 = vmul.f32 %v2960, %v2756
    %v2983 = vmul.f32 %v2962, %v2757
    %v2984 = vmul.f32 %v2964, %v2758
    %v2985 = vmul.f32 %v2966, %v2759
    %v2986 = vmul.f32 %v2968, %v2760
    %v2987 = vmul.f32 %v2970, %v2761
    %v2988 = vmul.f32 %v2972, %v2762
    %2997 = vrot.lane.b32.xlu0 %v2973, 64
    %v2998 = vpop.permute.xlu0 %2997
    %2999 = vrot.lane.b32.xlu0 %v2974, 64
    %v3000 = vpop.permute.xlu0 %2999
    %3001 = vrot.lane.b32.xlu0 %v2975, 64
    %v3002 = vpop.permute.xlu0 %3001
    %3003 = vrot.lane.b32.xlu0 %v2976, 64
    %v3004 = vpop.permute.xlu0 %3003
    %3005 = vrot.lane.b32.xlu0 %v2977, 64
    %v3006 = vpop.permute.xlu0 %3005
    %3007 = vrot.lane.b32.xlu0 %v2978, 64
    %v3008 = vpop.permute.xlu0 %3007
    %3009 = vrot.lane.b32.xlu0 %v2979, 64
    %v3010 = vpop.permute.xlu0 %3009
    %3011 = vrot.lane.b32.xlu0 %v2980, 64
    %v3012 = vpop.permute.xlu0 %3011
    %v3021 = vmul.f32 %v2958, %v2998
    %v3022 = vmul.f32 %v2960, %v3000
    %v3023 = vmul.f32 %v2962, %v3002
    %v3024 = vmul.f32 %v2964, %v3004
    %v3025 = vmul.f32 %v2966, %v3006
    %v3026 = vmul.f32 %v2968, %v3008
    %v3027 = vmul.f32 %v2970, %v3010
    %v3028 = vmul.f32 %v2972, %v3012
    %3037 = vrot.lane.b32.xlu0 %v3021, 32
    %v3038 = vpop.permute.xlu0 %3037
    %3039 = vrot.lane.b32.xlu0 %v3022, 32
    %v3040 = vpop.permute.xlu0 %3039
    %3041 = vrot.lane.b32.xlu0 %v3023, 32
    %v3042 = vpop.permute.xlu0 %3041
    %3043 = vrot.lane.b32.xlu0 %v3024, 32
    %v3044 = vpop.permute.xlu0 %3043
    %3045 = vrot.lane.b32.xlu0 %v3025, 32
    %v3046 = vpop.permute.xlu0 %3045
    %3047 = vrot.lane.b32.xlu0 %v3026, 32
    %v3048 = vpop.permute.xlu0 %3047
    %3049 = vrot.lane.b32.xlu0 %v3027, 32
    %v3050 = vpop.permute.xlu0 %3049
    %3051 = vrot.lane.b32.xlu0 %v3028, 32
    %v3052 = vpop.permute.xlu0 %3051
    %v3061 = vadd.f32 %v2981, %v3038
    %v3062 = vadd.f32 %v2982, %v3040
    %v3063 = vadd.f32 %v2983, %v3042
    %v3064 = vadd.f32 %v2984, %v3044
    %v3065 = vadd.f32 %v2985, %v3046
    %v3066 = vadd.f32 %v2986, %v3048
    %v3067 = vadd.f32 %v2987, %v3050
    %v3068 = vadd.f32 %v2988, %v3052
    %v3069 = vtanh.pop %v3061
    %v3070 = vtanh.pop %v3062
    %v3071 = vtanh.pop %v3063
    %v3072 = vtanh.pop %v3064
    %v3073 = vtanh.pop %v3065
    %v3074 = vtanh.pop %v3066
    %v3075 = vtanh.pop %v3067
    %v3076 = vtanh.pop %v3068
    %3085 = vrot.lane.b32.xlu0 %v3069, 64
    %v3086 = vpop.permute.xlu0 %3085
    %3087 = vrot.lane.b32.xlu0 %v3070, 64
    %v3088 = vpop.permute.xlu0 %3087
    %3089 = vrot.lane.b32.xlu0 %v3071, 64
    %v3090 = vpop.permute.xlu0 %3089
    %3091 = vrot.lane.b32.xlu0 %v3072, 64
    %v3092 = vpop.permute.xlu0 %3091
    %3093 = vrot.lane.b32.xlu0 %v3073, 64
    %v3094 = vpop.permute.xlu0 %3093
    %3095 = vrot.lane.b32.xlu0 %v3074, 64
    %v3096 = vpop.permute.xlu0 %3095
    %3097 = vrot.lane.b32.xlu0 %v3075, 64
    %v3098 = vpop.permute.xlu0 %3097
    %3099 = vrot.lane.b32.xlu0 %v3076, 64
    %v3100 = vpop.permute.xlu0 %3099
    %v3109 = vmul.f32 %v2958, %v3086
    %v3110 = vmul.f32 %v2960, %v3088
    %v3111 = vmul.f32 %v2962, %v3090
    %v3112 = vmul.f32 %v2964, %v3092
    %v3113 = vmul.f32 %v2966, %v3094
    %v3114 = vmul.f32 %v2968, %v3096
    %v3115 = vmul.f32 %v2970, %v3098
    %v3116 = vmul.f32 %v2972, %v3100
    %3125 = vrot.lane.b32.xlu0 %v3109, 32
    %v3126 = vpop.permute.xlu0 %3125
    %3127 = vrot.lane.b32.xlu0 %v3110, 32
    %v3128 = vpop.permute.xlu0 %3127
    %3129 = vrot.lane.b32.xlu0 %v3111, 32
    %v3130 = vpop.permute.xlu0 %3129
    %3131 = vrot.lane.b32.xlu0 %v3112, 32
    %v3132 = vpop.permute.xlu0 %3131
    %3133 = vrot.lane.b32.xlu0 %v3113, 32
    %v3134 = vpop.permute.xlu0 %3133
    %3135 = vrot.lane.b32.xlu0 %v3114, 32
    %v3136 = vpop.permute.xlu0 %3135
    %3137 = vrot.lane.b32.xlu0 %v3115, 32
    %v3138 = vpop.permute.xlu0 %3137
    %3139 = vrot.lane.b32.xlu0 %v3116, 32
    %v3140 = vpop.permute.xlu0 %3139
    %s3149 = scalar_lea.vmem [#allocation2], 384
    %3150 = vst.msk [vmem:[%s3149] sm:$0xff] %vm55, %v3126
    %3151 = vst.msk [vmem:[%s3149 + $0x8] sm:$0xff] %vm55, %v3128
    %3152 = vst.msk [vmem:[%s3149 + $0x10] sm:$0xff] %vm55, %v3130
    %3153 = vst.msk [vmem:[%s3149 + $0x18] sm:$0xff] %vm55, %v3132
    %3154 = vst.msk [vmem:[%s3149 + $0x20] sm:$0xff] %vm55, %v3134
    %3155 = vst.msk [vmem:[%s3149 + $0x28] sm:$0xff] %vm55, %v3136
    %3156 = vst.msk [vmem:[%s3149 + $0x30] sm:$0xff] %vm55, %v3138
    %3157 = vst.msk [vmem:[%s3149 + $0x38] sm:$0xff] %vm55, %v3140
    %vm3158 = vcmp.gt.s32.totalorder %v39, 6
    %vm3159 = vcmp.gt.s32.totalorder %v40, 6
    %vm3160 = vcmp.gt.s32.totalorder %v41, 6
    %vm3161 = vcmp.gt.s32.totalorder %v42, 6
    %vm3162 = vcmp.gt.s32.totalorder %v43, 6
    %vm3163 = vcmp.gt.s32.totalorder %v44, 6
    %vm3164 = vcmp.gt.s32.totalorder %v45, 6
    %vm3165 = vcmp.gt.s32.totalorder %v46, 6
    %v3166 = vsel %vm3158, 1, 0
    %v3167 = vsel %vm3159, 1, 0
    %v3168 = vsel %vm3160, 1, 0
    %v3169 = vsel %vm3161, 1, 0
    %v3170 = vsel %vm3162, 1, 0
    %v3171 = vsel %vm3163, 1, 0
    %v3172 = vsel %vm3164, 1, 0
    %v3173 = vsel %vm3165, 1, 0
    %3174 = vset.pattern.permute.xlu0 0
    %3175 = vperm.xlu0 %3174, %v3166
    %v3176 = vpop.permute.xlu0 %3175
    %3177 = vset.pattern.permute.xlu0 0
    %3178 = vperm.xlu0 %3177, %v3167
    %v3179 = vpop.permute.xlu0 %3178
    %3180 = vset.pattern.permute.xlu0 0
    %3181 = vperm.xlu0 %3180, %v3168
    %v3182 = vpop.permute.xlu0 %3181
    %3183 = vset.pattern.permute.xlu0 0
    %3184 = vperm.xlu0 %3183, %v3169
    %v3185 = vpop.permute.xlu0 %3184
    %3186 = vset.pattern.permute.xlu0 0
    %3187 = vperm.xlu0 %3186, %v3170
    %v3188 = vpop.permute.xlu0 %3187
    %3189 = vset.pattern.permute.xlu0 0
    %3190 = vperm.xlu0 %3189, %v3171
    %v3191 = vpop.permute.xlu0 %3190
    %3192 = vset.pattern.permute.xlu0 0
    %3193 = vperm.xlu0 %3192, %v3172
    %v3194 = vpop.permute.xlu0 %3193
    %3195 = vset.pattern.permute.xlu0 0
    %3196 = vperm.xlu0 %3195, %v3173
    %v3197 = vpop.permute.xlu0 %3196
    %vm3198 = vcmp.eq.s32.totalorder %v3176, 1
    %vm3199 = vcmp.eq.s32.totalorder %v3179, 1
    %vm3200 = vcmp.eq.s32.totalorder %v3182, 1
    %vm3201 = vcmp.eq.s32.totalorder %v3185, 1
    %vm3202 = vcmp.eq.s32.totalorder %v3188, 1
    %vm3203 = vcmp.eq.s32.totalorder %v3191, 1
    %vm3204 = vcmp.eq.s32.totalorder %v3194, 1
    %vm3205 = vcmp.eq.s32.totalorder %v3197, 1
    %v3206 = vsel %vm3198, %v3109, %v2747
    %v3207 = vsel %vm3199, %v3110, %v2748
    %v3208 = vsel %vm3200, %v3111, %v2749
    %v3209 = vsel %vm3201, %v3112, %v2750
    %v3210 = vsel %vm3202, %v3113, %v2751
    %v3211 = vsel %vm3203, %v3114, %v2752
    %v3212 = vsel %vm3204, %v3115, %v2753
    %v3213 = vsel %vm3205, %v3116, %v2754
    %v3214 = vsel %vm3198, %v3061, %v2755
    %v3215 = vsel %vm3199, %v3062, %v2756
    %v3216 = vsel %vm3200, %v3063, %v2757
    %v3217 = vsel %vm3201, %v3064, %v2758
    %v3218 = vsel %vm3202, %v3065, %v2759
    %v3219 = vsel %vm3203, %v3066, %v2760
    %v3220 = vsel %vm3204, %v3067, %v2761
    %v3221 = vsel %vm3205, %v3068, %v2762
    %s3222 = scalar_lea.vmem [#allocation3], 448
    %v3223 = vld [vmem:[%s3222] sm:$0xff]
    %v3224 = vld [vmem:[%s3222 + $0x8] sm:$0xff]
    %v3225 = vld [vmem:[%s3222 + $0x10] sm:$0xff]
    %v3226 = vld [vmem:[%s3222 + $0x18] sm:$0xff]
    %v3227 = vld [vmem:[%s3222 + $0x20] sm:$0xff]
    %v3228 = vld [vmem:[%s3222 + $0x28] sm:$0xff]
    %v3229 = vld [vmem:[%s3222 + $0x30] sm:$0xff]
    %v3230 = vld [vmem:[%s3222 + $0x38] sm:$0xff]
    %3239 = vrot.lane.b32.xlu0 %v3206, 32
    %v3240 = vpop.permute.xlu0 %3239
    %3241 = vrot.lane.b32.xlu0 %v3207, 32
    %v3242 = vpop.permute.xlu0 %3241
    %3243 = vrot.lane.b32.xlu0 %v3208, 32
    %v3244 = vpop.permute.xlu0 %3243
    %3245 = vrot.lane.b32.xlu0 %v3209, 32
    %v3246 = vpop.permute.xlu0 %3245
    %3247 = vrot.lane.b32.xlu0 %v3210, 32
    %v3248 = vpop.permute.xlu0 %3247
    %3249 = vrot.lane.b32.xlu0 %v3211, 32
    %v3250 = vpop.permute.xlu0 %3249
    %3251 = vrot.lane.b32.xlu0 %v3212, 32
    %v3252 = vpop.permute.xlu0 %3251
    %3253 = vrot.lane.b32.xlu0 %v3213, 32
    %v3254 = vpop.permute.xlu0 %3253
    %v3255 = vsel %vm55, %v3240, 0
    %v3257 = vsel %vm55, %v3242, 0
    %v3259 = vsel %vm55, %v3244, 0
    %v3261 = vsel %vm55, %v3246, 0
    %v3263 = vsel %vm55, %v3248, 0
    %v3265 = vsel %vm55, %v3250, 0
    %v3267 = vsel %vm55, %v3252, 0
    %v3269 = vsel %vm55, %v3254, 0
    %3271 = vmatprep.subr.mxu0 0.0
    %3272 = vmatpush1.msra.mxu0 %v35
    %3273 = vmatprep.subr.mxu0 0.0
    %3274 = vmatpush1.msra.mxu0 %v36
    %3275 = vmatprep.subr.mxu0 0.0
    %3276 = vmatpush1.msra.mxu0 %v37
    %3277 = vmatprep.subr.mxu0 0.0
    %3278 = vmatpush1.msra.mxu0 %v38
    %3279 = vmatprep.subr.mxu0 0.0
    %3280 = vmatpush1.msra.mxu0 0.0
    %3281 = vmatprep.subr.mxu0 0.0
    %3282 = vmatpush1.msra.mxu0 0.0
    %3283 = vmatprep.subr.mxu0 0.0
    %3284 = vmatpush1.msra.mxu0 0.0
    %3285 = vmatprep.subr.mxu0 0.0
    %3286 = vmatpush1.msra.mxu0 0.0
    %3287 = vmatprep.subr.mxu0 0.0
    %3288 = vmatpush1.msra.mxu0 0.0
    %3289 = vmatprep.subr.mxu0 0.0
    %3290 = vmatpush1.msra.mxu0 0.0
    %3291 = vmatprep.subr.mxu0 0.0
    %3292 = vmatpush1.msra.mxu0 0.0
    %3293 = vmatprep.subr.mxu0 0.0
    %3294 = vmatpush1.msra.mxu0 0.0
    %3295 = vmatprep.subr.mxu0 0.0
    %3296 = vmatpush1.msra.mxu0 0.0
    %3297 = vmatprep.subr.mxu0 0.0
    %3298 = vmatpush1.msra.mxu0 0.0
    %3299 = vmatprep.subr.mxu0 0.0
    %3300 = vmatpush1.msra.mxu0 0.0
    %3301 = vmatprep.subr.mxu0 0.0
    %3302 = vmatpush1.msra.mxu0 0.0
    %3303 = vmatprep.subr.mxu0 0.0
    %3304 = vmatpush1.msra.mxu0 0.0
    %3305 = vmatprep.subr.mxu0 0.0
    %3306 = vmatpush1.msra.mxu0 0.0
    %3307 = vmatprep.subr.mxu0 0.0
    %3308 = vmatpush1.msra.mxu0 0.0
    %3309 = vmatprep.subr.mxu0 0.0
    %3310 = vmatpush1.msra.mxu0 0.0
    %3311 = vmatprep.subr.mxu0 0.0
    %3312 = vmatpush1.msra.mxu0 0.0
    %3313 = vmatprep.subr.mxu0 0.0
    %3314 = vmatpush1.msra.mxu0 0.0
    %3315 = vmatprep.subr.mxu0 0.0
    %3316 = vmatpush1.msra.mxu0 0.0
    %3317 = vmatprep.subr.mxu0 0.0
    %3318 = vmatpush1.msra.mxu0 0.0
    %3319 = vmatprep.subr.mxu0 0.0
    %3320 = vmatpush1.msra.mxu0 0.0
    %3321 = vmatprep.subr.mxu0 0.0
    %3322 = vmatpush1.msra.mxu0 0.0
    %3323 = vmatprep.subr.mxu0 0.0
    %3324 = vmatpush1.msra.mxu0 0.0
    %3325 = vmatprep.subr.mxu0 0.0
    %3326 = vmatpush1.msra.mxu0 0.0
    %3327 = vmatprep.subr.mxu0 0.0
    %3328 = vmatpush1.msra.mxu0 0.0
    %3329 = vmatprep.subr.mxu0 0.0
    %3330 = vmatpush1.msra.mxu0 0.0
    %3331 = vmatprep.subr.mxu0 0.0
    %3332 = vmatpush1.msra.mxu0 0.0
    %3333 = vmatprep.subr.mxu0 0.0
    %3334 = vmatpush1.msra.mxu0 0.0
    %3335 = vmatprep.mubr.f32.mxu0 0.0
    %3336 = vmatmul.mubr.f32.gmra.mrb[0].mxu0 %v3255
    %v3337 = vpop.f32.mrb[0].mxu0
    %v3338 = vadd.f32 0.0, %v3337
    %v3339 = vpop.f32.mrb[0].mxu0
    %3340 = vmatprep.mubr.f32.mxu0 0.0
    %3341 = vmatmul.mubr.f32.gmra.mrb[0].mxu0 %v3257
    %v3342 = vpop.f32.mrb[0].mxu0
    %v3343 = vadd.f32 0.0, %v3342
    %v3344 = vpop.f32.mrb[0].mxu0
    %3345 = vmatprep.mubr.f32.mxu0 0.0
    %3346 = vmatmul.mubr.f32.gmra.mrb[0].mxu0 %v3259
    %v3347 = vpop.f32.mrb[0].mxu0
    %v3348 = vadd.f32 0.0, %v3347
    %v3349 = vpop.f32.mrb[0].mxu0
    %3350 = vmatprep.mubr.f32.mxu0 0.0
    %3351 = vmatmul.mubr.f32.gmra.mrb[0].mxu0 %v3261
    %v3352 = vpop.f32.mrb[0].mxu0
    %v3353 = vadd.f32 0.0, %v3352
    %v3354 = vpop.f32.mrb[0].mxu0
    %3355 = vmatprep.mubr.f32.mxu0 0.0
    %3356 = vmatmul.mubr.f32.gmra.mrb[0].mxu0 %v3263
    %v3357 = vpop.f32.mrb[0].mxu0
    %v3358 = vadd.f32 0.0, %v3357
    %v3359 = vpop.f32.mrb[0].mxu0
    %3360 = vmatprep.mubr.f32.mxu0 0.0
    %3361 = vmatmul.mubr.f32.gmra.mrb[0].mxu0 %v3265
    %v3362 = vpop.f32.mrb[0].mxu0
    %v3363 = vadd.f32 0.0, %v3362
    %v3364 = vpop.f32.mrb[0].mxu0
    %3365 = vmatprep.mubr.f32.mxu0 0.0
    %3366 = vmatmul.mubr.f32.gmra.mrb[0].mxu0 %v3267
    %v3367 = vpop.f32.mrb[0].mxu0
    %v3368 = vadd.f32 0.0, %v3367
    %v3369 = vpop.f32.mrb[0].mxu0
    %3370 = vmatprep.mubr.f32.mxu0 0.0
    %3371 = vmatmul.mubr.f32.gmra.mrb[0].mxu0 %v3269
    %v3372 = vpop.f32.mrb[0].mxu0
    %v3373 = vadd.f32 0.0, %v3372
    %v3374 = vpop.f32.mrb[0].mxu0
    %3375 = vdwg.mxu0
    %v3376 = vadd.f32 %v3223, %v3338
    %v3377 = vadd.f32 %v3224, %v3343
    %v3378 = vadd.f32 %v3225, %v3348
    %v3379 = vadd.f32 %v3226, %v3353
    %v3380 = vadd.f32 %v3227, %v3358
    %v3381 = vadd.f32 %v3228, %v3363
    %v3382 = vadd.f32 %v3229, %v3368
    %v3383 = vadd.f32 %v3230, %v3373
    %v3384 = vxor.u32 %v3376, 2147483648
    %v3385 = vxor.u32 %v3377, 2147483648
    %v3386 = vxor.u32 %v3378, 2147483648
    %v3387 = vxor.u32 %v3379, 2147483648
    %v3388 = vxor.u32 %v3380, 2147483648
    %v3389 = vxor.u32 %v3381, 2147483648
    %v3390 = vxor.u32 %v3382, 2147483648
    %v3391 = vxor.u32 %v3383, 2147483648
    %v3392 = vmul.f32 %v3384, 1.442695
    %v3393 = vpow.pop %v3392
    %v3394 = vmul.f32 %v3385, 1.442695
    %v3395 = vpow.pop %v3394
    %v3396 = vmul.f32 %v3386, 1.442695
    %v3397 = vpow.pop %v3396
    %v3398 = vmul.f32 %v3387, 1.442695
    %v3399 = vpow.pop %v3398
    %v3400 = vmul.f32 %v3388, 1.442695
    %v3401 = vpow.pop %v3400
    %v3402 = vmul.f32 %v3389, 1.442695
    %v3403 = vpow.pop %v3402
    %v3404 = vmul.f32 %v3390, 1.442695
    %v3405 = vpow.pop %v3404
    %v3406 = vmul.f32 %v3391, 1.442695
    %v3407 = vpow.pop %v3406
    %v3408 = vadd.f32 %v3393, 1.0
    %v3409 = vadd.f32 %v3395, 1.0
    %v3410 = vadd.f32 %v3397, 1.0
    %v3411 = vadd.f32 %v3399, 1.0
    %v3412 = vadd.f32 %v3401, 1.0
    %v3413 = vadd.f32 %v3403, 1.0
    %v3414 = vadd.f32 %v3405, 1.0
    %v3415 = vadd.f32 %v3407, 1.0
    %v3416 = vrcp.pop %v3408
    %v3417 = vmul.f32 1.0, %v3416
    %v3418 = vrcp.pop %v3409
    %v3419 = vmul.f32 1.0, %v3418
    %v3420 = vrcp.pop %v3410
    %v3421 = vmul.f32 1.0, %v3420
    %v3422 = vrcp.pop %v3411
    %v3423 = vmul.f32 1.0, %v3422
    %v3424 = vrcp.pop %v3412
    %v3425 = vmul.f32 1.0, %v3424
    %v3426 = vrcp.pop %v3413
    %v3427 = vmul.f32 1.0, %v3426
    %v3428 = vrcp.pop %v3414
    %v3429 = vmul.f32 1.0, %v3428
    %v3430 = vrcp.pop %v3415
    %v3431 = vmul.f32 1.0, %v3430
    %v3432 = vtanh.pop %v3376
    %v3433 = vtanh.pop %v3377
    %v3434 = vtanh.pop %v3378
    %v3435 = vtanh.pop %v3379
    %v3436 = vtanh.pop %v3380
    %v3437 = vtanh.pop %v3381
    %v3438 = vtanh.pop %v3382
    %v3439 = vtanh.pop %v3383
    %v3440 = vmul.f32 %v3417, %v3214
    %v3441 = vmul.f32 %v3419, %v3215
    %v3442 = vmul.f32 %v3421, %v3216
    %v3443 = vmul.f32 %v3423, %v3217
    %v3444 = vmul.f32 %v3425, %v3218
    %v3445 = vmul.f32 %v3427, %v3219
    %v3446 = vmul.f32 %v3429, %v3220
    %v3447 = vmul.f32 %v3431, %v3221
    %3456 = vrot.lane.b32.xlu0 %v3432, 64
    %v3457 = vpop.permute.xlu0 %3456
    %3458 = vrot.lane.b32.xlu0 %v3433, 64
    %v3459 = vpop.permute.xlu0 %3458
    %3460 = vrot.lane.b32.xlu0 %v3434, 64
    %v3461 = vpop.permute.xlu0 %3460
    %3462 = vrot.lane.b32.xlu0 %v3435, 64
    %v3463 = vpop.permute.xlu0 %3462
    %3464 = vrot.lane.b32.xlu0 %v3436, 64
    %v3465 = vpop.permute.xlu0 %3464
    %3466 = vrot.lane.b32.xlu0 %v3437, 64
    %v3467 = vpop.permute.xlu0 %3466
    %3468 = vrot.lane.b32.xlu0 %v3438, 64
    %v3469 = vpop.permute.xlu0 %3468
    %3470 = vrot.lane.b32.xlu0 %v3439, 64
    %v3471 = vpop.permute.xlu0 %3470
    %v3480 = vmul.f32 %v3417, %v3457
    %v3481 = vmul.f32 %v3419, %v3459
    %v3482 = vmul.f32 %v3421, %v3461
    %v3483 = vmul.f32 %v3423, %v3463
    %v3484 = vmul.f32 %v3425, %v3465
    %v3485 = vmul.f32 %v3427, %v3467
    %v3486 = vmul.f32 %v3429, %v3469
    %v3487 = vmul.f32 %v3431, %v3471
    %3496 = vrot.lane.b32.xlu0 %v3480, 32
    %v3497 = vpop.permute.xlu0 %3496
    %3498 = vrot.lane.b32.xlu0 %v3481, 32
    %v3499 = vpop.permute.xlu0 %3498
    %3500 = vrot.lane.b32.xlu0 %v3482, 32
    %v3501 = vpop.permute.xlu0 %3500
    %3502 = vrot.lane.b32.xlu0 %v3483, 32
    %v3503 = vpop.permute.xlu0 %3502
    %3504 = vrot.lane.b32.xlu0 %v3484, 32
    %v3505 = vpop.permute.xlu0 %3504
    %3506 = vrot.lane.b32.xlu0 %v3485, 32
    %v3507 = vpop.permute.xlu0 %3506
    %3508 = vrot.lane.b32.xlu0 %v3486, 32
    %v3509 = vpop.permute.xlu0 %3508
    %3510 = vrot.lane.b32.xlu0 %v3487, 32
    %v3511 = vpop.permute.xlu0 %3510
    %v3520 = vadd.f32 %v3440, %v3497
    %v3521 = vadd.f32 %v3441, %v3499
    %v3522 = vadd.f32 %v3442, %v3501
    %v3523 = vadd.f32 %v3443, %v3503
    %v3524 = vadd.f32 %v3444, %v3505
    %v3525 = vadd.f32 %v3445, %v3507
    %v3526 = vadd.f32 %v3446, %v3509
    %v3527 = vadd.f32 %v3447, %v3511
    %v3528 = vtanh.pop %v3520
    %v3529 = vtanh.pop %v3521
    %v3530 = vtanh.pop %v3522
    %v3531 = vtanh.pop %v3523
    %v3532 = vtanh.pop %v3524
    %v3533 = vtanh.pop %v3525
    %v3534 = vtanh.pop %v3526
    %v3535 = vtanh.pop %v3527
    %3544 = vrot.lane.b32.xlu0 %v3528, 64
    %v3545 = vpop.permute.xlu0 %3544
    %3546 = vrot.lane.b32.xlu0 %v3529, 64
    %v3547 = vpop.permute.xlu0 %3546
    %3548 = vrot.lane.b32.xlu0 %v3530, 64
    %v3549 = vpop.permute.xlu0 %3548
    %3550 = vrot.lane.b32.xlu0 %v3531, 64
    %v3551 = vpop.permute.xlu0 %3550
    %3552 = vrot.lane.b32.xlu0 %v3532, 64
    %v3553 = vpop.permute.xlu0 %3552
    %3554 = vrot.lane.b32.xlu0 %v3533, 64
    %v3555 = vpop.permute.xlu0 %3554
    %3556 = vrot.lane.b32.xlu0 %v3534, 64
    %v3557 = vpop.permute.xlu0 %3556
    %3558 = vrot.lane.b32.xlu0 %v3535, 64
    %v3559 = vpop.permute.xlu0 %3558
    %v3568 = vmul.f32 %v3417, %v3545
    %v3569 = vmul.f32 %v3419, %v3547
    %v3570 = vmul.f32 %v3421, %v3549
    %v3571 = vmul.f32 %v3423, %v3551
    %v3572 = vmul.f32 %v3425, %v3553
    %v3573 = vmul.f32 %v3427, %v3555
    %v3574 = vmul.f32 %v3429, %v3557
    %v3575 = vmul.f32 %v3431, %v3559
    %3584 = vrot.lane.b32.xlu0 %v3568, 32
    %v3585 = vpop.permute.xlu0 %3584
    %3586 = vrot.lane.b32.xlu0 %v3569, 32
    %v3587 = vpop.permute.xlu0 %3586
    %3588 = vrot.lane.b32.xlu0 %v3570, 32
    %v3589 = vpop.permute.xlu0 %3588
    %3590 = vrot.lane.b32.xlu0 %v3571, 32
    %v3591 = vpop.permute.xlu0 %3590
    %3592 = vrot.lane.b32.xlu0 %v3572, 32
    %v3593 = vpop.permute.xlu0 %3592
    %3594 = vrot.lane.b32.xlu0 %v3573, 32
    %v3595 = vpop.permute.xlu0 %3594
    %3596 = vrot.lane.b32.xlu0 %v3574, 32
    %v3597 = vpop.permute.xlu0 %3596
    %3598 = vrot.lane.b32.xlu0 %v3575, 32
    %v3599 = vpop.permute.xlu0 %3598
    %s3608 = scalar_lea.vmem [#allocation2], 448
    %3609 = vst.msk [vmem:[%s3608] sm:$0xff] %vm55, %v3585
    %3610 = vst.msk [vmem:[%s3608 + $0x8] sm:$0xff] %vm55, %v3587
    %3611 = vst.msk [vmem:[%s3608 + $0x10] sm:$0xff] %vm55, %v3589
    %3612 = vst.msk [vmem:[%s3608 + $0x18] sm:$0xff] %vm55, %v3591
    %3613 = vst.msk [vmem:[%s3608 + $0x20] sm:$0xff] %vm55, %v3593
    %3614 = vst.msk [vmem:[%s3608 + $0x28] sm:$0xff] %vm55, %v3595
    %3615 = vst.msk [vmem:[%s3608 + $0x30] sm:$0xff] %vm55, %v3597
    %3616 = vst.msk [vmem:[%s3608 + $0x38] sm:$0xff] %vm55, %v3599
    %3617 = vset.pattern.permute.xlu0 0
    %3618 = vperm.xlu0 %3617, %v39
    %v3619 = vpop.permute.xlu0 %3618
    %3620 = vset.pattern.permute.xlu0 0
    %3621 = vperm.xlu0 %3620, %v40
    %v3622 = vpop.permute.xlu0 %3621
    %3623 = vset.pattern.permute.xlu0 0
    %3624 = vperm.xlu0 %3623, %v41
    %v3625 = vpop.permute.xlu0 %3624
    %3626 = vset.pattern.permute.xlu0 0
    %3627 = vperm.xlu0 %3626, %v42
    %v3628 = vpop.permute.xlu0 %3627
    %3629 = vset.pattern.permute.xlu0 0
    %3630 = vperm.xlu0 %3629, %v43
    %v3631 = vpop.permute.xlu0 %3630
    %3632 = vset.pattern.permute.xlu0 0
    %3633 = vperm.xlu0 %3632, %v44
    %v3634 = vpop.permute.xlu0 %3633
    %3635 = vset.pattern.permute.xlu0 0
    %3636 = vperm.xlu0 %3635, %v45
    %v3637 = vpop.permute.xlu0 %3636
    %3638 = vset.pattern.permute.xlu0 0
    %3639 = vperm.xlu0 %3638, %v46
    %v3640 = vpop.permute.xlu0 %3639
    %vm3641 = vcmp.gt.s32.totalorder %v3619, 0
    %vm3642 = vcmp.gt.s32.totalorder %v3622, 0
    %vm3643 = vcmp.gt.s32.totalorder %v3625, 0
    %vm3644 = vcmp.gt.s32.totalorder %v3628, 0
    %vm3645 = vcmp.gt.s32.totalorder %v3631, 0
    %vm3646 = vcmp.gt.s32.totalorder %v3634, 0
    %vm3647 = vcmp.gt.s32.totalorder %v3637, 0
    %vm3648 = vcmp.gt.s32.totalorder %v3640, 0
    %vm3649 = vcmp.gt.s32.totalorder %v3619, 1
    %vm3650 = vcmp.gt.s32.totalorder %v3622, 1
    %vm3651 = vcmp.gt.s32.totalorder %v3625, 1
    %vm3652 = vcmp.gt.s32.totalorder %v3628, 1
    %vm3653 = vcmp.gt.s32.totalorder %v3631, 1
    %vm3654 = vcmp.gt.s32.totalorder %v3634, 1
    %vm3655 = vcmp.gt.s32.totalorder %v3637, 1
    %vm3656 = vcmp.gt.s32.totalorder %v3640, 1
    %vm3657 = vcmp.gt.s32.totalorder %v3619, 2
    %vm3658 = vcmp.gt.s32.totalorder %v3622, 2
    %vm3659 = vcmp.gt.s32.totalorder %v3625, 2
    %vm3660 = vcmp.gt.s32.totalorder %v3628, 2
    %vm3661 = vcmp.gt.s32.totalorder %v3631, 2
    %vm3662 = vcmp.gt.s32.totalorder %v3634, 2
    %vm3663 = vcmp.gt.s32.totalorder %v3637, 2
    %vm3664 = vcmp.gt.s32.totalorder %v3640, 2
    %vm3665 = vcmp.gt.s32.totalorder %v3619, 3
    %vm3666 = vcmp.gt.s32.totalorder %v3622, 3
    %vm3667 = vcmp.gt.s32.totalorder %v3625, 3
    %vm3668 = vcmp.gt.s32.totalorder %v3628, 3
    %vm3669 = vcmp.gt.s32.totalorder %v3631, 3
    %vm3670 = vcmp.gt.s32.totalorder %v3634, 3
    %vm3671 = vcmp.gt.s32.totalorder %v3637, 3
    %vm3672 = vcmp.gt.s32.totalorder %v3640, 3
    %vm3673 = vcmp.gt.s32.totalorder %v3619, 4
    %vm3674 = vcmp.gt.s32.totalorder %v3622, 4
    %vm3675 = vcmp.gt.s32.totalorder %v3625, 4
    %vm3676 = vcmp.gt.s32.totalorder %v3628, 4
    %vm3677 = vcmp.gt.s32.totalorder %v3631, 4
    %vm3678 = vcmp.gt.s32.totalorder %v3634, 4
    %vm3679 = vcmp.gt.s32.totalorder %v3637, 4
    %vm3680 = vcmp.gt.s32.totalorder %v3640, 4
    %vm3681 = vcmp.gt.s32.totalorder %v3619, 5
    %vm3682 = vcmp.gt.s32.totalorder %v3622, 5
    %vm3683 = vcmp.gt.s32.totalorder %v3625, 5
    %vm3684 = vcmp.gt.s32.totalorder %v3628, 5
    %vm3685 = vcmp.gt.s32.totalorder %v3631, 5
    %vm3686 = vcmp.gt.s32.totalorder %v3634, 5
    %vm3687 = vcmp.gt.s32.totalorder %v3637, 5
    %vm3688 = vcmp.gt.s32.totalorder %v3640, 5
    %vm3689 = vcmp.gt.s32.totalorder %v3619, 6
    %vm3690 = vcmp.gt.s32.totalorder %v3622, 6
    %vm3691 = vcmp.gt.s32.totalorder %v3625, 6
    %vm3692 = vcmp.gt.s32.totalorder %v3628, 6
    %vm3693 = vcmp.gt.s32.totalorder %v3631, 6
    %vm3694 = vcmp.gt.s32.totalorder %v3634, 6
    %vm3695 = vcmp.gt.s32.totalorder %v3637, 6
    %vm3696 = vcmp.gt.s32.totalorder %v3640, 6
    %vm3697 = vcmp.gt.s32.totalorder %v3619, 7
    %vm3698 = vcmp.gt.s32.totalorder %v3622, 7
    %vm3699 = vcmp.gt.s32.totalorder %v3625, 7
    %vm3700 = vcmp.gt.s32.totalorder %v3628, 7
    %vm3701 = vcmp.gt.s32.totalorder %v3631, 7
    %vm3702 = vcmp.gt.s32.totalorder %v3634, 7
    %vm3703 = vcmp.gt.s32.totalorder %v3637, 7
    %vm3704 = vcmp.gt.s32.totalorder %v3640, 7
    %v3705 = vld [vmem:[#allocation2] sm:$0xff]
    %v3706 = vld [vmem:[#allocation2 + $0x8] sm:$0xff]
    %v3707 = vld [vmem:[#allocation2 + $0x10] sm:$0xff]
    %v3708 = vld [vmem:[#allocation2 + $0x18] sm:$0xff]
    %v3709 = vld [vmem:[#allocation2 + $0x20] sm:$0xff]
    %v3710 = vld [vmem:[#allocation2 + $0x28] sm:$0xff]
    %v3711 = vld [vmem:[#allocation2 + $0x30] sm:$0xff]
    %v3712 = vld [vmem:[#allocation2 + $0x38] sm:$0xff]
    %v3713 = vld [vmem:[#allocation2 + $0x40] sm:$0xff]
    %v3714 = vld [vmem:[#allocation2 + $0x48] sm:$0xff]
    %v3715 = vld [vmem:[#allocation2 + $0x50] sm:$0xff]
    %v3716 = vld [vmem:[#allocation2 + $0x58] sm:$0xff]
    %v3717 = vld [vmem:[#allocation2 + $0x60] sm:$0xff]
    %v3718 = vld [vmem:[#allocation2 + $0x68] sm:$0xff]
    %v3719 = vld [vmem:[#allocation2 + $0x70] sm:$0xff]
    %v3720 = vld [vmem:[#allocation2 + $0x78] sm:$0xff]
    %v3721 = vld [vmem:[#allocation2 + $0x80] sm:$0xff]
    %v3722 = vld [vmem:[#allocation2 + $0x88] sm:$0xff]
    %v3723 = vld [vmem:[#allocation2 + $0x90] sm:$0xff]
    %v3724 = vld [vmem:[#allocation2 + $0x98] sm:$0xff]
    %v3725 = vld [vmem:[#allocation2 + $0xa0] sm:$0xff]
    %v3726 = vld [vmem:[#allocation2 + $0xa8] sm:$0xff]
    %v3727 = vld [vmem:[#allocation2 + $0xb0] sm:$0xff]
    %v3728 = vld [vmem:[#allocation2 + $0xb8] sm:$0xff]
    %v3729 = vld [vmem:[#allocation2 + $0xc0] sm:$0xff]
    %v3730 = vld [vmem:[#allocation2 + $0xc8] sm:$0xff]
    %v3731 = vld [vmem:[#allocation2 + $0xd0] sm:$0xff]
    %v3732 = vld [vmem:[#allocation2 + $0xd8] sm:$0xff]
    %v3733 = vld [vmem:[#allocation2 + $0xe0] sm:$0xff]
    %v3734 = vld [vmem:[#allocation2 + $0xe8] sm:$0xff]
    %v3735 = vld [vmem:[#allocation2 + $0xf0] sm:$0xff]
    %v3736 = vld [vmem:[#allocation2 + $0xf8] sm:$0xff]
    %v3737 = vld [vmem:[#allocation2 + $0x100] sm:$0xff]
    %v3738 = vld [vmem:[#allocation2 + $0x108] sm:$0xff]
    %v3739 = vld [vmem:[#allocation2 + $0x110] sm:$0xff]
    %v3740 = vld [vmem:[#allocation2 + $0x118] sm:$0xff]
    %v3741 = vld [vmem:[#allocation2 + $0x120] sm:$0xff]
    %v3742 = vld [vmem:[#allocation2 + $0x128] sm:$0xff]
    %v3743 = vld [vmem:[#allocation2 + $0x130] sm:$0xff]
    %v3744 = vld [vmem:[#allocation2 + $0x138] sm:$0xff]
    %v3745 = vld [vmem:[#allocation2 + $0x140] sm:$0xff]
    %v3746 = vld [vmem:[#allocation2 + $0x148] sm:$0xff]
    %v3747 = vld [vmem:[#allocation2 + $0x150] sm:$0xff]
    %v3748 = vld [vmem:[#allocation2 + $0x158] sm:$0xff]
    %v3749 = vld [vmem:[#allocation2 + $0x160] sm:$0xff]
    %v3750 = vld [vmem:[#allocation2 + $0x168] sm:$0xff]
    %v3751 = vld [vmem:[#allocation2 + $0x170] sm:$0xff]
    %v3752 = vld [vmem:[#allocation2 + $0x178] sm:$0xff]
    %v3753 = vld [vmem:[#allocation2 + $0x180] sm:$0xff]
    %v3754 = vld [vmem:[#allocation2 + $0x188] sm:$0xff]
    %v3755 = vld [vmem:[#allocation2 + $0x190] sm:$0xff]
    %v3756 = vld [vmem:[#allocation2 + $0x198] sm:$0xff]
    %v3757 = vld [vmem:[#allocation2 + $0x1a0] sm:$0xff]
    %v3758 = vld [vmem:[#allocation2 + $0x1a8] sm:$0xff]
    %v3759 = vld [vmem:[#allocation2 + $0x1b0] sm:$0xff]
    %v3760 = vld [vmem:[#allocation2 + $0x1b8] sm:$0xff]
    %v3761 = vld [vmem:[#allocation2 + $0x1c0] sm:$0xff]
    %v3762 = vld [vmem:[#allocation2 + $0x1c8] sm:$0xff]
    %v3763 = vld [vmem:[#allocation2 + $0x1d0] sm:$0xff]
    %v3764 = vld [vmem:[#allocation2 + $0x1d8] sm:$0xff]
    %v3765 = vld [vmem:[#allocation2 + $0x1e0] sm:$0xff]
    %v3766 = vld [vmem:[#allocation2 + $0x1e8] sm:$0xff]
    %v3767 = vld [vmem:[#allocation2 + $0x1f0] sm:$0xff]
    %v3768 = vld [vmem:[#allocation2 + $0x1f8] sm:$0xff]
    %v3769 = vsel %vm3641, %v3705, 0.0
    %v3770 = vsel %vm3642, %v3706, 0.0
    %v3771 = vsel %vm3643, %v3707, 0.0
    %v3772 = vsel %vm3644, %v3708, 0.0
    %v3773 = vsel %vm3645, %v3709, 0.0
    %v3774 = vsel %vm3646, %v3710, 0.0
    %v3775 = vsel %vm3647, %v3711, 0.0
    %v3776 = vsel %vm3648, %v3712, 0.0
    %v3777 = vsel %vm3649, %v3713, 0.0
    %v3778 = vsel %vm3650, %v3714, 0.0
    %v3779 = vsel %vm3651, %v3715, 0.0
    %v3780 = vsel %vm3652, %v3716, 0.0
    %v3781 = vsel %vm3653, %v3717, 0.0
    %v3782 = vsel %vm3654, %v3718, 0.0
    %v3783 = vsel %vm3655, %v3719, 0.0
    %v3784 = vsel %vm3656, %v3720, 0.0
    %v3785 = vsel %vm3657, %v3721, 0.0
    %v3786 = vsel %vm3658, %v3722, 0.0
    %v3787 = vsel %vm3659, %v3723, 0.0
    %v3788 = vsel %vm3660, %v3724, 0.0
    %v3789 = vsel %vm3661, %v3725, 0.0
    %v3790 = vsel %vm3662, %v3726, 0.0
    %v3791 = vsel %vm3663, %v3727, 0.0
    %v3792 = vsel %vm3664, %v3728, 0.0
    %v3793 = vsel %vm3665, %v3729, 0.0
    %v3794 = vsel %vm3666, %v3730, 0.0
    %v3795 = vsel %vm3667, %v3731, 0.0
    %v3796 = vsel %vm3668, %v3732, 0.0
    %v3797 = vsel %vm3669, %v3733, 0.0
    %v3798 = vsel %vm3670, %v3734, 0.0
    %v3799 = vsel %vm3671, %v3735, 0.0
    %v3800 = vsel %vm3672, %v3736, 0.0
    %v3801 = vsel %vm3673, %v3737, 0.0
    %v3802 = vsel %vm3674, %v3738, 0.0
    %v3803 = vsel %vm3675, %v3739, 0.0
    %v3804 = vsel %vm3676, %v3740, 0.0
    %v3805 = vsel %vm3677, %v3741, 0.0
    %v3806 = vsel %vm3678, %v3742, 0.0
    %v3807 = vsel %vm3679, %v3743, 0.0
    %v3808 = vsel %vm3680, %v3744, 0.0
    %v3809 = vsel %vm3681, %v3745, 0.0
    %v3810 = vsel %vm3682, %v3746, 0.0
    %v3811 = vsel %vm3683, %v3747, 0.0
    %v3812 = vsel %vm3684, %v3748, 0.0
    %v3813 = vsel %vm3685, %v3749, 0.0
    %v3814 = vsel %vm3686, %v3750, 0.0
    %v3815 = vsel %vm3687, %v3751, 0.0
    %v3816 = vsel %vm3688, %v3752, 0.0
    %v3817 = vsel %vm3689, %v3753, 0.0
    %v3818 = vsel %vm3690, %v3754, 0.0
    %v3819 = vsel %vm3691, %v3755, 0.0
    %v3820 = vsel %vm3692, %v3756, 0.0
    %v3821 = vsel %vm3693, %v3757, 0.0
    %v3822 = vsel %vm3694, %v3758, 0.0
    %v3823 = vsel %vm3695, %v3759, 0.0
    %v3824 = vsel %vm3696, %v3760, 0.0
    %v3825 = vsel %vm3697, %v3761, 0.0
    %v3826 = vsel %vm3698, %v3762, 0.0
    %v3827 = vsel %vm3699, %v3763, 0.0
    %v3828 = vsel %vm3700, %v3764, 0.0
    %v3829 = vsel %vm3701, %v3765, 0.0
    %v3830 = vsel %vm3702, %v3766, 0.0
    %v3831 = vsel %vm3703, %v3767, 0.0
    %v3832 = vsel %vm3704, %v3768, 0.0
    %v3833 = vld [vmem:[%s3] sm:$0xff]
    %v3834 = vld [vmem:[%s3 + $0x8] sm:$0xff]
    %v3835 = vld [vmem:[%s3 + $0x10] sm:$0xff]
    %v3836 = vld [vmem:[%s3 + $0x18] sm:$0xff]
    %v3837 = vld [vmem:[%s4] sm:$0x1]
    %v3839 = vlaneseq
    %v3840 = vshrl.u32 %v3839, 7
    %v3841 = vsub.s32 0, %v3840
    %v3842 = vrot.slane %v3837, %v3841
    %v3845 = vsel %vm55, %v3769, 0
    %v3848 = vsel %vm55, %v3770, 0
    %v3851 = vsel %vm55, %v3771, 0
    %v3854 = vsel %vm55, %v3772, 0
    %v3857 = vsel %vm55, %v3773, 0
    %v3860 = vsel %vm55, %v3774, 0
    %v3863 = vsel %vm55, %v3775, 0
    %v3866 = vsel %vm55, %v3776, 0
    %v3869 = vsel %vm55, %v3777, 0
    %v3872 = vsel %vm55, %v3778, 0
    %v3875 = vsel %vm55, %v3779, 0
    %v3878 = vsel %vm55, %v3780, 0
    %v3881 = vsel %vm55, %v3781, 0
    %v3884 = vsel %vm55, %v3782, 0
    %v3887 = vsel %vm55, %v3783, 0
    %v3890 = vsel %vm55, %v3784, 0
    %v3893 = vsel %vm55, %v3785, 0
    %v3896 = vsel %vm55, %v3786, 0
    %v3899 = vsel %vm55, %v3787, 0
    %v3902 = vsel %vm55, %v3788, 0
    %v3905 = vsel %vm55, %v3789, 0
    %v3908 = vsel %vm55, %v3790, 0
    %v3911 = vsel %vm55, %v3791, 0
    %v3914 = vsel %vm55, %v3792, 0
    %v3917 = vsel %vm55, %v3793, 0
    %v3920 = vsel %vm55, %v3794, 0
    %v3923 = vsel %vm55, %v3795, 0
    %v3926 = vsel %vm55, %v3796, 0
    %v3929 = vsel %vm55, %v3797, 0
    %v3932 = vsel %vm55, %v3798, 0
    %v3935 = vsel %vm55, %v3799, 0
    %v3938 = vsel %vm55, %v3800, 0
    %v3941 = vsel %vm55, %v3801, 0
    %v3944 = vsel %vm55, %v3802, 0
    %v3947 = vsel %vm55, %v3803, 0
    %v3950 = vsel %vm55, %v3804, 0
    %v3953 = vsel %vm55, %v3805, 0
    %v3956 = vsel %vm55, %v3806, 0
    %v3959 = vsel %vm55, %v3807, 0
    %v3962 = vsel %vm55, %v3808, 0
    %v3965 = vsel %vm55, %v3809, 0
    %v3968 = vsel %vm55, %v3810, 0
    %v3971 = vsel %vm55, %v3811, 0
    %v3974 = vsel %vm55, %v3812, 0
    %v3977 = vsel %vm55, %v3813, 0
    %v3980 = vsel %vm55, %v3814, 0
    %v3983 = vsel %vm55, %v3815, 0
    %v3986 = vsel %vm55, %v3816, 0
    %v3989 = vsel %vm55, %v3817, 0
    %v3992 = vsel %vm55, %v3818, 0
    %v3995 = vsel %vm55, %v3819, 0
    %v3998 = vsel %vm55, %v3820, 0
    %v4001 = vsel %vm55, %v3821, 0
    %v4004 = vsel %vm55, %v3822, 0
    %v4007 = vsel %vm55, %v3823, 0
    %v4010 = vsel %vm55, %v3824, 0
    %v4013 = vsel %vm55, %v3825, 0
    %v4016 = vsel %vm55, %v3826, 0
    %v4019 = vsel %vm55, %v3827, 0
    %v4022 = vsel %vm55, %v3828, 0
    %v4025 = vsel %vm55, %v3829, 0
    %v4028 = vsel %vm55, %v3830, 0
    %v4031 = vsel %vm55, %v3831, 0
    %v4034 = vsel %vm55, %v3832, 0
    %4036 = vmatprep.subr.mxu0 0.0
    %4037 = vmatpush1.msra.mxu0 %v3833
    %4038 = vmatprep.subr.mxu0 0.0
    %4039 = vmatpush1.msra.mxu0 %v3834
    %4040 = vmatprep.subr.mxu0 0.0
    %4041 = vmatpush1.msra.mxu0 %v3835
    %4042 = vmatprep.subr.mxu0 0.0
    %4043 = vmatpush1.msra.mxu0 %v3836
    %4044 = vmatprep.subr.mxu0 0.0
    %4045 = vmatpush1.msra.mxu0 0.0
    %4046 = vmatprep.subr.mxu0 0.0
    %4047 = vmatpush1.msra.mxu0 0.0
    %4048 = vmatprep.subr.mxu0 0.0
    %4049 = vmatpush1.msra.mxu0 0.0
    %4050 = vmatprep.subr.mxu0 0.0
    %4051 = vmatpush1.msra.mxu0 0.0
    %4052 = vmatprep.subr.mxu0 0.0
    %4053 = vmatpush1.msra.mxu0 0.0
    %4054 = vmatprep.subr.mxu0 0.0
    %4055 = vmatpush1.msra.mxu0 0.0
    %4056 = vmatprep.subr.mxu0 0.0
    %4057 = vmatpush1.msra.mxu0 0.0
    %4058 = vmatprep.subr.mxu0 0.0
    %4059 = vmatpush1.msra.mxu0 0.0
    %4060 = vmatprep.subr.mxu0 0.0
    %4061 = vmatpush1.msra.mxu0 0.0
    %4062 = vmatprep.subr.mxu0 0.0
    %4063 = vmatpush1.msra.mxu0 0.0
    %4064 = vmatprep.subr.mxu0 0.0
    %4065 = vmatpush1.msra.mxu0 0.0
    %4066 = vmatprep.subr.mxu0 0.0
    %4067 = vmatpush1.msra.mxu0 0.0
    %4068 = vmatprep.subr.mxu0 0.0
    %4069 = vmatpush1.msra.mxu0 0.0
    %4070 = vmatprep.subr.mxu0 0.0
    %4071 = vmatpush1.msra.mxu0 0.0
    %4072 = vmatprep.subr.mxu0 0.0
    %4073 = vmatpush1.msra.mxu0 0.0
    %4074 = vmatprep.subr.mxu0 0.0
    %4075 = vmatpush1.msra.mxu0 0.0
    %4076 = vmatprep.subr.mxu0 0.0
    %4077 = vmatpush1.msra.mxu0 0.0
    %4078 = vmatprep.subr.mxu0 0.0
    %4079 = vmatpush1.msra.mxu0 0.0
    %4080 = vmatprep.subr.mxu0 0.0
    %4081 = vmatpush1.msra.mxu0 0.0
    %4082 = vmatprep.subr.mxu0 0.0
    %4083 = vmatpush1.msra.mxu0 0.0
    %4084 = vmatprep.subr.mxu0 0.0
    %4085 = vmatpush1.msra.mxu0 0.0
    %4086 = vmatprep.subr.mxu0 0.0
    %4087 = vmatpush1.msra.mxu0 0.0
    %4088 = vmatprep.subr.mxu0 0.0
    %4089 = vmatpush1.msra.mxu0 0.0
    %4090 = vmatprep.subr.mxu0 0.0
    %4091 = vmatpush1.msra.mxu0 0.0
    %4092 = vmatprep.subr.mxu0 0.0
    %4093 = vmatpush1.msra.mxu0 0.0
    %4094 = vmatprep.subr.mxu0 0.0
    %4095 = vmatpush1.msra.mxu0 0.0
    %4096 = vmatprep.subr.mxu0 0.0
    %4097 = vmatpush1.msra.mxu0 0.0
    %4098 = vmatprep.subr.mxu0 0.0
    %4099 = vmatpush1.msra.mxu0 0.0
    %4100 = vmatprep.mubr.f32.mxu0 0.0
    %4101 = vmatmul.mubr.f32.gmra.mrb[0].mxu0 %v3845
    %v4102 = vpop.f32.mrb[0].mxu0
    %v4103 = vadd.f32 %v3842, %v4102
    %v4104 = vpop.f32.mrb[0].mxu0
    %4105 = vmatprep.mubr.f32.mxu0 0.0
    %4106 = vmatmul.mubr.f32.gmra.mrb[0].mxu0 %v3848
    %v4107 = vpop.f32.mrb[0].mxu0
    %v4108 = vadd.f32 %v3842, %v4107
    %v4109 = vpop.f32.mrb[0].mxu0
    %4110 = vmatprep.mubr.f32.mxu0 0.0
    %4111 = vmatmul.mubr.f32.gmra.mrb[0].mxu0 %v3851
    %v4112 = vpop.f32.mrb[0].mxu0
    %v4113 = vadd.f32 %v3842, %v4112
    %v4114 = vpop.f32.mrb[0].mxu0
    %4115 = vmatprep.mubr.f32.mxu0 0.0
    %4116 = vmatmul.mubr.f32.gmra.mrb[0].mxu0 %v3854
    %v4117 = vpop.f32.mrb[0].mxu0
    %v4118 = vadd.f32 %v3842, %v4117
    %v4119 = vpop.f32.mrb[0].mxu0
    %4120 = vmatprep.mubr.f32.mxu0 0.0
    %4121 = vmatmul.mubr.f32.gmra.mrb[0].mxu0 %v3857
    %v4122 = vpop.f32.mrb[0].mxu0
    %v4123 = vadd.f32 %v3842, %v4122
    %v4124 = vpop.f32.mrb[0].mxu0
    %4125 = vmatprep.mubr.f32.mxu0 0.0
    %4126 = vmatmul.mubr.f32.gmra.mrb[0].mxu0 %v3860
    %v4127 = vpop.f32.mrb[0].mxu0
    %v4128 = vadd.f32 %v3842, %v4127
    %v4129 = vpop.f32.mrb[0].mxu0
    %4130 = vmatprep.mubr.f32.mxu0 0.0
    %4131 = vmatmul.mubr.f32.gmra.mrb[0].mxu0 %v3863
    %v4132 = vpop.f32.mrb[0].mxu0
    %v4133 = vadd.f32 %v3842, %v4132
    %v4134 = vpop.f32.mrb[0].mxu0
    %4135 = vmatprep.mubr.f32.mxu0 0.0
    %4136 = vmatmul.mubr.f32.gmra.mrb[0].mxu0 %v3866
    %v4137 = vpop.f32.mrb[0].mxu0
    %v4138 = vadd.f32 %v3842, %v4137
    %v4139 = vpop.f32.mrb[0].mxu0
    %4140 = vmatprep.mubr.f32.mxu0 0.0
    %4141 = vmatmul.mubr.f32.gmra.mrb[0].mxu0 %v3869
    %v4142 = vpop.f32.mrb[0].mxu0
    %v4143 = vadd.f32 %v3842, %v4142
    %v4144 = vpop.f32.mrb[0].mxu0
    %4145 = vmatprep.mubr.f32.mxu0 0.0
    %4146 = vmatmul.mubr.f32.gmra.mrb[0].mxu0 %v3872
    %v4147 = vpop.f32.mrb[0].mxu0
    %v4148 = vadd.f32 %v3842, %v4147
    %v4149 = vpop.f32.mrb[0].mxu0
    %4150 = vmatprep.mubr.f32.mxu0 0.0
    %4151 = vmatmul.mubr.f32.gmra.mrb[0].mxu0 %v3875
    %v4152 = vpop.f32.mrb[0].mxu0
    %v4153 = vadd.f32 %v3842, %v4152
    %v4154 = vpop.f32.mrb[0].mxu0
    %4155 = vmatprep.mubr.f32.mxu0 0.0
    %4156 = vmatmul.mubr.f32.gmra.mrb[0].mxu0 %v3878
    %v4157 = vpop.f32.mrb[0].mxu0
    %v4158 = vadd.f32 %v3842, %v4157
    %v4159 = vpop.f32.mrb[0].mxu0
    %4160 = vmatprep.mubr.f32.mxu0 0.0
    %4161 = vmatmul.mubr.f32.gmra.mrb[0].mxu0 %v3881
    %v4162 = vpop.f32.mrb[0].mxu0
    %v4163 = vadd.f32 %v3842, %v4162
    %v4164 = vpop.f32.mrb[0].mxu0
    %4165 = vmatprep.mubr.f32.mxu0 0.0
    %4166 = vmatmul.mubr.f32.gmra.mrb[0].mxu0 %v3884
    %v4167 = vpop.f32.mrb[0].mxu0
    %v4168 = vadd.f32 %v3842, %v4167
    %v4169 = vpop.f32.mrb[0].mxu0
    %4170 = vmatprep.mubr.f32.mxu0 0.0
    %4171 = vmatmul.mubr.f32.gmra.mrb[0].mxu0 %v3887
    %v4172 = vpop.f32.mrb[0].mxu0
    %v4173 = vadd.f32 %v3842, %v4172
    %v4174 = vpop.f32.mrb[0].mxu0
    %4175 = vmatprep.mubr.f32.mxu0 0.0
    %4176 = vmatmul.mubr.f32.gmra.mrb[0].mxu0 %v3890
    %v4177 = vpop.f32.mrb[0].mxu0
    %v4178 = vadd.f32 %v3842, %v4177
    %v4179 = vpop.f32.mrb[0].mxu0
    %4180 = vmatprep.mubr.f32.mxu0 0.0
    %4181 = vmatmul.mubr.f32.gmra.mrb[0].mxu0 %v3893
    %v4182 = vpop.f32.mrb[0].mxu0
    %v4183 = vadd.f32 %v3842, %v4182
    %v4184 = vpop.f32.mrb[0].mxu0
    %4185 = vmatprep.mubr.f32.mxu0 0.0
    %4186 = vmatmul.mubr.f32.gmra.mrb[0].mxu0 %v3896
    %v4187 = vpop.f32.mrb[0].mxu0
    %v4188 = vadd.f32 %v3842, %v4187
    %v4189 = vpop.f32.mrb[0].mxu0
    %4190 = vmatprep.mubr.f32.mxu0 0.0
    %4191 = vmatmul.mubr.f32.gmra.mrb[0].mxu0 %v3899
    %v4192 = vpop.f32.mrb[0].mxu0
    %v4193 = vadd.f32 %v3842, %v4192
    %v4194 = vpop.f32.mrb[0].mxu0
    %4195 = vmatprep.mubr.f32.mxu0 0.0
    %4196 = vmatmul.mubr.f32.gmra.mrb[0].mxu0 %v3902
    %v4197 = vpop.f32.mrb[0].mxu0
    %v4198 = vadd.f32 %v3842, %v4197
    %v4199 = vpop.f32.mrb[0].mxu0
    %4200 = vmatprep.mubr.f32.mxu0 0.0
    %4201 = vmatmul.mubr.f32.gmra.mrb[0].mxu0 %v3905
    %v4202 = vpop.f32.mrb[0].mxu0
    %v4203 = vadd.f32 %v3842, %v4202
    %v4204 = vpop.f32.mrb[0].mxu0
    %4205 = vmatprep.mubr.f32.mxu0 0.0
    %4206 = vmatmul.mubr.f32.gmra.mrb[0].mxu0 %v3908
    %v4207 = vpop.f32.mrb[0].mxu0
    %v4208 = vadd.f32 %v3842, %v4207
    %v4209 = vpop.f32.mrb[0].mxu0
    %4210 = vmatprep.mubr.f32.mxu0 0.0
    %4211 = vmatmul.mubr.f32.gmra.mrb[0].mxu0 %v3911
    %v4212 = vpop.f32.mrb[0].mxu0
    %v4213 = vadd.f32 %v3842, %v4212
    %v4214 = vpop.f32.mrb[0].mxu0
    %4215 = vmatprep.mubr.f32.mxu0 0.0
    %4216 = vmatmul.mubr.f32.gmra.mrb[0].mxu0 %v3914
    %v4217 = vpop.f32.mrb[0].mxu0
    %v4218 = vadd.f32 %v3842, %v4217
    %v4219 = vpop.f32.mrb[0].mxu0
    %4220 = vmatprep.mubr.f32.mxu0 0.0
    %4221 = vmatmul.mubr.f32.gmra.mrb[0].mxu0 %v3917
    %v4222 = vpop.f32.mrb[0].mxu0
    %v4223 = vadd.f32 %v3842, %v4222
    %v4224 = vpop.f32.mrb[0].mxu0
    %4225 = vmatprep.mubr.f32.mxu0 0.0
    %4226 = vmatmul.mubr.f32.gmra.mrb[0].mxu0 %v3920
    %v4227 = vpop.f32.mrb[0].mxu0
    %v4228 = vadd.f32 %v3842, %v4227
    %v4229 = vpop.f32.mrb[0].mxu0
    %4230 = vmatprep.mubr.f32.mxu0 0.0
    %4231 = vmatmul.mubr.f32.gmra.mrb[0].mxu0 %v3923
    %v4232 = vpop.f32.mrb[0].mxu0
    %v4233 = vadd.f32 %v3842, %v4232
    %v4234 = vpop.f32.mrb[0].mxu0
    %4235 = vmatprep.mubr.f32.mxu0 0.0
    %4236 = vmatmul.mubr.f32.gmra.mrb[0].mxu0 %v3926
    %v4237 = vpop.f32.mrb[0].mxu0
    %v4238 = vadd.f32 %v3842, %v4237
    %v4239 = vpop.f32.mrb[0].mxu0
    %4240 = vmatprep.mubr.f32.mxu0 0.0
    %4241 = vmatmul.mubr.f32.gmra.mrb[0].mxu0 %v3929
    %v4242 = vpop.f32.mrb[0].mxu0
    %v4243 = vadd.f32 %v3842, %v4242
    %v4244 = vpop.f32.mrb[0].mxu0
    %4245 = vmatprep.mubr.f32.mxu0 0.0
    %4246 = vmatmul.mubr.f32.gmra.mrb[0].mxu0 %v3932
    %v4247 = vpop.f32.mrb[0].mxu0
    %v4248 = vadd.f32 %v3842, %v4247
    %v4249 = vpop.f32.mrb[0].mxu0
    %4250 = vmatprep.mubr.f32.mxu0 0.0
    %4251 = vmatmul.mubr.f32.gmra.mrb[0].mxu0 %v3935
    %v4252 = vpop.f32.mrb[0].mxu0
    %v4253 = vadd.f32 %v3842, %v4252
    %v4254 = vpop.f32.mrb[0].mxu0
    %4255 = vmatprep.mubr.f32.mxu0 0.0
    %4256 = vmatmul.mubr.f32.gmra.mrb[0].mxu0 %v3938
    %v4257 = vpop.f32.mrb[0].mxu0
    %v4258 = vadd.f32 %v3842, %v4257
    %v4259 = vpop.f32.mrb[0].mxu0
    %4260 = vmatprep.mubr.f32.mxu0 0.0
    %4261 = vmatmul.mubr.f32.gmra.mrb[0].mxu0 %v3941
    %v4262 = vpop.f32.mrb[0].mxu0
    %v4263 = vadd.f32 %v3842, %v4262
    %v4264 = vpop.f32.mrb[0].mxu0
    %4265 = vmatprep.mubr.f32.mxu0 0.0
    %4266 = vmatmul.mubr.f32.gmra.mrb[0].mxu0 %v3944
    %v4267 = vpop.f32.mrb[0].mxu0
    %v4268 = vadd.f32 %v3842, %v4267
    %v4269 = vpop.f32.mrb[0].mxu0
    %4270 = vmatprep.mubr.f32.mxu0 0.0
    %4271 = vmatmul.mubr.f32.gmra.mrb[0].mxu0 %v3947
    %v4272 = vpop.f32.mrb[0].mxu0
    %v4273 = vadd.f32 %v3842, %v4272
    %v4274 = vpop.f32.mrb[0].mxu0
    %4275 = vmatprep.mubr.f32.mxu0 0.0
    %4276 = vmatmul.mubr.f32.gmra.mrb[0].mxu0 %v3950
    %v4277 = vpop.f32.mrb[0].mxu0
    %v4278 = vadd.f32 %v3842, %v4277
    %v4279 = vpop.f32.mrb[0].mxu0
    %4280 = vmatprep.mubr.f32.mxu0 0.0
    %4281 = vmatmul.mubr.f32.gmra.mrb[0].mxu0 %v3953
    %v4282 = vpop.f32.mrb[0].mxu0
    %v4283 = vadd.f32 %v3842, %v4282
    %v4284 = vpop.f32.mrb[0].mxu0
    %4285 = vmatprep.mubr.f32.mxu0 0.0
    %4286 = vmatmul.mubr.f32.gmra.mrb[0].mxu0 %v3956
    %v4287 = vpop.f32.mrb[0].mxu0
    %v4288 = vadd.f32 %v3842, %v4287
    %v4289 = vpop.f32.mrb[0].mxu0
    %4290 = vmatprep.mubr.f32.mxu0 0.0
    %4291 = vmatmul.mubr.f32.gmra.mrb[0].mxu0 %v3959
    %v4292 = vpop.f32.mrb[0].mxu0
    %v4293 = vadd.f32 %v3842, %v4292
    %v4294 = vpop.f32.mrb[0].mxu0
    %4295 = vmatprep.mubr.f32.mxu0 0.0
    %4296 = vmatmul.mubr.f32.gmra.mrb[0].mxu0 %v3962
    %v4297 = vpop.f32.mrb[0].mxu0
    %v4298 = vadd.f32 %v3842, %v4297
    %v4299 = vpop.f32.mrb[0].mxu0
    %4300 = vmatprep.mubr.f32.mxu0 0.0
    %4301 = vmatmul.mubr.f32.gmra.mrb[0].mxu0 %v3965
    %v4302 = vpop.f32.mrb[0].mxu0
    %v4303 = vadd.f32 %v3842, %v4302
    %v4304 = vpop.f32.mrb[0].mxu0
    %4305 = vmatprep.mubr.f32.mxu0 0.0
    %4306 = vmatmul.mubr.f32.gmra.mrb[0].mxu0 %v3968
    %v4307 = vpop.f32.mrb[0].mxu0
    %v4308 = vadd.f32 %v3842, %v4307
    %v4309 = vpop.f32.mrb[0].mxu0
    %4310 = vmatprep.mubr.f32.mxu0 0.0
    %4311 = vmatmul.mubr.f32.gmra.mrb[0].mxu0 %v3971
    %v4312 = vpop.f32.mrb[0].mxu0
    %v4313 = vadd.f32 %v3842, %v4312
    %v4314 = vpop.f32.mrb[0].mxu0
    %4315 = vmatprep.mubr.f32.mxu0 0.0
    %4316 = vmatmul.mubr.f32.gmra.mrb[0].mxu0 %v3974
    %v4317 = vpop.f32.mrb[0].mxu0
    %v4318 = vadd.f32 %v3842, %v4317
    %v4319 = vpop.f32.mrb[0].mxu0
    %4320 = vmatprep.mubr.f32.mxu0 0.0
    %4321 = vmatmul.mubr.f32.gmra.mrb[0].mxu0 %v3977
    %v4322 = vpop.f32.mrb[0].mxu0
    %v4323 = vadd.f32 %v3842, %v4322
    %v4324 = vpop.f32.mrb[0].mxu0
    %4325 = vmatprep.mubr.f32.mxu0 0.0
    %4326 = vmatmul.mubr.f32.gmra.mrb[0].mxu0 %v3980
    %v4327 = vpop.f32.mrb[0].mxu0
    %v4328 = vadd.f32 %v3842, %v4327
    %v4329 = vpop.f32.mrb[0].mxu0
    %4330 = vmatprep.mubr.f32.mxu0 0.0
    %4331 = vmatmul.mubr.f32.gmra.mrb[0].mxu0 %v3983
    %v4332 = vpop.f32.mrb[0].mxu0
    %v4333 = vadd.f32 %v3842, %v4332
    %v4334 = vpop.f32.mrb[0].mxu0
    %4335 = vmatprep.mubr.f32.mxu0 0.0
    %4336 = vmatmul.mubr.f32.gmra.mrb[0].mxu0 %v3986
    %v4337 = vpop.f32.mrb[0].mxu0
    %v4338 = vadd.f32 %v3842, %v4337
    %v4339 = vpop.f32.mrb[0].mxu0
    %4340 = vmatprep.mubr.f32.mxu0 0.0
    %4341 = vmatmul.mubr.f32.gmra.mrb[0].mxu0 %v3989
    %v4342 = vpop.f32.mrb[0].mxu0
    %v4343 = vadd.f32 %v3842, %v4342
    %v4344 = vpop.f32.mrb[0].mxu0
    %4345 = vmatprep.mubr.f32.mxu0 0.0
    %4346 = vmatmul.mubr.f32.gmra.mrb[0].mxu0 %v3992
    %v4347 = vpop.f32.mrb[0].mxu0
    %v4348 = vadd.f32 %v3842, %v4347
    %v4349 = vpop.f32.mrb[0].mxu0
    %4350 = vmatprep.mubr.f32.mxu0 0.0
    %4351 = vmatmul.mubr.f32.gmra.mrb[0].mxu0 %v3995
    %v4352 = vpop.f32.mrb[0].mxu0
    %v4353 = vadd.f32 %v3842, %v4352
    %v4354 = vpop.f32.mrb[0].mxu0
    %4355 = vmatprep.mubr.f32.mxu0 0.0
    %4356 = vmatmul.mubr.f32.gmra.mrb[0].mxu0 %v3998
    %v4357 = vpop.f32.mrb[0].mxu0
    %v4358 = vadd.f32 %v3842, %v4357
    %v4359 = vpop.f32.mrb[0].mxu0
    %4360 = vmatprep.mubr.f32.mxu0 0.0
    %4361 = vmatmul.mubr.f32.gmra.mrb[0].mxu0 %v4001
    %v4362 = vpop.f32.mrb[0].mxu0
    %v4363 = vadd.f32 %v3842, %v4362
    %v4364 = vpop.f32.mrb[0].mxu0
    %4365 = vmatprep.mubr.f32.mxu0 0.0
    %4366 = vmatmul.mubr.f32.gmra.mrb[0].mxu0 %v4004
    %v4367 = vpop.f32.mrb[0].mxu0
    %v4368 = vadd.f32 %v3842, %v4367
    %v4369 = vpop.f32.mrb[0].mxu0
    %4370 = vmatprep.mubr.f32.mxu0 0.0
    %4371 = vmatmul.mubr.f32.gmra.mrb[0].mxu0 %v4007
    %v4372 = vpop.f32.mrb[0].mxu0
    %v4373 = vadd.f32 %v3842, %v4372
    %v4374 = vpop.f32.mrb[0].mxu0
    %4375 = vmatprep.mubr.f32.mxu0 0.0
    %4376 = vmatmul.mubr.f32.gmra.mrb[0].mxu0 %v4010
    %v4377 = vpop.f32.mrb[0].mxu0
    %v4378 = vadd.f32 %v3842, %v4377
    %v4379 = vpop.f32.mrb[0].mxu0
    %4380 = vmatprep.mubr.f32.mxu0 0.0
    %4381 = vmatmul.mubr.f32.gmra.mrb[0].mxu0 %v4013
    %v4382 = vpop.f32.mrb[0].mxu0
    %v4383 = vadd.f32 %v3842, %v4382
    %v4384 = vpop.f32.mrb[0].mxu0
    %4385 = vmatprep.mubr.f32.mxu0 0.0
    %4386 = vmatmul.mubr.f32.gmra.mrb[0].mxu0 %v4016
    %v4387 = vpop.f32.mrb[0].mxu0
    %v4388 = vadd.f32 %v3842, %v4387
    %v4389 = vpop.f32.mrb[0].mxu0
    %4390 = vmatprep.mubr.f32.mxu0 0.0
    %4391 = vmatmul.mubr.f32.gmra.mrb[0].mxu0 %v4019
    %v4392 = vpop.f32.mrb[0].mxu0
    %v4393 = vadd.f32 %v3842, %v4392
    %v4394 = vpop.f32.mrb[0].mxu0
    %4395 = vmatprep.mubr.f32.mxu0 0.0
    %4396 = vmatmul.mubr.f32.gmra.mrb[0].mxu0 %v4022
    %v4397 = vpop.f32.mrb[0].mxu0
    %v4398 = vadd.f32 %v3842, %v4397
    %v4399 = vpop.f32.mrb[0].mxu0
    %4400 = vmatprep.mubr.f32.mxu0 0.0
    %4401 = vmatmul.mubr.f32.gmra.mrb[0].mxu0 %v4025
    %v4402 = vpop.f32.mrb[0].mxu0
    %v4403 = vadd.f32 %v3842, %v4402
    %v4404 = vpop.f32.mrb[0].mxu0
    %4405 = vmatprep.mubr.f32.mxu0 0.0
    %4406 = vmatmul.mubr.f32.gmra.mrb[0].mxu0 %v4028
    %v4407 = vpop.f32.mrb[0].mxu0
    %v4408 = vadd.f32 %v3842, %v4407
    %v4409 = vpop.f32.mrb[0].mxu0
    %4410 = vmatprep.mubr.f32.mxu0 0.0
    %4411 = vmatmul.mubr.f32.gmra.mrb[0].mxu0 %v4031
    %v4412 = vpop.f32.mrb[0].mxu0
    %v4413 = vadd.f32 %v3842, %v4412
    %v4414 = vpop.f32.mrb[0].mxu0
    %4415 = vmatprep.mubr.f32.mxu0 0.0
    %4416 = vmatmul.mubr.f32.gmra.mrb[0].mxu0 %v4034
    %v4417 = vpop.f32.mrb[0].mxu0
    %v4418 = vadd.f32 %v3842, %v4417
    %v4419 = vpop.f32.mrb[0].mxu0
    %4420 = vdwg.mxu0
    %4421 = vst [vmem:[#allocation6] sm:$0xff] %v4103
    %4422 = vst [vmem:[#allocation6 + $0x8] sm:$0xff] %v4108
    %4423 = vst [vmem:[#allocation6 + $0x10] sm:$0xff] %v4113
    %4424 = vst [vmem:[#allocation6 + $0x18] sm:$0xff] %v4118
    %4425 = vst [vmem:[#allocation6 + $0x20] sm:$0xff] %v4123
    %4426 = vst [vmem:[#allocation6 + $0x28] sm:$0xff] %v4128
    %4427 = vst [vmem:[#allocation6 + $0x30] sm:$0xff] %v4133
    %4428 = vst [vmem:[#allocation6 + $0x38] sm:$0xff] %v4138
    %4429 = vst [vmem:[#allocation6 + $0x40] sm:$0xff] %v4143
    %4430 = vst [vmem:[#allocation6 + $0x48] sm:$0xff] %v4148
    %4431 = vst [vmem:[#allocation6 + $0x50] sm:$0xff] %v4153
    %4432 = vst [vmem:[#allocation6 + $0x58] sm:$0xff] %v4158
    %4433 = vst [vmem:[#allocation6 + $0x60] sm:$0xff] %v4163
    %4434 = vst [vmem:[#allocation6 + $0x68] sm:$0xff] %v4168
    %4435 = vst [vmem:[#allocation6 + $0x70] sm:$0xff] %v4173
    %4436 = vst [vmem:[#allocation6 + $0x78] sm:$0xff] %v4178
    %4437 = vst [vmem:[#allocation6 + $0x80] sm:$0xff] %v4183
    %4438 = vst [vmem:[#allocation6 + $0x88] sm:$0xff] %v4188
    %4439 = vst [vmem:[#allocation6 + $0x90] sm:$0xff] %v4193
    %4440 = vst [vmem:[#allocation6 + $0x98] sm:$0xff] %v4198
    %4441 = vst [vmem:[#allocation6 + $0xa0] sm:$0xff] %v4203
    %4442 = vst [vmem:[#allocation6 + $0xa8] sm:$0xff] %v4208
    %4443 = vst [vmem:[#allocation6 + $0xb0] sm:$0xff] %v4213
    %4444 = vst [vmem:[#allocation6 + $0xb8] sm:$0xff] %v4218
    %4445 = vst [vmem:[#allocation6 + $0xc0] sm:$0xff] %v4223
    %4446 = vst [vmem:[#allocation6 + $0xc8] sm:$0xff] %v4228
    %4447 = vst [vmem:[#allocation6 + $0xd0] sm:$0xff] %v4233
    %4448 = vst [vmem:[#allocation6 + $0xd8] sm:$0xff] %v4238
    %4449 = vst [vmem:[#allocation6 + $0xe0] sm:$0xff] %v4243
    %4450 = vst [vmem:[#allocation6 + $0xe8] sm:$0xff] %v4248
    %4451 = vst [vmem:[#allocation6 + $0xf0] sm:$0xff] %v4253
    %4452 = vst [vmem:[#allocation6 + $0xf8] sm:$0xff] %v4258
    %4453 = vst [vmem:[#allocation6 + $0x100] sm:$0xff] %v4263
    %4454 = vst [vmem:[#allocation6 + $0x108] sm:$0xff] %v4268
    %4455 = vst [vmem:[#allocation6 + $0x110] sm:$0xff] %v4273
    %4456 = vst [vmem:[#allocation6 + $0x118] sm:$0xff] %v4278
    %4457 = vst [vmem:[#allocation6 + $0x120] sm:$0xff] %v4283
    %4458 = vst [vmem:[#allocation6 + $0x128] sm:$0xff] %v4288
    %4459 = vst [vmem:[#allocation6 + $0x130] sm:$0xff] %v4293
    %4460 = vst [vmem:[#allocation6 + $0x138] sm:$0xff] %v4298
    %4461 = vst [vmem:[#allocation6 + $0x140] sm:$0xff] %v4303
    %4462 = vst [vmem:[#allocation6 + $0x148] sm:$0xff] %v4308
    %4463 = vst [vmem:[#allocation6 + $0x150] sm:$0xff] %v4313
    %4464 = vst [vmem:[#allocation6 + $0x158] sm:$0xff] %v4318
    %4465 = vst [vmem:[#allocation6 + $0x160] sm:$0xff] %v4323
    %4466 = vst [vmem:[#allocation6 + $0x168] sm:$0xff] %v4328
    %4467 = vst [vmem:[#allocation6 + $0x170] sm:$0xff] %v4333
    %4468 = vst [vmem:[#allocation6 + $0x178] sm:$0xff] %v4338
    %4469 = vst [vmem:[#allocation6 + $0x180] sm:$0xff] %v4343
    %4470 = vst [vmem:[#allocation6 + $0x188] sm:$0xff] %v4348
    %4471 = vst [vmem:[#allocation6 + $0x190] sm:$0xff] %v4353
    %4472 = vst [vmem:[#allocation6 + $0x198] sm:$0xff] %v4358
    %4473 = vst [vmem:[#allocation6 + $0x1a0] sm:$0xff] %v4363
    %4474 = vst [vmem:[#allocation6 + $0x1a8] sm:$0xff] %v4368
    %4475 = vst [vmem:[#allocation6 + $0x1b0] sm:$0xff] %v4373
    %4476 = vst [vmem:[#allocation6 + $0x1b8] sm:$0xff] %v4378
    %4477 = vst [vmem:[#allocation6 + $0x1c0] sm:$0xff] %v4383
    %4478 = vst [vmem:[#allocation6 + $0x1c8] sm:$0xff] %v4388
    %4479 = vst [vmem:[#allocation6 + $0x1d0] sm:$0xff] %v4393
    %4480 = vst [vmem:[#allocation6 + $0x1d8] sm:$0xff] %v4398
    %4481 = vst [vmem:[#allocation6 + $0x1e0] sm:$0xff] %v4403
    %4482 = vst [vmem:[#allocation6 + $0x1e8] sm:$0xff] %v4408
    %4483 = vst [vmem:[#allocation6 + $0x1f0] sm:$0xff] %v4413
    %4484 = vst [vmem:[#allocation6 + $0x1f8] sm:$0xff] %v4418
    // Predicated region
    $region26: #{tpu_custom_call.1} parent=1 // pred_check
      _
    $region27: #{tpu_custom_call.1} parent=1 // pred_check_branch
      %4486 = sbr.rel (0) target = $region29
    $region28: #{tpu_custom_call.1} parent=1 // pred_region
      %s4488 = ssub.s32 8192, 8192
      %4489 = vsyncadd [#allocation5], %s4488
      %s4490 = sshll.u32 [#allocation6], 4
      %s4491 = int_to_ptr.vmem [resolvable:$true] %s4490
      %4496 = dma.vmem_to_hbm [thread:$0]  %s4491, 8192, %s5, [#allocation5], 128, 128, 8
    $region29: #{tpu_custom_call.1} parent=1 // pred_fallthru
      _
    // Predicated region
    $region30: #{tpu_custom_call.1} parent=1 // pred_check
      _
    $region31: #{tpu_custom_call.1} parent=1 // pred_check_branch
      %4498 = sbr.rel (0) target = $region33
    $region32: #{tpu_custom_call.1} parent=1 // pred_region
      %4499 = dma.done [#allocation5], 8192
    $region33: #{tpu_custom_call.1} parent=1 // pred_fallthru
      _
    %4500 = vsyncpa [#allocation4], 1
    %4501 = vsyncpa [#allocation5], 1

</llo_original>
